<compile_context>
chip_gen: v7x
topology: tpu7x:2x2x1
jax: 0.10.0
libtpu: 0.0.40
codegen_flags: <defaults>
</compile_context>

<pallas_src>
import jax
import jax.numpy as jnp
from jax.experimental import pallas as pl
from jax.experimental.pallas import tpu as pltpu

# ---------------- model config (SMALL, consistent with the module) ----------
VOCAB = 200        # nn.Embedding(200, emb_dim)
EMB_DIM = 16       # config.gru_emb
HID = 32           # config.gru_hid
MAX_LEN = 8        # config.max_len
NUM_LAYERS = 2     # config.num_layers
NUM_TASKS = 3      # args.num_tasks
BATCH = 4          # 2*BATCH = 8 rows -> sublane aligned

H = HID
H2 = 2 * HID       # per-gate lane width in the spread layout (fwd | bwd halves)
H6 = 6 * HID       # 3 gates x 2H lanes
B2 = 2 * BATCH
SLAB_LANES = H6


# ---------------- parameter-slab layout (static python ints) ----------------
def _slab_entries():
    entries = [("lin1_w", EMB_DIM, H), ("lin1_b", 1, H)]
    for l in range(NUM_LAYERS):
        in_dim = H if l == 0 else H2
        entries += [(f"w_ih_f_{l}", in_dim, H6), (f"w_ih_b_{l}", in_dim, H6),
                    (f"b_i_f_{l}", 1, H6), (f"b_i_b_{l}", 1, H6),
                    (f"w_hh_{l}", H2, H6), (f"b_hn_{l}", B2, H2)]
    entries += [("ret_w", H2, H), ("ret_b", 1, H),
                ("c1_w", H, H), ("c1_b", 1, H),
                ("c2_w", H, NUM_TASKS), ("c2_b", 1, NUM_TASKS)]
    return entries


def _slab_layout():
    offsets, row = {}, 0
    for name, r, c in _slab_entries():
        offsets[name] = (row, r, c)
        row += -(-r // 8) * 8          # 8-row (sublane) aligned entries
    return offsets, row


SLAB_OFFSETS, SLAB_ROWS = _slab_layout()


# ------------------------------- the kernel ---------------------------------
def make_kernel(num_layers, seq_len, offsets):
    L, B = seq_len, BATCH

    def kernel(x_ref, masks_ref, slab_ref, out_ref, gi_ref, hout_ref):
        def par(name):
            off, r, c = offsets[name]
            return slab_ref[off:off + r, :c]

        # hoisted: one compare for every step mask; lin1 for all timesteps
        mall = masks_ref[...] > 0.0                        # (2L, 2B, 2H) bool
        layer_x = (jnp.dot(x_ref[...], par("lin1_w"),
                           preferred_element_type=jnp.float32) + par("lin1_b"))

        h = None
        gath_b = jnp.zeros((B2, H2), jnp.float32)          # bwd half of the gather

        for l in range(num_layers):
            last = l == num_layers - 1
            if l > 0:
                # hoisted re-alignment of the previous layer's per-step states
                # into a time-ordered (L*B, 2H) input.  hout[s] is fully
                # written for every s by the previous loop (no stale VMEM);
                # fwd/bwd halves occupy complementary zero lanes, so the lane
                # concat is a plain add.
                ho = hout_ref[...]                         # (L, 2B, 2H)
                layer_x = jnp.concatenate(
                    [ho[t, :B, :] + ho[L - 1 - t, B:, :] for t in range(L)],
                    axis=0)                                # (L*B, 2H)

            # hoisted fused input projections.  Spread gate layout:
            # lanes [g*2H : g*2H+H] = fwd dir, [g*2H+H : (g+1)*2H] = bwd dir.
            gi_f = (jnp.dot(layer_x, par(f"w_ih_f_{l}"),
                            preferred_element_type=jnp.float32) + par(f"b_i_f_{l}"))
            gi_b = (jnp.dot(layer_x, par(f"w_ih_b_{l}"),
                            preferred_element_type=jnp.float32) + par(f"b_i_b_{l}"))
            # pre-pack per-step gate inputs into aligned (2B, 6H) slabs
            # (off the recurrence critical path).
            for s in range(L):
                tb = L - 1 - s                             # time handled by bwd dir
                gi_ref[s, 0:B, :] = gi_f[s * B:(s + 1) * B, :]
                gi_ref[s, B:B2, :] = gi_b[tb * B:(tb + 1) * B, :]

            w_hh = par(f"w_hh_{l}")                        # (2H, 6H) block-diag
            bhn = par(f"b_hn_{l}")                         # (2B, 2H) block-diag

            # block-diagonal hidden state: rows [:B]=fwd (lanes [:H]),
            # rows [B:]=bwd (lanes [H:2H]); off-diagonal lanes stay 0, so h is
            # the recurrent matmul LHS with no per-step prep.
            h = jnp.zeros((B2, H2), jnp.float32)
            for s in range(L):
                gi_s = gi_ref[s]                           # (2B, 6H) aligned load
                gh = jnp.dot(h, w_hh, preferred_element_type=jnp.float32)
                rz = jax.nn.sigmoid(gi_s[:, :2 * H2] + gh[:, :2 * H2])
                r = rz[:, :H2]
                z = rz[:, H2:]
                n = jnp.tanh(gi_s[:, 2 * H2:] + r * (gh[:, 2 * H2:] + bhn))
                h_new = n + z * (h - n)                    # == (1-z)*n + z*h
                h = jnp.where(mall[s], h_new, h)           # freeze past length
                if last:
                    # backward half of the t = len-1 gather (not on the
                    # recurrence critical path)
                    gath_b = jnp.where(mall[L + s], h, gath_b)
                else:
                    hout_ref[s, :, :] = h                  # aligned (2B,2H) store

        # gather at t = len-1: fwd half is the frozen fwd state, bwd half was
        # selected per step; the two halves live in complementary lanes.
        gathered = h[:B, :] + gath_b[B:, :]                # (B, 2H)

        # return_mlp + classifier
        seq_repr = (jnp.dot(gathered, par("ret_w"),
                            preferred_element_type=jnp.float32) + par("ret_b"))
        hc = (jnp.dot(seq_repr, par("c1_w"),
                      preferred_element_type=jnp.float32) + par("c1_b"))
        hc = jnp.where(hc >= 0.0, hc, 0.01 * hc)           # LeakyReLU(0.01)
        out = (jnp.dot(hc, par("c2_w"),
                       preferred_element_type=jnp.float32) + par("c2_b"))
        out_ref[...] = out.astype(out_ref.dtype)

    return kernel


# ------------------------- wrapper-side preparation --------------------------
def _spread_ih(w_ih, b_ih, b_hh, d):
    """(3,in,H) gate params of direction d -> (in,6H) weight + (1,6H) bias in
    the 2H-lanes-per-gate layout (fwd half | bwd half); b_hh folded for r,z."""
    in_dim = w_ih.shape[1]
    zw = jnp.zeros((in_dim, H), jnp.float32)
    zb = jnp.zeros((1, H), jnp.float32)
    w_cols, b_cols = [], []
    for g in range(3):
        gb = b_ih[g] + (b_hh[g] if g < 2 else 0.0)   # b_hh_n stays inside r*(...)
        w_cols += [w_ih[g], zw] if d == 0 else [zw, w_ih[g]]
        b_cols += [gb, zb] if d == 0 else [zb, gb]
    return jnp.concatenate(w_cols, axis=1), jnp.concatenate(b_cols, axis=1)


def _spread_hh(w_hh_f, w_hh_b):
    zw = jnp.zeros((H, H), jnp.float32)
    top = jnp.concatenate([w_hh_f[0], zw, w_hh_f[1], zw, w_hh_f[2], zw], axis=1)
    bot = jnp.concatenate([zw, w_hh_b[0], zw, w_hh_b[1], zw, w_hh_b[2]], axis=1)
    return jnp.concatenate([top, bot], axis=0)                       # (2H, 6H)


def _spread_bhn(b_hh_n_f, b_hh_n_b):
    zb = jnp.zeros((BATCH, H), jnp.float32)
    top = jnp.concatenate([jnp.broadcast_to(b_hh_n_f, (BATCH, H)), zb], axis=1)
    bot = jnp.concatenate([zb, jnp.broadcast_to(b_hh_n_b, (BATCH, H))], axis=1)
    return jnp.concatenate([top, bot], axis=0)                       # (2B, 2H)


def _pack_slab(tensors):
    slab = jnp.zeros((SLAB_ROWS, SLAB_LANES), jnp.float32)
    for name, a in tensors.items():
        off, r, c = SLAB_OFFSETS[name]
        slab = slab.at[off:off + r, :c].set(a.astype(jnp.float32))
    return slab


def _build_masks(lengths):
    """(2L, 2B, 2H) f32: [0:L] = per-step validity (block-diag lanes),
    [L:2L] = selector for the bwd state at t = len-1 (bwd rows/lanes only)."""
    L, B = MAX_LEN, BATCH
    s_idx = jnp.arange(L, dtype=jnp.int32)[:, None]                    # kernel step
    valid_f = (s_idx < lengths[None, :]).astype(jnp.float32)           # fwd time = s
    valid_b = ((L - 1 - s_idx) < lengths[None, :]).astype(jnp.float32) # bwd time = L-1-s
    lastsel = ((L - 1 - s_idx) == (lengths[None, :] - 1)).astype(jnp.float32)
    z = jnp.zeros((L, B, H), jnp.float32)
    vf = jnp.broadcast_to(valid_f[:, :, None], (L, B, H))
    vb = jnp.broadcast_to(valid_b[:, :, None], (L, B, H))
    ls = jnp.broadcast_to(lastsel[:, :, None], (L, B, H))
    mvalid = jnp.concatenate(
        [jnp.concatenate([vf, z], axis=2),          # fwd rows -> lanes [:H]
         jnp.concatenate([z, vb], axis=2)], axis=1)  # bwd rows -> lanes [H:2H]
    lsel = jnp.concatenate(
        [jnp.zeros((L, B, H2), jnp.float32),
         jnp.concatenate([z, ls], axis=2)], axis=1)
    return jnp.concatenate([mvalid, lsel], axis=0)


def init_params(key):
    """Deterministic synthetic parameters (shapes follow the module's __init__)."""
    params = {}

    def nrm(key, shape, scale=0.1):
        return (scale * jax.random.normal(key, shape)).astype(jnp.float32)

    keys = iter(jax.random.split(key, 64))
    params["emb"] = nrm(next(keys), (VOCAB, EMB_DIM))
    params["lin1_w"] = nrm(next(keys), (EMB_DIM, HID))
    params["lin1_b"] = nrm(next(keys), (1, HID))
    for l in range(NUM_LAYERS):
        in_dim = HID if l == 0 else 2 * HID
        for d in range(2):
            params[f"gru_w_ih_{l}_{d}"] = nrm(next(keys), (3, in_dim, HID))  # (r,z,n)
            params[f"gru_w_hh_{l}_{d}"] = nrm(next(keys), (3, HID, HID))
            params[f"gru_b_ih_{l}_{d}"] = nrm(next(keys), (3, 1, HID))
            params[f"gru_b_hh_{l}_{d}"] = nrm(next(keys), (3, 1, HID))
    params["ret_w"] = nrm(next(keys), (2 * HID, HID))
    params["ret_b"] = nrm(next(keys), (1, HID))
    params["c1_w"] = nrm(next(keys), (HID, HID))
    params["c1_b"] = nrm(next(keys), (1, HID))
    params["c2_w"] = nrm(next(keys), (HID, NUM_TASKS))
    params["c2_b"] = nrm(next(keys), (1, NUM_TASKS))
    return params


@jax.jit
def seq_model_forward(tokens, lengths, params):
    """tokens: (B, L) int32, lengths: (B,) int32 with 1 <= len <= MAX_LEN."""
    # TODO(synk): lengths must satisfy 1 <= len <= MAX_LEN (pack_padded_sequence
    # semantics); len == 0 would silently gather zeros.
    B, L = tokens.shape

    # glue kept outside the kernel: embedding gather, time-major flatten, masks
    x_emb = jnp.take(params["emb"], tokens, axis=0)                    # (B, L, E)
    x_emb = jnp.transpose(x_emb, (1, 0, 2)).reshape(L * B, EMB_DIM).astype(jnp.float32)
    masks = _build_masks(lengths)

    tensors = {"lin1_w": params["lin1_w"], "lin1_b": params["lin1_b"],
               "ret_w": params["ret_w"], "ret_b": params["ret_b"],
               "c1_w": params["c1_w"], "c1_b": params["c1_b"],
               "c2_w": params["c2_w"], "c2_b": params["c2_b"]}
    for l in range(NUM_LAYERS):
        wf, bf = _spread_ih(params[f"gru_w_ih_{l}_0"], params[f"gru_b_ih_{l}_0"],
                            params[f"gru_b_hh_{l}_0"], d=0)
        wb, bb = _spread_ih(params[f"gru_w_ih_{l}_1"], params[f"gru_b_ih_{l}_1"],
                            params[f"gru_b_hh_{l}_1"], d=1)
        tensors[f"w_ih_f_{l}"] = wf
        tensors[f"w_ih_b_{l}"] = wb
        tensors[f"b_i_f_{l}"] = bf
        tensors[f"b_i_b_{l}"] = bb
        tensors[f"w_hh_{l}"] = _spread_hh(params[f"gru_w_hh_{l}_0"],
                                          params[f"gru_w_hh_{l}_1"])
        tensors[f"b_hn_{l}"] = _spread_bhn(params[f"gru_b_hh_{l}_0"][2],
                                           params[f"gru_b_hh_{l}_1"][2])
    slab = _pack_slab(tensors)

    kernel = make_kernel(NUM_LAYERS, L, SLAB_OFFSETS)
    vmem = pl.BlockSpec(memory_space=pltpu.MemorySpace.VMEM)
    out = pl.pallas_call(
        kernel,
        out_shape=jax.ShapeDtypeStruct((B, NUM_TASKS), jnp.float32),
        in_specs=[vmem, vmem, vmem],
        out_specs=vmem,
        scratch_shapes=[pltpu.VMEM((L, B2, H6), jnp.float32),   # packed gate inputs
                        pltpu.VMEM((L, B2, H2), jnp.float32)],  # per-step layer outputs
    )(x_emb, masks, slab)
    return out


# ------------------------------ pure-JAX reference ---------------------------
def _reference_forward(tokens, lengths, params):
    """Pure-JAX reference with the straightforward per-gate / per-step math."""
    B, L = tokens.shape
    x = jnp.take(params["emb"], tokens, axis=0)                          # (B, L, E)
    x = jnp.einsum("ble,eh->blh", x, params["lin1_w"]) + params["lin1_b"][0]
    mask = (jnp.arange(L)[None, :] < lengths[:, None]).astype(jnp.float32)

    def cell(x_t, h, w_ih, w_hh, b_ih, b_hh):
        r = jax.nn.sigmoid(x_t @ w_ih[0] + b_ih[0] + h @ w_hh[0] + b_hh[0])
        z = jax.nn.sigmoid(x_t @ w_ih[1] + b_ih[1] + h @ w_hh[1] + b_hh[1])
        n = jnp.tanh(x_t @ w_ih[2] + b_ih[2] + r * (h @ w_hh[2] + b_hh[2]))
        return (1.0 - z) * n + z * h

    layer_in = x
    for l in range(NUM_LAYERS):
        outs = []
        for d in range(2):
            w_ih = params[f"gru_w_ih_{l}_{d}"]; w_hh = params[f"gru_w_hh_{l}_{d}"]
            b_ih = params[f"gru_b_ih_{l}_{d}"]; b_hh = params[f"gru_b_hh_{l}_{d}"]
            h = jnp.zeros((B, HID), jnp.float32)
            out = [None] * L
            steps = range(L) if d == 0 else range(L - 1, -1, -1)
            for t in steps:
                m = mask[:, t:t + 1]
                h = m * cell(layer_in[:, t], h, w_ih, w_hh, b_ih, b_hh) + (1.0 - m) * h
                out[t] = h
            outs.append(jnp.stack(out, axis=1))
        layer_in = jnp.concatenate(outs, axis=-1)                        # (B, L, 2H)

    gathered = jnp.take_along_axis(
        layer_in, (lengths - 1)[:, None, None], axis=1)[:, 0]            # (B, 2H)
    seq_repr = gathered @ params["ret_w"] + params["ret_b"][0]
    h1 = seq_repr @ params["c1_w"] + params["c1_b"][0]
    h1 = jnp.where(h1 >= 0.0, h1, 0.01 * h1)
    return h1 @ params["c2_w"] + params["c2_b"][0]


if __name__ == "__main__":
    key = jax.random.PRNGKey(0)
    k_par, k_tok = jax.random.split(key)
    params = init_params(k_par)

    tokens = jax.random.randint(k_tok, (BATCH, MAX_LEN), 0, VOCAB, dtype=jnp.int32)
    lengths = jnp.array([MAX_LEN, 5, 3, 6], dtype=jnp.int32)   # per-sequence lengths

    out = seq_model_forward(tokens, lengths, params)
    jax.block_until_ready(out)
    assert out.shape == (BATCH, NUM_TASKS)

    ref = _reference_forward(tokens, lengths, params)
    assert jnp.allclose(out, ref, atol=1e-4, rtol=1e-4), (out, ref)
    print("KERNEL_OK")
</pallas_src>

<mosaic_0001>
module attributes {stable_mosaic.version = 11 : i64} {
  func.func @kernel(%arg0: memref<32x16xf32, #tpu.memory_space<vmem>>, %arg1: memref<16x8x64xf32, #tpu.memory_space<vmem>>, %arg2: memref<544x192xf32, #tpu.memory_space<vmem>>, %arg3: memref<4x3xf32, #tpu.memory_space<vmem>>, %arg4: memref<8x8x192xf32, #tpu.memory_space<vmem>>, %arg5: memref<8x8x64xf32, #tpu.memory_space<vmem>>) attributes {dimension_semantics = [], scalar_prefetch = 0 : i64, scratch_operands = 2 : i64, tpu.core_type = #tpu.core_type<tc>} {
    %c0 = arith.constant 0 : index
    %c0_0 = arith.constant 0 : index
    %c0_1 = arith.constant 0 : index
    %0 = vector.load %arg1[%c0, %c0_0, %c0_1] : memref<16x8x64xf32, #tpu.memory_space<vmem>>, vector<16x8x64xf32>
    %cst = arith.constant 0.000000e+00 : f32
    %1 = vector.broadcast %cst : f32 to vector<16x8x64xf32>
    %2 = arith.cmpf ogt, %0, %1 : vector<16x8x64xf32>
    %c0_2 = arith.constant 0 : index
    %c0_3 = arith.constant 0 : index
    %3 = vector.load %arg0[%c0_2, %c0_3] : memref<32x16xf32, #tpu.memory_space<vmem>>, vector<32x16xf32>
    %c0_4 = arith.constant 0 : index
    %c0_5 = arith.constant 0 : index
    %4 = vector.load %arg2[%c0_4, %c0_5] : memref<544x192xf32, #tpu.memory_space<vmem>>, vector<16x32xf32>
    %cst_6 = arith.constant dense<0.000000e+00> : vector<32x32xf32>
    %5 = tpu.matmul %3, %4, %cst_6 {dimension_numbers = #tpu.dot_dimension_numbers<[1], [0], [0], [1], [0, 0, 1, 1], [], []>} : vector<32x16xf32>, vector<16x32xf32>, vector<32x32xf32> -> vector<32x32xf32>
    %c16 = arith.constant 16 : index
    %c0_7 = arith.constant 0 : index
    %6 = vector.load %arg2[%c16, %c0_7] : memref<544x192xf32, #tpu.memory_space<vmem>>, vector<1x32xf32>
    %7 = vector.broadcast %6 : vector<1x32xf32> to vector<32x32xf32>
    %8 = arith.addf %5, %7 : vector<32x32xf32>
    %cst_8 = arith.constant 0.000000e+00 : f32
    %9 = vector.broadcast %cst_8 : f32 to vector<8x64xf32>
    %c24 = arith.constant 24 : index
    %c0_9 = arith.constant 0 : index
    %10 = vector.load %arg2[%c24, %c0_9] : memref<544x192xf32, #tpu.memory_space<vmem>>, vector<32x192xf32>
    %cst_10 = arith.constant dense<0.000000e+00> : vector<32x192xf32>
    %11 = tpu.matmul %8, %10, %cst_10 {dimension_numbers = #tpu.dot_dimension_numbers<[1], [0], [0], [1], [0, 0, 1, 1], [], []>} : vector<32x32xf32>, vector<32x192xf32>, vector<32x192xf32> -> vector<32x192xf32>
    %c88 = arith.constant 88 : index
    %c0_11 = arith.constant 0 : index
    %12 = vector.load %arg2[%c88, %c0_11] : memref<544x192xf32, #tpu.memory_space<vmem>>, vector<1x192xf32>
    %13 = vector.broadcast %12 : vector<1x192xf32> to vector<32x192xf32>
    %14 = arith.addf %11, %13 : vector<32x192xf32>
    %c56 = arith.constant 56 : index
    %c0_12 = arith.constant 0 : index
    %15 = vector.load %arg2[%c56, %c0_12] : memref<544x192xf32, #tpu.memory_space<vmem>>, vector<32x192xf32>
    %cst_13 = arith.constant dense<0.000000e+00> : vector<32x192xf32>
    %16 = tpu.matmul %8, %15, %cst_13 {dimension_numbers = #tpu.dot_dimension_numbers<[1], [0], [0], [1], [0, 0, 1, 1], [], []>} : vector<32x32xf32>, vector<32x192xf32>, vector<32x192xf32> -> vector<32x192xf32>
    %c96 = arith.constant 96 : index
    %c0_14 = arith.constant 0 : index
    %17 = vector.load %arg2[%c96, %c0_14] : memref<544x192xf32, #tpu.memory_space<vmem>>, vector<1x192xf32>
    %18 = vector.broadcast %17 : vector<1x192xf32> to vector<32x192xf32>
    %19 = arith.addf %16, %18 : vector<32x192xf32>
    %20 = vector.extract_strided_slice %14 {offsets = [0, 0], sizes = [4, 192], strides = [1, 1]} : vector<32x192xf32> to vector<4x192xf32>
    %c0_15 = arith.constant 0 : index
    %c0_16 = arith.constant 0 : index
    %c0_17 = arith.constant 0 : index
    %21 = vector.load %arg4[%c0_15, %c0_16, %c0_17] : memref<8x8x192xf32, #tpu.memory_space<vmem>>, vector<1x4x192xf32>
    %22 = vector.shape_cast %21 : vector<1x4x192xf32> to vector<4x192xf32>
    %23 = vector.shape_cast %20 : vector<4x192xf32> to vector<1x4x192xf32>
    tpu.vector_store %arg4[%c0_15, %c0_16, %c0_17], %23 {strides = array<i32>} : memref<8x8x192xf32, #tpu.memory_space<vmem>>, vector<1x4x192xf32>,
    %24 = vector.extract_strided_slice %19 {offsets = [28, 0], sizes = [4, 192], strides = [1, 1]} : vector<32x192xf32> to vector<4x192xf32>
    %c0_18 = arith.constant 0 : index
    %c4 = arith.constant 4 : index
    %c0_19 = arith.constant 0 : index
    %25 = vector.load %arg4[%c0_18, %c4, %c0_19] : memref<8x8x192xf32, #tpu.memory_space<vmem>>, vector<1x4x192xf32>
    %26 = vector.shape_cast %25 : vector<1x4x192xf32> to vector<4x192xf32>
    %27 = vector.shape_cast %24 : vector<4x192xf32> to vector<1x4x192xf32>
    tpu.vector_store %arg4[%c0_18, %c4, %c0_19], %27 {strides = array<i32>} : memref<8x8x192xf32, #tpu.memory_space<vmem>>, vector<1x4x192xf32>,
    %28 = vector.extract_strided_slice %14 {offsets = [4, 0], sizes = [4, 192], strides = [1, 1]} : vector<32x192xf32> to vector<4x192xf32>
    %c1 = arith.constant 1 : index
    %c0_20 = arith.constant 0 : index
    %c0_21 = arith.constant 0 : index
    %29 = vector.load %arg4[%c1, %c0_20, %c0_21] : memref<8x8x192xf32, #tpu.memory_space<vmem>>, vector<1x4x192xf32>
    %30 = vector.shape_cast %29 : vector<1x4x192xf32> to vector<4x192xf32>
    %31 = vector.shape_cast %28 : vector<4x192xf32> to vector<1x4x192xf32>
    tpu.vector_store %arg4[%c1, %c0_20, %c0_21], %31 {strides = array<i32>} : memref<8x8x192xf32, #tpu.memory_space<vmem>>, vector<1x4x192xf32>,
    %32 = vector.extract_strided_slice %19 {offsets = [24, 0], sizes = [4, 192], strides = [1, 1]} : vector<32x192xf32> to vector<4x192xf32>
    %c1_22 = arith.constant 1 : index
    %c4_23 = arith.constant 4 : index
    %c0_24 = arith.constant 0 : index
    %33 = vector.load %arg4[%c1_22, %c4_23, %c0_24] : memref<8x8x192xf32, #tpu.memory_space<vmem>>, vector<1x4x192xf32>
    %34 = vector.shape_cast %33 : vector<1x4x192xf32> to vector<4x192xf32>
    %35 = vector.shape_cast %32 : vector<4x192xf32> to vector<1x4x192xf32>
    tpu.vector_store %arg4[%c1_22, %c4_23, %c0_24], %35 {strides = array<i32>} : memref<8x8x192xf32, #tpu.memory_space<vmem>>, vector<1x4x192xf32>,
    %36 = vector.extract_strided_slice %14 {offsets = [8, 0], sizes = [4, 192], strides = [1, 1]} : vector<32x192xf32> to vector<4x192xf32>
    %c2 = arith.constant 2 : index
    %c0_25 = arith.constant 0 : index
    %c0_26 = arith.constant 0 : index
    %37 = vector.load %arg4[%c2, %c0_25, %c0_26] : memref<8x8x192xf32, #tpu.memory_space<vmem>>, vector<1x4x192xf32>
    %38 = vector.shape_cast %37 : vector<1x4x192xf32> to vector<4x192xf32>
    %39 = vector.shape_cast %36 : vector<4x192xf32> to vector<1x4x192xf32>
    tpu.vector_store %arg4[%c2, %c0_25, %c0_26], %39 {strides = array<i32>} : memref<8x8x192xf32, #tpu.memory_space<vmem>>, vector<1x4x192xf32>,
    %40 = vector.extract_strided_slice %19 {offsets = [20, 0], sizes = [4, 192], strides = [1, 1]} : vector<32x192xf32> to vector<4x192xf32>
    %c2_27 = arith.constant 2 : index
    %c4_28 = arith.constant 4 : index
    %c0_29 = arith.constant 0 : index
    %41 = vector.load %arg4[%c2_27, %c4_28, %c0_29] : memref<8x8x192xf32, #tpu.memory_space<vmem>>, vector<1x4x192xf32>
    %42 = vector.shape_cast %41 : vector<1x4x192xf32> to vector<4x192xf32>
    %43 = vector.shape_cast %40 : vector<4x192xf32> to vector<1x4x192xf32>
    tpu.vector_store %arg4[%c2_27, %c4_28, %c0_29], %43 {strides = array<i32>} : memref<8x8x192xf32, #tpu.memory_space<vmem>>, vector<1x4x192xf32>,
    %44 = vector.extract_strided_slice %14 {offsets = [12, 0], sizes = [4, 192], strides = [1, 1]} : vector<32x192xf32> to vector<4x192xf32>
    %c3 = arith.constant 3 : index
    %c0_30 = arith.constant 0 : index
    %c0_31 = arith.constant 0 : index
    %45 = vector.load %arg4[%c3, %c0_30, %c0_31] : memref<8x8x192xf32, #tpu.memory_space<vmem>>, vector<1x4x192xf32>
    %46 = vector.shape_cast %45 : vector<1x4x192xf32> to vector<4x192xf32>
    %47 = vector.shape_cast %44 : vector<4x192xf32> to vector<1x4x192xf32>
    tpu.vector_store %arg4[%c3, %c0_30, %c0_31], %47 {strides = array<i32>} : memref<8x8x192xf32, #tpu.memory_space<vmem>>, vector<1x4x192xf32>,
    %48 = vector.extract_strided_slice %19 {offsets = [16, 0], sizes = [4, 192], strides = [1, 1]} : vector<32x192xf32> to vector<4x192xf32>
    %c3_32 = arith.constant 3 : index
    %c4_33 = arith.constant 4 : index
    %c0_34 = arith.constant 0 : index
    %49 = vector.load %arg4[%c3_32, %c4_33, %c0_34] : memref<8x8x192xf32, #tpu.memory_space<vmem>>, vector<1x4x192xf32>
    %50 = vector.shape_cast %49 : vector<1x4x192xf32> to vector<4x192xf32>
    %51 = vector.shape_cast %48 : vector<4x192xf32> to vector<1x4x192xf32>
    tpu.vector_store %arg4[%c3_32, %c4_33, %c0_34], %51 {strides = array<i32>} : memref<8x8x192xf32, #tpu.memory_space<vmem>>, vector<1x4x192xf32>,
    %52 = vector.extract_strided_slice %14 {offsets = [16, 0], sizes = [4, 192], strides = [1, 1]} : vector<32x192xf32> to vector<4x192xf32>
    %c4_35 = arith.constant 4 : index
    %c0_36 = arith.constant 0 : index
    %c0_37 = arith.constant 0 : index
    %53 = vector.load %arg4[%c4_35, %c0_36, %c0_37] : memref<8x8x192xf32, #tpu.memory_space<vmem>>, vector<1x4x192xf32>
    %54 = vector.shape_cast %53 : vector<1x4x192xf32> to vector<4x192xf32>
    %55 = vector.shape_cast %52 : vector<4x192xf32> to vector<1x4x192xf32>
    tpu.vector_store %arg4[%c4_35, %c0_36, %c0_37], %55 {strides = array<i32>} : memref<8x8x192xf32, #tpu.memory_space<vmem>>, vector<1x4x192xf32>,
    %56 = vector.extract_strided_slice %19 {offsets = [12, 0], sizes = [4, 192], strides = [1, 1]} : vector<32x192xf32> to vector<4x192xf32>
    %c4_38 = arith.constant 4 : index
    %c4_39 = arith.constant 4 : index
    %c0_40 = arith.constant 0 : index
    %57 = vector.load %arg4[%c4_38, %c4_39, %c0_40] : memref<8x8x192xf32, #tpu.memory_space<vmem>>, vector<1x4x192xf32>
    %58 = vector.shape_cast %57 : vector<1x4x192xf32> to vector<4x192xf32>
    %59 = vector.shape_cast %56 : vector<4x192xf32> to vector<1x4x192xf32>
    tpu.vector_store %arg4[%c4_38, %c4_39, %c0_40], %59 {strides = array<i32>} : memref<8x8x192xf32, #tpu.memory_space<vmem>>, vector<1x4x192xf32>,
    %60 = vector.extract_strided_slice %14 {offsets = [20, 0], sizes = [4, 192], strides = [1, 1]} : vector<32x192xf32> to vector<4x192xf32>
    %c5 = arith.constant 5 : index
    %c0_41 = arith.constant 0 : index
    %c0_42 = arith.constant 0 : index
    %61 = vector.load %arg4[%c5, %c0_41, %c0_42] : memref<8x8x192xf32, #tpu.memory_space<vmem>>, vector<1x4x192xf32>
    %62 = vector.shape_cast %61 : vector<1x4x192xf32> to vector<4x192xf32>
    %63 = vector.shape_cast %60 : vector<4x192xf32> to vector<1x4x192xf32>
    tpu.vector_store %arg4[%c5, %c0_41, %c0_42], %63 {strides = array<i32>} : memref<8x8x192xf32, #tpu.memory_space<vmem>>, vector<1x4x192xf32>,
    %64 = vector.extract_strided_slice %19 {offsets = [8, 0], sizes = [4, 192], strides = [1, 1]} : vector<32x192xf32> to vector<4x192xf32>
    %c5_43 = arith.constant 5 : index
    %c4_44 = arith.constant 4 : index
    %c0_45 = arith.constant 0 : index
    %65 = vector.load %arg4[%c5_43, %c4_44, %c0_45] : memref<8x8x192xf32, #tpu.memory_space<vmem>>, vector<1x4x192xf32>
    %66 = vector.shape_cast %65 : vector<1x4x192xf32> to vector<4x192xf32>
    %67 = vector.shape_cast %64 : vector<4x192xf32> to vector<1x4x192xf32>
    tpu.vector_store %arg4[%c5_43, %c4_44, %c0_45], %67 {strides = array<i32>} : memref<8x8x192xf32, #tpu.memory_space<vmem>>, vector<1x4x192xf32>,
    %68 = vector.extract_strided_slice %14 {offsets = [24, 0], sizes = [4, 192], strides = [1, 1]} : vector<32x192xf32> to vector<4x192xf32>
    %c6 = arith.constant 6 : index
    %c0_46 = arith.constant 0 : index
    %c0_47 = arith.constant 0 : index
    %69 = vector.load %arg4[%c6, %c0_46, %c0_47] : memref<8x8x192xf32, #tpu.memory_space<vmem>>, vector<1x4x192xf32>
    %70 = vector.shape_cast %69 : vector<1x4x192xf32> to vector<4x192xf32>
    %71 = vector.shape_cast %68 : vector<4x192xf32> to vector<1x4x192xf32>
    tpu.vector_store %arg4[%c6, %c0_46, %c0_47], %71 {strides = array<i32>} : memref<8x8x192xf32, #tpu.memory_space<vmem>>, vector<1x4x192xf32>,
    %72 = vector.extract_strided_slice %19 {offsets = [4, 0], sizes = [4, 192], strides = [1, 1]} : vector<32x192xf32> to vector<4x192xf32>
    %c6_48 = arith.constant 6 : index
    %c4_49 = arith.constant 4 : index
    %c0_50 = arith.constant 0 : index
    %73 = vector.load %arg4[%c6_48, %c4_49, %c0_50] : memref<8x8x192xf32, #tpu.memory_space<vmem>>, vector<1x4x192xf32>
    %74 = vector.shape_cast %73 : vector<1x4x192xf32> to vector<4x192xf32>
    %75 = vector.shape_cast %72 : vector<4x192xf32> to vector<1x4x192xf32>
    tpu.vector_store %arg4[%c6_48, %c4_49, %c0_50], %75 {strides = array<i32>} : memref<8x8x192xf32, #tpu.memory_space<vmem>>, vector<1x4x192xf32>,
    %76 = vector.extract_strided_slice %14 {offsets = [28, 0], sizes = [4, 192], strides = [1, 1]} : vector<32x192xf32> to vector<4x192xf32>
    %c7 = arith.constant 7 : index
    %c0_51 = arith.constant 0 : index
    %c0_52 = arith.constant 0 : index
    %77 = vector.load %arg4[%c7, %c0_51, %c0_52] : memref<8x8x192xf32, #tpu.memory_space<vmem>>, vector<1x4x192xf32>
    %78 = vector.shape_cast %77 : vector<1x4x192xf32> to vector<4x192xf32>
    %79 = vector.shape_cast %76 : vector<4x192xf32> to vector<1x4x192xf32>
    tpu.vector_store %arg4[%c7, %c0_51, %c0_52], %79 {strides = array<i32>} : memref<8x8x192xf32, #tpu.memory_space<vmem>>, vector<1x4x192xf32>,
    %80 = vector.extract_strided_slice %19 {offsets = [0, 0], sizes = [4, 192], strides = [1, 1]} : vector<32x192xf32> to vector<4x192xf32>
    %c7_53 = arith.constant 7 : index
    %c4_54 = arith.constant 4 : index
    %c0_55 = arith.constant 0 : index
    %81 = vector.load %arg4[%c7_53, %c4_54, %c0_55] : memref<8x8x192xf32, #tpu.memory_space<vmem>>, vector<1x4x192xf32>
    %82 = vector.shape_cast %81 : vector<1x4x192xf32> to vector<4x192xf32>
    %83 = vector.shape_cast %80 : vector<4x192xf32> to vector<1x4x192xf32>
    tpu.vector_store %arg4[%c7_53, %c4_54, %c0_55], %83 {strides = array<i32>} : memref<8x8x192xf32, #tpu.memory_space<vmem>>, vector<1x4x192xf32>,
    %c104 = arith.constant 104 : index
    %c0_56 = arith.constant 0 : index
    %84 = vector.load %arg2[%c104, %c0_56] : memref<544x192xf32, #tpu.memory_space<vmem>>, vector<64x192xf32>
    %c168 = arith.constant 168 : index
    %c0_57 = arith.constant 0 : index
    %85 = vector.load %arg2[%c168, %c0_57] : memref<544x192xf32, #tpu.memory_space<vmem>>, vector<8x64xf32>
    %cst_58 = arith.constant 0.000000e+00 : f32
    %86 = vector.broadcast %cst_58 : f32 to vector<8x64xf32>
    %c0_59 = arith.constant 0 : index
    %c0_60 = arith.constant 0 : index
    %c0_61 = arith.constant 0 : index
    %87 = vector.load %arg4[%c0_59, %c0_60, %c0_61] : memref<8x8x192xf32, #tpu.memory_space<vmem>>, vector<1x8x192xf32>
    %88 = vector.shape_cast %87 : vector<1x8x192xf32> to vector<8x192xf32>
    %cst_62 = arith.constant dense<0.000000e+00> : vector<8x192xf32>
    %89 = tpu.matmul %86, %84, %cst_62 {dimension_numbers = #tpu.dot_dimension_numbers<[1], [0], [0], [1], [0, 0, 1, 1], [], []>} : vector<8x64xf32>, vector<64x192xf32>, vector<8x192xf32> -> vector<8x192xf32>
    %90 = vector.extract_strided_slice %88 {offsets = [0, 0], sizes = [8, 128], strides = [1, 1]} : vector<8x192xf32> to vector<8x128xf32>
    %91 = vector.extract_strided_slice %89 {offsets = [0, 0], sizes = [8, 128], strides = [1, 1]} : vector<8x192xf32> to vector<8x128xf32>
    %92 = arith.addf %90, %91 : vector<8x128xf32>
    %93 = arith.negf %92 : vector<8x128xf32>
    %94 = math.exp %93 : vector<8x128xf32>
    %cst_63 = arith.constant 1.000000e+00 : f32
    %95 = vector.broadcast %cst_63 : f32 to vector<8x128xf32>
    %96 = arith.addf %95, %94 : vector<8x128xf32>
    %97 = arith.divf %95, %96 : vector<8x128xf32>
    %98 = vector.extract_strided_slice %97 {offsets = [0, 0], sizes = [8, 64], strides = [1, 1]} : vector<8x128xf32> to vector<8x64xf32>
    %99 = vector.extract_strided_slice %97 {offsets = [0, 64], sizes = [8, 64], strides = [1, 1]} : vector<8x128xf32> to vector<8x64xf32>
    %100 = vector.extract_strided_slice %88 {offsets = [0, 128], sizes = [8, 64], strides = [1, 1]} : vector<8x192xf32> to vector<8x64xf32>
    %101 = vector.extract_strided_slice %89 {offsets = [0, 128], sizes = [8, 64], strides = [1, 1]} : vector<8x192xf32> to vector<8x64xf32>
    %102 = arith.addf %101, %85 : vector<8x64xf32>
    %103 = arith.mulf %98, %102 : vector<8x64xf32>
    %104 = arith.addf %100, %103 : vector<8x64xf32>
    %105 = math.tanh %104 : vector<8x64xf32>
    %106 = arith.subf %86, %105 : vector<8x64xf32>
    %107 = arith.mulf %99, %106 : vector<8x64xf32>
    %108 = arith.addf %105, %107 : vector<8x64xf32>
    %109 = vector.extract_strided_slice %2 {offsets = [0, 0, 0], sizes = [1, 8, 64], strides = [1, 1, 1]} : vector<16x8x64xi1> to vector<1x8x64xi1>
    %110 = vector.shape_cast %109 : vector<1x8x64xi1> to vector<8x64xi1>
    %111 = arith.select %110, %108, %86 : vector<8x64xi1>, vector<8x64xf32>
    %c0_64 = arith.constant 0 : index
    %c0_65 = arith.constant 0 : index
    %c0_66 = arith.constant 0 : index
    %112 = vector.load %arg5[%c0_64, %c0_65, %c0_66] : memref<8x8x64xf32, #tpu.memory_space<vmem>>, vector<1x8x64xf32>
    %113 = vector.shape_cast %112 : vector<1x8x64xf32> to vector<8x64xf32>
    %114 = vector.shape_cast %111 : vector<8x64xf32> to vector<1x8x64xf32>
    tpu.vector_store %arg5[%c0_64, %c0_65, %c0_66], %114 {strides = array<i32>} : memref<8x8x64xf32, #tpu.memory_space<vmem>>, vector<1x8x64xf32>,
    %c1_67 = arith.constant 1 : index
    %c0_68 = arith.constant 0 : index
    %c0_69 = arith.constant 0 : index
    %115 = vector.load %arg4[%c1_67, %c0_68, %c0_69] : memref<8x8x192xf32, #tpu.memory_space<vmem>>, vector<1x8x192xf32>
    %116 = vector.shape_cast %115 : vector<1x8x192xf32> to vector<8x192xf32>
    %cst_70 = arith.constant dense<0.000000e+00> : vector<8x192xf32>
    %117 = tpu.matmul %111, %84, %cst_70 {dimension_numbers = #tpu.dot_dimension_numbers<[1], [0], [0], [1], [0, 0, 1, 1], [], []>} : vector<8x64xf32>, vector<64x192xf32>, vector<8x192xf32> -> vector<8x192xf32>
    %118 = vector.extract_strided_slice %116 {offsets = [0, 0], sizes = [8, 128], strides = [1, 1]} : vector<8x192xf32> to vector<8x128xf32>
    %119 = vector.extract_strided_slice %117 {offsets = [0, 0], sizes = [8, 128], strides = [1, 1]} : vector<8x192xf32> to vector<8x128xf32>
    %120 = arith.addf %118, %119 : vector<8x128xf32>
    %121 = arith.negf %120 : vector<8x128xf32>
    %122 = math.exp %121 : vector<8x128xf32>
    %cst_71 = arith.constant 1.000000e+00 : f32
    %123 = vector.broadcast %cst_71 : f32 to vector<8x128xf32>
    %124 = arith.addf %123, %122 : vector<8x128xf32>
    %125 = arith.divf %123, %124 : vector<8x128xf32>
    %126 = vector.extract_strided_slice %125 {offsets = [0, 0], sizes = [8, 64], strides = [1, 1]} : vector<8x128xf32> to vector<8x64xf32>
    %127 = vector.extract_strided_slice %125 {offsets = [0, 64], sizes = [8, 64], strides = [1, 1]} : vector<8x128xf32> to vector<8x64xf32>
    %128 = vector.extract_strided_slice %116 {offsets = [0, 128], sizes = [8, 64], strides = [1, 1]} : vector<8x192xf32> to vector<8x64xf32>
    %129 = vector.extract_strided_slice %117 {offsets = [0, 128], sizes = [8, 64], strides = [1, 1]} : vector<8x192xf32> to vector<8x64xf32>
    %130 = arith.addf %129, %85 : vector<8x64xf32>
    %131 = arith.mulf %126, %130 : vector<8x64xf32>
    %132 = arith.addf %128, %131 : vector<8x64xf32>
    %133 = math.tanh %132 : vector<8x64xf32>
    %134 = arith.subf %111, %133 : vector<8x64xf32>
    %135 = arith.mulf %127, %134 : vector<8x64xf32>
    %136 = arith.addf %133, %135 : vector<8x64xf32>
    %137 = vector.extract_strided_slice %2 {offsets = [1, 0, 0], sizes = [1, 8, 64], strides = [1, 1, 1]} : vector<16x8x64xi1> to vector<1x8x64xi1>
    %138 = vector.shape_cast %137 : vector<1x8x64xi1> to vector<8x64xi1>
    %139 = arith.select %138, %136, %111 : vector<8x64xi1>, vector<8x64xf32>
    %c1_72 = arith.constant 1 : index
    %c0_73 = arith.constant 0 : index
    %c0_74 = arith.constant 0 : index
    %140 = vector.load %arg5[%c1_72, %c0_73, %c0_74] : memref<8x8x64xf32, #tpu.memory_space<vmem>>, vector<1x8x64xf32>
    %141 = vector.shape_cast %140 : vector<1x8x64xf32> to vector<8x64xf32>
    %142 = vector.shape_cast %139 : vector<8x64xf32> to vector<1x8x64xf32>
    tpu.vector_store %arg5[%c1_72, %c0_73, %c0_74], %142 {strides = array<i32>} : memref<8x8x64xf32, #tpu.memory_space<vmem>>, vector<1x8x64xf32>,
    %c2_75 = arith.constant 2 : index
    %c0_76 = arith.constant 0 : index
    %c0_77 = arith.constant 0 : index
    %143 = vector.load %arg4[%c2_75, %c0_76, %c0_77] : memref<8x8x192xf32, #tpu.memory_space<vmem>>, vector<1x8x192xf32>
    %144 = vector.shape_cast %143 : vector<1x8x192xf32> to vector<8x192xf32>
    %cst_78 = arith.constant dense<0.000000e+00> : vector<8x192xf32>
    %145 = tpu.matmul %139, %84, %cst_78 {dimension_numbers = #tpu.dot_dimension_numbers<[1], [0], [0], [1], [0, 0, 1, 1], [], []>} : vector<8x64xf32>, vector<64x192xf32>, vector<8x192xf32> -> vector<8x192xf32>
    %146 = vector.extract_strided_slice %144 {offsets = [0, 0], sizes = [8, 128], strides = [1, 1]} : vector<8x192xf32> to vector<8x128xf32>
    %147 = vector.extract_strided_slice %145 {offsets = [0, 0], sizes = [8, 128], strides = [1, 1]} : vector<8x192xf32> to vector<8x128xf32>
    %148 = arith.addf %146, %147 : vector<8x128xf32>
    %149 = arith.negf %148 : vector<8x128xf32>
    %150 = math.exp %149 : vector<8x128xf32>
    %cst_79 = arith.constant 1.000000e+00 : f32
    %151 = vector.broadcast %cst_79 : f32 to vector<8x128xf32>
    %152 = arith.addf %151, %150 : vector<8x128xf32>
    %153 = arith.divf %151, %152 : vector<8x128xf32>
    %154 = vector.extract_strided_slice %153 {offsets = [0, 0], sizes = [8, 64], strides = [1, 1]} : vector<8x128xf32> to vector<8x64xf32>
    %155 = vector.extract_strided_slice %153 {offsets = [0, 64], sizes = [8, 64], strides = [1, 1]} : vector<8x128xf32> to vector<8x64xf32>
    %156 = vector.extract_strided_slice %144 {offsets = [0, 128], sizes = [8, 64], strides = [1, 1]} : vector<8x192xf32> to vector<8x64xf32>
    %157 = vector.extract_strided_slice %145 {offsets = [0, 128], sizes = [8, 64], strides = [1, 1]} : vector<8x192xf32> to vector<8x64xf32>
    %158 = arith.addf %157, %85 : vector<8x64xf32>
    %159 = arith.mulf %154, %158 : vector<8x64xf32>
    %160 = arith.addf %156, %159 : vector<8x64xf32>
    %161 = math.tanh %160 : vector<8x64xf32>
    %162 = arith.subf %139, %161 : vector<8x64xf32>
    %163 = arith.mulf %155, %162 : vector<8x64xf32>
    %164 = arith.addf %161, %163 : vector<8x64xf32>
    %165 = vector.extract_strided_slice %2 {offsets = [2, 0, 0], sizes = [1, 8, 64], strides = [1, 1, 1]} : vector<16x8x64xi1> to vector<1x8x64xi1>
    %166 = vector.shape_cast %165 : vector<1x8x64xi1> to vector<8x64xi1>
    %167 = arith.select %166, %164, %139 : vector<8x64xi1>, vector<8x64xf32>
    %c2_80 = arith.constant 2 : index
    %c0_81 = arith.constant 0 : index
    %c0_82 = arith.constant 0 : index
    %168 = vector.load %arg5[%c2_80, %c0_81, %c0_82] : memref<8x8x64xf32, #tpu.memory_space<vmem>>, vector<1x8x64xf32>
    %169 = vector.shape_cast %168 : vector<1x8x64xf32> to vector<8x64xf32>
    %170 = vector.shape_cast %167 : vector<8x64xf32> to vector<1x8x64xf32>
    tpu.vector_store %arg5[%c2_80, %c0_81, %c0_82], %170 {strides = array<i32>} : memref<8x8x64xf32, #tpu.memory_space<vmem>>, vector<1x8x64xf32>,
    %c3_83 = arith.constant 3 : index
    %c0_84 = arith.constant 0 : index
    %c0_85 = arith.constant 0 : index
    %171 = vector.load %arg4[%c3_83, %c0_84, %c0_85] : memref<8x8x192xf32, #tpu.memory_space<vmem>>, vector<1x8x192xf32>
    %172 = vector.shape_cast %171 : vector<1x8x192xf32> to vector<8x192xf32>
    %cst_86 = arith.constant dense<0.000000e+00> : vector<8x192xf32>
    %173 = tpu.matmul %167, %84, %cst_86 {dimension_numbers = #tpu.dot_dimension_numbers<[1], [0], [0], [1], [0, 0, 1, 1], [], []>} : vector<8x64xf32>, vector<64x192xf32>, vector<8x192xf32> -> vector<8x192xf32>
    %174 = vector.extract_strided_slice %172 {offsets = [0, 0], sizes = [8, 128], strides = [1, 1]} : vector<8x192xf32> to vector<8x128xf32>
    %175 = vector.extract_strided_slice %173 {offsets = [0, 0], sizes = [8, 128], strides = [1, 1]} : vector<8x192xf32> to vector<8x128xf32>
    %176 = arith.addf %174, %175 : vector<8x128xf32>
    %177 = arith.negf %176 : vector<8x128xf32>
    %178 = math.exp %177 : vector<8x128xf32>
    %cst_87 = arith.constant 1.000000e+00 : f32
    %179 = vector.broadcast %cst_87 : f32 to vector<8x128xf32>
    %180 = arith.addf %179, %178 : vector<8x128xf32>
    %181 = arith.divf %179, %180 : vector<8x128xf32>
    %182 = vector.extract_strided_slice %181 {offsets = [0, 0], sizes = [8, 64], strides = [1, 1]} : vector<8x128xf32> to vector<8x64xf32>
    %183 = vector.extract_strided_slice %181 {offsets = [0, 64], sizes = [8, 64], strides = [1, 1]} : vector<8x128xf32> to vector<8x64xf32>
    %184 = vector.extract_strided_slice %172 {offsets = [0, 128], sizes = [8, 64], strides = [1, 1]} : vector<8x192xf32> to vector<8x64xf32>
    %185 = vector.extract_strided_slice %173 {offsets = [0, 128], sizes = [8, 64], strides = [1, 1]} : vector<8x192xf32> to vector<8x64xf32>
    %186 = arith.addf %185, %85 : vector<8x64xf32>
    %187 = arith.mulf %182, %186 : vector<8x64xf32>
    %188 = arith.addf %184, %187 : vector<8x64xf32>
    %189 = math.tanh %188 : vector<8x64xf32>
    %190 = arith.subf %167, %189 : vector<8x64xf32>
    %191 = arith.mulf %183, %190 : vector<8x64xf32>
    %192 = arith.addf %189, %191 : vector<8x64xf32>
    %193 = vector.extract_strided_slice %2 {offsets = [3, 0, 0], sizes = [1, 8, 64], strides = [1, 1, 1]} : vector<16x8x64xi1> to vector<1x8x64xi1>
    %194 = vector.shape_cast %193 : vector<1x8x64xi1> to vector<8x64xi1>
    %195 = arith.select %194, %192, %167 : vector<8x64xi1>, vector<8x64xf32>
    %c3_88 = arith.constant 3 : index
    %c0_89 = arith.constant 0 : index
    %c0_90 = arith.constant 0 : index
    %196 = vector.load %arg5[%c3_88, %c0_89, %c0_90] : memref<8x8x64xf32, #tpu.memory_space<vmem>>, vector<1x8x64xf32>
    %197 = vector.shape_cast %196 : vector<1x8x64xf32> to vector<8x64xf32>
    %198 = vector.shape_cast %195 : vector<8x64xf32> to vector<1x8x64xf32>
    tpu.vector_store %arg5[%c3_88, %c0_89, %c0_90], %198 {strides = array<i32>} : memref<8x8x64xf32, #tpu.memory_space<vmem>>, vector<1x8x64xf32>,
    %c4_91 = arith.constant 4 : index
    %c0_92 = arith.constant 0 : index
    %c0_93 = arith.constant 0 : index
    %199 = vector.load %arg4[%c4_91, %c0_92, %c0_93] : memref<8x8x192xf32, #tpu.memory_space<vmem>>, vector<1x8x192xf32>
    %200 = vector.shape_cast %199 : vector<1x8x192xf32> to vector<8x192xf32>
    %cst_94 = arith.constant dense<0.000000e+00> : vector<8x192xf32>
    %201 = tpu.matmul %195, %84, %cst_94 {dimension_numbers = #tpu.dot_dimension_numbers<[1], [0], [0], [1], [0, 0, 1, 1], [], []>} : vector<8x64xf32>, vector<64x192xf32>, vector<8x192xf32> -> vector<8x192xf32>
    %202 = vector.extract_strided_slice %200 {offsets = [0, 0], sizes = [8, 128], strides = [1, 1]} : vector<8x192xf32> to vector<8x128xf32>
    %203 = vector.extract_strided_slice %201 {offsets = [0, 0], sizes = [8, 128], strides = [1, 1]} : vector<8x192xf32> to vector<8x128xf32>
    %204 = arith.addf %202, %203 : vector<8x128xf32>
    %205 = arith.negf %204 : vector<8x128xf32>
    %206 = math.exp %205 : vector<8x128xf32>
    %cst_95 = arith.constant 1.000000e+00 : f32
    %207 = vector.broadcast %cst_95 : f32 to vector<8x128xf32>
    %208 = arith.addf %207, %206 : vector<8x128xf32>
    %209 = arith.divf %207, %208 : vector<8x128xf32>
    %210 = vector.extract_strided_slice %209 {offsets = [0, 0], sizes = [8, 64], strides = [1, 1]} : vector<8x128xf32> to vector<8x64xf32>
    %211 = vector.extract_strided_slice %209 {offsets = [0, 64], sizes = [8, 64], strides = [1, 1]} : vector<8x128xf32> to vector<8x64xf32>
    %212 = vector.extract_strided_slice %200 {offsets = [0, 128], sizes = [8, 64], strides = [1, 1]} : vector<8x192xf32> to vector<8x64xf32>
    %213 = vector.extract_strided_slice %201 {offsets = [0, 128], sizes = [8, 64], strides = [1, 1]} : vector<8x192xf32> to vector<8x64xf32>
    %214 = arith.addf %213, %85 : vector<8x64xf32>
    %215 = arith.mulf %210, %214 : vector<8x64xf32>
    %216 = arith.addf %212, %215 : vector<8x64xf32>
    %217 = math.tanh %216 : vector<8x64xf32>
    %218 = arith.subf %195, %217 : vector<8x64xf32>
    %219 = arith.mulf %211, %218 : vector<8x64xf32>
    %220 = arith.addf %217, %219 : vector<8x64xf32>
    %221 = vector.extract_strided_slice %2 {offsets = [4, 0, 0], sizes = [1, 8, 64], strides = [1, 1, 1]} : vector<16x8x64xi1> to vector<1x8x64xi1>
    %222 = vector.shape_cast %221 : vector<1x8x64xi1> to vector<8x64xi1>
    %223 = arith.select %222, %220, %195 : vector<8x64xi1>, vector<8x64xf32>
    %c4_96 = arith.constant 4 : index
    %c0_97 = arith.constant 0 : index
    %c0_98 = arith.constant 0 : index
    %224 = vector.load %arg5[%c4_96, %c0_97, %c0_98] : memref<8x8x64xf32, #tpu.memory_space<vmem>>, vector<1x8x64xf32>
    %225 = vector.shape_cast %224 : vector<1x8x64xf32> to vector<8x64xf32>
    %226 = vector.shape_cast %223 : vector<8x64xf32> to vector<1x8x64xf32>
    tpu.vector_store %arg5[%c4_96, %c0_97, %c0_98], %226 {strides = array<i32>} : memref<8x8x64xf32, #tpu.memory_space<vmem>>, vector<1x8x64xf32>,
    %c5_99 = arith.constant 5 : index
    %c0_100 = arith.constant 0 : index
    %c0_101 = arith.constant 0 : index
    %227 = vector.load %arg4[%c5_99, %c0_100, %c0_101] : memref<8x8x192xf32, #tpu.memory_space<vmem>>, vector<1x8x192xf32>
    %228 = vector.shape_cast %227 : vector<1x8x192xf32> to vector<8x192xf32>
    %cst_102 = arith.constant dense<0.000000e+00> : vector<8x192xf32>
    %229 = tpu.matmul %223, %84, %cst_102 {dimension_numbers = #tpu.dot_dimension_numbers<[1], [0], [0], [1], [0, 0, 1, 1], [], []>} : vector<8x64xf32>, vector<64x192xf32>, vector<8x192xf32> -> vector<8x192xf32>
    %230 = vector.extract_strided_slice %228 {offsets = [0, 0], sizes = [8, 128], strides = [1, 1]} : vector<8x192xf32> to vector<8x128xf32>
    %231 = vector.extract_strided_slice %229 {offsets = [0, 0], sizes = [8, 128], strides = [1, 1]} : vector<8x192xf32> to vector<8x128xf32>
    %232 = arith.addf %230, %231 : vector<8x128xf32>
    %233 = arith.negf %232 : vector<8x128xf32>
    %234 = math.exp %233 : vector<8x128xf32>
    %cst_103 = arith.constant 1.000000e+00 : f32
    %235 = vector.broadcast %cst_103 : f32 to vector<8x128xf32>
    %236 = arith.addf %235, %234 : vector<8x128xf32>
    %237 = arith.divf %235, %236 : vector<8x128xf32>
    %238 = vector.extract_strided_slice %237 {offsets = [0, 0], sizes = [8, 64], strides = [1, 1]} : vector<8x128xf32> to vector<8x64xf32>
    %239 = vector.extract_strided_slice %237 {offsets = [0, 64], sizes = [8, 64], strides = [1, 1]} : vector<8x128xf32> to vector<8x64xf32>
    %240 = vector.extract_strided_slice %228 {offsets = [0, 128], sizes = [8, 64], strides = [1, 1]} : vector<8x192xf32> to vector<8x64xf32>
    %241 = vector.extract_strided_slice %229 {offsets = [0, 128], sizes = [8, 64], strides = [1, 1]} : vector<8x192xf32> to vector<8x64xf32>
    %242 = arith.addf %241, %85 : vector<8x64xf32>
    %243 = arith.mulf %238, %242 : vector<8x64xf32>
    %244 = arith.addf %240, %243 : vector<8x64xf32>
    %245 = math.tanh %244 : vector<8x64xf32>
    %246 = arith.subf %223, %245 : vector<8x64xf32>
    %247 = arith.mulf %239, %246 : vector<8x64xf32>
    %248 = arith.addf %245, %247 : vector<8x64xf32>
    %249 = vector.extract_strided_slice %2 {offsets = [5, 0, 0], sizes = [1, 8, 64], strides = [1, 1, 1]} : vector<16x8x64xi1> to vector<1x8x64xi1>
    %250 = vector.shape_cast %249 : vector<1x8x64xi1> to vector<8x64xi1>
    %251 = arith.select %250, %248, %223 : vector<8x64xi1>, vector<8x64xf32>
    %c5_104 = arith.constant 5 : index
    %c0_105 = arith.constant 0 : index
    %c0_106 = arith.constant 0 : index
    %252 = vector.load %arg5[%c5_104, %c0_105, %c0_106] : memref<8x8x64xf32, #tpu.memory_space<vmem>>, vector<1x8x64xf32>
    %253 = vector.shape_cast %252 : vector<1x8x64xf32> to vector<8x64xf32>
    %254 = vector.shape_cast %251 : vector<8x64xf32> to vector<1x8x64xf32>
    tpu.vector_store %arg5[%c5_104, %c0_105, %c0_106], %254 {strides = array<i32>} : memref<8x8x64xf32, #tpu.memory_space<vmem>>, vector<1x8x64xf32>,
    %c6_107 = arith.constant 6 : index
    %c0_108 = arith.constant 0 : index
    %c0_109 = arith.constant 0 : index
    %255 = vector.load %arg4[%c6_107, %c0_108, %c0_109] : memref<8x8x192xf32, #tpu.memory_space<vmem>>, vector<1x8x192xf32>
    %256 = vector.shape_cast %255 : vector<1x8x192xf32> to vector<8x192xf32>
    %cst_110 = arith.constant dense<0.000000e+00> : vector<8x192xf32>
    %257 = tpu.matmul %251, %84, %cst_110 {dimension_numbers = #tpu.dot_dimension_numbers<[1], [0], [0], [1], [0, 0, 1, 1], [], []>} : vector<8x64xf32>, vector<64x192xf32>, vector<8x192xf32> -> vector<8x192xf32>
    %258 = vector.extract_strided_slice %256 {offsets = [0, 0], sizes = [8, 128], strides = [1, 1]} : vector<8x192xf32> to vector<8x128xf32>
    %259 = vector.extract_strided_slice %257 {offsets = [0, 0], sizes = [8, 128], strides = [1, 1]} : vector<8x192xf32> to vector<8x128xf32>
    %260 = arith.addf %258, %259 : vector<8x128xf32>
    %261 = arith.negf %260 : vector<8x128xf32>
    %262 = math.exp %261 : vector<8x128xf32>
    %cst_111 = arith.constant 1.000000e+00 : f32
    %263 = vector.broadcast %cst_111 : f32 to vector<8x128xf32>
    %264 = arith.addf %263, %262 : vector<8x128xf32>
    %265 = arith.divf %263, %264 : vector<8x128xf32>
    %266 = vector.extract_strided_slice %265 {offsets = [0, 0], sizes = [8, 64], strides = [1, 1]} : vector<8x128xf32> to vector<8x64xf32>
    %267 = vector.extract_strided_slice %265 {offsets = [0, 64], sizes = [8, 64], strides = [1, 1]} : vector<8x128xf32> to vector<8x64xf32>
    %268 = vector.extract_strided_slice %256 {offsets = [0, 128], sizes = [8, 64], strides = [1, 1]} : vector<8x192xf32> to vector<8x64xf32>
    %269 = vector.extract_strided_slice %257 {offsets = [0, 128], sizes = [8, 64], strides = [1, 1]} : vector<8x192xf32> to vector<8x64xf32>
    %270 = arith.addf %269, %85 : vector<8x64xf32>
    %271 = arith.mulf %266, %270 : vector<8x64xf32>
    %272 = arith.addf %268, %271 : vector<8x64xf32>
    %273 = math.tanh %272 : vector<8x64xf32>
    %274 = arith.subf %251, %273 : vector<8x64xf32>
    %275 = arith.mulf %267, %274 : vector<8x64xf32>
    %276 = arith.addf %273, %275 : vector<8x64xf32>
    %277 = vector.extract_strided_slice %2 {offsets = [6, 0, 0], sizes = [1, 8, 64], strides = [1, 1, 1]} : vector<16x8x64xi1> to vector<1x8x64xi1>
    %278 = vector.shape_cast %277 : vector<1x8x64xi1> to vector<8x64xi1>
    %279 = arith.select %278, %276, %251 : vector<8x64xi1>, vector<8x64xf32>
    %c6_112 = arith.constant 6 : index
    %c0_113 = arith.constant 0 : index
    %c0_114 = arith.constant 0 : index
    %280 = vector.load %arg5[%c6_112, %c0_113, %c0_114] : memref<8x8x64xf32, #tpu.memory_space<vmem>>, vector<1x8x64xf32>
    %281 = vector.shape_cast %280 : vector<1x8x64xf32> to vector<8x64xf32>
    %282 = vector.shape_cast %279 : vector<8x64xf32> to vector<1x8x64xf32>
    tpu.vector_store %arg5[%c6_112, %c0_113, %c0_114], %282 {strides = array<i32>} : memref<8x8x64xf32, #tpu.memory_space<vmem>>, vector<1x8x64xf32>,
    %c7_115 = arith.constant 7 : index
    %c0_116 = arith.constant 0 : index
    %c0_117 = arith.constant 0 : index
    %283 = vector.load %arg4[%c7_115, %c0_116, %c0_117] : memref<8x8x192xf32, #tpu.memory_space<vmem>>, vector<1x8x192xf32>
    %284 = vector.shape_cast %283 : vector<1x8x192xf32> to vector<8x192xf32>
    %cst_118 = arith.constant dense<0.000000e+00> : vector<8x192xf32>
    %285 = tpu.matmul %279, %84, %cst_118 {dimension_numbers = #tpu.dot_dimension_numbers<[1], [0], [0], [1], [0, 0, 1, 1], [], []>} : vector<8x64xf32>, vector<64x192xf32>, vector<8x192xf32> -> vector<8x192xf32>
    %286 = vector.extract_strided_slice %284 {offsets = [0, 0], sizes = [8, 128], strides = [1, 1]} : vector<8x192xf32> to vector<8x128xf32>
    %287 = vector.extract_strided_slice %285 {offsets = [0, 0], sizes = [8, 128], strides = [1, 1]} : vector<8x192xf32> to vector<8x128xf32>
    %288 = arith.addf %286, %287 : vector<8x128xf32>
    %289 = arith.negf %288 : vector<8x128xf32>
    %290 = math.exp %289 : vector<8x128xf32>
    %cst_119 = arith.constant 1.000000e+00 : f32
    %291 = vector.broadcast %cst_119 : f32 to vector<8x128xf32>
    %292 = arith.addf %291, %290 : vector<8x128xf32>
    %293 = arith.divf %291, %292 : vector<8x128xf32>
    %294 = vector.extract_strided_slice %293 {offsets = [0, 0], sizes = [8, 64], strides = [1, 1]} : vector<8x128xf32> to vector<8x64xf32>
    %295 = vector.extract_strided_slice %293 {offsets = [0, 64], sizes = [8, 64], strides = [1, 1]} : vector<8x128xf32> to vector<8x64xf32>
    %296 = vector.extract_strided_slice %284 {offsets = [0, 128], sizes = [8, 64], strides = [1, 1]} : vector<8x192xf32> to vector<8x64xf32>
    %297 = vector.extract_strided_slice %285 {offsets = [0, 128], sizes = [8, 64], strides = [1, 1]} : vector<8x192xf32> to vector<8x64xf32>
    %298 = arith.addf %297, %85 : vector<8x64xf32>
    %299 = arith.mulf %294, %298 : vector<8x64xf32>
    %300 = arith.addf %296, %299 : vector<8x64xf32>
    %301 = math.tanh %300 : vector<8x64xf32>
    %302 = arith.subf %279, %301 : vector<8x64xf32>
    %303 = arith.mulf %295, %302 : vector<8x64xf32>
    %304 = arith.addf %301, %303 : vector<8x64xf32>
    %305 = vector.extract_strided_slice %2 {offsets = [7, 0, 0], sizes = [1, 8, 64], strides = [1, 1, 1]} : vector<16x8x64xi1> to vector<1x8x64xi1>
    %306 = vector.shape_cast %305 : vector<1x8x64xi1> to vector<8x64xi1>
    %307 = arith.select %306, %304, %279 : vector<8x64xi1>, vector<8x64xf32>
    %c7_120 = arith.constant 7 : index
    %c0_121 = arith.constant 0 : index
    %c0_122 = arith.constant 0 : index
    %308 = vector.load %arg5[%c7_120, %c0_121, %c0_122] : memref<8x8x64xf32, #tpu.memory_space<vmem>>, vector<1x8x64xf32>
    %309 = vector.shape_cast %308 : vector<1x8x64xf32> to vector<8x64xf32>
    %310 = vector.shape_cast %307 : vector<8x64xf32> to vector<1x8x64xf32>
    tpu.vector_store %arg5[%c7_120, %c0_121, %c0_122], %310 {strides = array<i32>} : memref<8x8x64xf32, #tpu.memory_space<vmem>>, vector<1x8x64xf32>,
    %c0_123 = arith.constant 0 : index
    %c0_124 = arith.constant 0 : index
    %c0_125 = arith.constant 0 : index
    %311 = vector.load %arg5[%c0_123, %c0_124, %c0_125] : memref<8x8x64xf32, #tpu.memory_space<vmem>>, vector<8x8x64xf32>
    %312 = vector.extract_strided_slice %311 {offsets = [0, 0, 0], sizes = [1, 4, 64], strides = [1, 1, 1]} : vector<8x8x64xf32> to vector<1x4x64xf32>
    %313 = vector.shape_cast %312 : vector<1x4x64xf32> to vector<4x64xf32>
    %314 = vector.extract_strided_slice %311 {offsets = [7, 4, 0], sizes = [1, 4, 64], strides = [1, 1, 1]} : vector<8x8x64xf32> to vector<1x4x64xf32>
    %315 = vector.shape_cast %314 : vector<1x4x64xf32> to vector<4x64xf32>
    %316 = arith.addf %313, %315 : vector<4x64xf32>
    %317 = vector.extract_strided_slice %311 {offsets = [1, 0, 0], sizes = [1, 4, 64], strides = [1, 1, 1]} : vector<8x8x64xf32> to vector<1x4x64xf32>
    %318 = vector.shape_cast %317 : vector<1x4x64xf32> to vector<4x64xf32>
    %319 = vector.extract_strided_slice %311 {offsets = [6, 4, 0], sizes = [1, 4, 64], strides = [1, 1, 1]} : vector<8x8x64xf32> to vector<1x4x64xf32>
    %320 = vector.shape_cast %319 : vector<1x4x64xf32> to vector<4x64xf32>
    %321 = arith.addf %318, %320 : vector<4x64xf32>
    %322 = vector.extract_strided_slice %311 {offsets = [2, 0, 0], sizes = [1, 4, 64], strides = [1, 1, 1]} : vector<8x8x64xf32> to vector<1x4x64xf32>
    %323 = vector.shape_cast %322 : vector<1x4x64xf32> to vector<4x64xf32>
    %324 = vector.extract_strided_slice %311 {offsets = [5, 4, 0], sizes = [1, 4, 64], strides = [1, 1, 1]} : vector<8x8x64xf32> to vector<1x4x64xf32>
    %325 = vector.shape_cast %324 : vector<1x4x64xf32> to vector<4x64xf32>
    %326 = arith.addf %323, %325 : vector<4x64xf32>
    %327 = vector.extract_strided_slice %311 {offsets = [3, 0, 0], sizes = [1, 4, 64], strides = [1, 1, 1]} : vector<8x8x64xf32> to vector<1x4x64xf32>
    %328 = vector.shape_cast %327 : vector<1x4x64xf32> to vector<4x64xf32>
    %329 = vector.extract_strided_slice %311 {offsets = [4, 4, 0], sizes = [1, 4, 64], strides = [1, 1, 1]} : vector<8x8x64xf32> to vector<1x4x64xf32>
    %330 = vector.shape_cast %329 : vector<1x4x64xf32> to vector<4x64xf32>
    %331 = arith.addf %328, %330 : vector<4x64xf32>
    %332 = vector.extract_strided_slice %311 {offsets = [4, 0, 0], sizes = [1, 4, 64], strides = [1, 1, 1]} : vector<8x8x64xf32> to vector<1x4x64xf32>
    %333 = vector.shape_cast %332 : vector<1x4x64xf32> to vector<4x64xf32>
    %334 = vector.extract_strided_slice %311 {offsets = [3, 4, 0], sizes = [1, 4, 64], strides = [1, 1, 1]} : vector<8x8x64xf32> to vector<1x4x64xf32>
    %335 = vector.shape_cast %334 : vector<1x4x64xf32> to vector<4x64xf32>
    %336 = arith.addf %333, %335 : vector<4x64xf32>
    %337 = vector.extract_strided_slice %311 {offsets = [5, 0, 0], sizes = [1, 4, 64], strides = [1, 1, 1]} : vector<8x8x64xf32> to vector<1x4x64xf32>
    %338 = vector.shape_cast %337 : vector<1x4x64xf32> to vector<4x64xf32>
    %339 = vector.extract_strided_slice %311 {offsets = [2, 4, 0], sizes = [1, 4, 64], strides = [1, 1, 1]} : vector<8x8x64xf32> to vector<1x4x64xf32>
    %340 = vector.shape_cast %339 : vector<1x4x64xf32> to vector<4x64xf32>
    %341 = arith.addf %338, %340 : vector<4x64xf32>
    %342 = vector.extract_strided_slice %311 {offsets = [6, 0, 0], sizes = [1, 4, 64], strides = [1, 1, 1]} : vector<8x8x64xf32> to vector<1x4x64xf32>
    %343 = vector.shape_cast %342 : vector<1x4x64xf32> to vector<4x64xf32>
    %344 = vector.extract_strided_slice %311 {offsets = [1, 4, 0], sizes = [1, 4, 64], strides = [1, 1, 1]} : vector<8x8x64xf32> to vector<1x4x64xf32>
    %345 = vector.shape_cast %344 : vector<1x4x64xf32> to vector<4x64xf32>
    %346 = arith.addf %343, %345 : vector<4x64xf32>
    %347 = vector.extract_strided_slice %311 {offsets = [7, 0, 0], sizes = [1, 4, 64], strides = [1, 1, 1]} : vector<8x8x64xf32> to vector<1x4x64xf32>
    %348 = vector.shape_cast %347 : vector<1x4x64xf32> to vector<4x64xf32>
    %349 = vector.extract_strided_slice %311 {offsets = [0, 4, 0], sizes = [1, 4, 64], strides = [1, 1, 1]} : vector<8x8x64xf32> to vector<1x4x64xf32>
    %350 = vector.shape_cast %349 : vector<1x4x64xf32> to vector<4x64xf32>
    %351 = arith.addf %348, %350 : vector<4x64xf32>
    %352 = tpu.concatenate %316, %321, %326, %331, %336, %341, %346, %351 in 0 : vector<4x64xf32>, vector<4x64xf32>, vector<4x64xf32>, vector<4x64xf32>, vector<4x64xf32>, vector<4x64xf32>, vector<4x64xf32>, vector<4x64xf32> -> vector<32x64xf32>
    %c176 = arith.constant 176 : index
    %c0_126 = arith.constant 0 : index
    %353 = vector.load %arg2[%c176, %c0_126] : memref<544x192xf32, #tpu.memory_space<vmem>>, vector<64x192xf32>
    %cst_127 = arith.constant dense<0.000000e+00> : vector<32x192xf32>
    %354 = tpu.matmul %352, %353, %cst_127 {dimension_numbers = #tpu.dot_dimension_numbers<[1], [0], [0], [1], [0, 0, 1, 1], [], []>} : vector<32x64xf32>, vector<64x192xf32>, vector<32x192xf32> -> vector<32x192xf32>
    %c304 = arith.constant 304 : index
    %c0_128 = arith.constant 0 : index
    %355 = vector.load %arg2[%c304, %c0_128] : memref<544x192xf32, #tpu.memory_space<vmem>>, vector<1x192xf32>
    %356 = vector.broadcast %355 : vector<1x192xf32> to vector<32x192xf32>
    %357 = arith.addf %354, %356 : vector<32x192xf32>
    %c240 = arith.constant 240 : index
    %c0_129 = arith.constant 0 : index
    %358 = vector.load %arg2[%c240, %c0_129] : memref<544x192xf32, #tpu.memory_space<vmem>>, vector<64x192xf32>
    %cst_130 = arith.constant dense<0.000000e+00> : vector<32x192xf32>
    %359 = tpu.matmul %352, %358, %cst_130 {dimension_numbers = #tpu.dot_dimension_numbers<[1], [0], [0], [1], [0, 0, 1, 1], [], []>} : vector<32x64xf32>, vector<64x192xf32>, vector<32x192xf32> -> vector<32x192xf32>
    %c312 = arith.constant 312 : index
    %c0_131 = arith.constant 0 : index
    %360 = vector.load %arg2[%c312, %c0_131] : memref<544x192xf32, #tpu.memory_space<vmem>>, vector<1x192xf32>
    %361 = vector.broadcast %360 : vector<1x192xf32> to vector<32x192xf32>
    %362 = arith.addf %359, %361 : vector<32x192xf32>
    %363 = vector.extract_strided_slice %357 {offsets = [0, 0], sizes = [4, 192], strides = [1, 1]} : vector<32x192xf32> to vector<4x192xf32>
    %c0_132 = arith.constant 0 : index
    %c0_133 = arith.constant 0 : index
    %c0_134 = arith.constant 0 : index
    %364 = vector.load %arg4[%c0_132, %c0_133, %c0_134] : memref<8x8x192xf32, #tpu.memory_space<vmem>>, vector<1x4x192xf32>
    %365 = vector.shape_cast %364 : vector<1x4x192xf32> to vector<4x192xf32>
    %366 = vector.shape_cast %363 : vector<4x192xf32> to vector<1x4x192xf32>
    tpu.vector_store %arg4[%c0_132, %c0_133, %c0_134], %366 {strides = array<i32>} : memref<8x8x192xf32, #tpu.memory_space<vmem>>, vector<1x4x192xf32>,
    %367 = vector.extract_strided_slice %362 {offsets = [28, 0], sizes = [4, 192], strides = [1, 1]} : vector<32x192xf32> to vector<4x192xf32>
    %c0_135 = arith.constant 0 : index
    %c4_136 = arith.constant 4 : index
    %c0_137 = arith.constant 0 : index
    %368 = vector.load %arg4[%c0_135, %c4_136, %c0_137] : memref<8x8x192xf32, #tpu.memory_space<vmem>>, vector<1x4x192xf32>
    %369 = vector.shape_cast %368 : vector<1x4x192xf32> to vector<4x192xf32>
    %370 = vector.shape_cast %367 : vector<4x192xf32> to vector<1x4x192xf32>
    tpu.vector_store %arg4[%c0_135, %c4_136, %c0_137], %370 {strides = array<i32>} : memref<8x8x192xf32, #tpu.memory_space<vmem>>, vector<1x4x192xf32>,
    %371 = vector.extract_strided_slice %357 {offsets = [4, 0], sizes = [4, 192], strides = [1, 1]} : vector<32x192xf32> to vector<4x192xf32>
    %c1_138 = arith.constant 1 : index
    %c0_139 = arith.constant 0 : index
    %c0_140 = arith.constant 0 : index
    %372 = vector.load %arg4[%c1_138, %c0_139, %c0_140] : memref<8x8x192xf32, #tpu.memory_space<vmem>>, vector<1x4x192xf32>
    %373 = vector.shape_cast %372 : vector<1x4x192xf32> to vector<4x192xf32>
    %374 = vector.shape_cast %371 : vector<4x192xf32> to vector<1x4x192xf32>
    tpu.vector_store %arg4[%c1_138, %c0_139, %c0_140], %374 {strides = array<i32>} : memref<8x8x192xf32, #tpu.memory_space<vmem>>, vector<1x4x192xf32>,
    %375 = vector.extract_strided_slice %362 {offsets = [24, 0], sizes = [4, 192], strides = [1, 1]} : vector<32x192xf32> to vector<4x192xf32>
    %c1_141 = arith.constant 1 : index
    %c4_142 = arith.constant 4 : index
    %c0_143 = arith.constant 0 : index
    %376 = vector.load %arg4[%c1_141, %c4_142, %c0_143] : memref<8x8x192xf32, #tpu.memory_space<vmem>>, vector<1x4x192xf32>
    %377 = vector.shape_cast %376 : vector<1x4x192xf32> to vector<4x192xf32>
    %378 = vector.shape_cast %375 : vector<4x192xf32> to vector<1x4x192xf32>
    tpu.vector_store %arg4[%c1_141, %c4_142, %c0_143], %378 {strides = array<i32>} : memref<8x8x192xf32, #tpu.memory_space<vmem>>, vector<1x4x192xf32>,
    %379 = vector.extract_strided_slice %357 {offsets = [8, 0], sizes = [4, 192], strides = [1, 1]} : vector<32x192xf32> to vector<4x192xf32>
    %c2_144 = arith.constant 2 : index
    %c0_145 = arith.constant 0 : index
    %c0_146 = arith.constant 0 : index
    %380 = vector.load %arg4[%c2_144, %c0_145, %c0_146] : memref<8x8x192xf32, #tpu.memory_space<vmem>>, vector<1x4x192xf32>
    %381 = vector.shape_cast %380 : vector<1x4x192xf32> to vector<4x192xf32>
    %382 = vector.shape_cast %379 : vector<4x192xf32> to vector<1x4x192xf32>
    tpu.vector_store %arg4[%c2_144, %c0_145, %c0_146], %382 {strides = array<i32>} : memref<8x8x192xf32, #tpu.memory_space<vmem>>, vector<1x4x192xf32>,
    %383 = vector.extract_strided_slice %362 {offsets = [20, 0], sizes = [4, 192], strides = [1, 1]} : vector<32x192xf32> to vector<4x192xf32>
    %c2_147 = arith.constant 2 : index
    %c4_148 = arith.constant 4 : index
    %c0_149 = arith.constant 0 : index
    %384 = vector.load %arg4[%c2_147, %c4_148, %c0_149] : memref<8x8x192xf32, #tpu.memory_space<vmem>>, vector<1x4x192xf32>
    %385 = vector.shape_cast %384 : vector<1x4x192xf32> to vector<4x192xf32>
    %386 = vector.shape_cast %383 : vector<4x192xf32> to vector<1x4x192xf32>
    tpu.vector_store %arg4[%c2_147, %c4_148, %c0_149], %386 {strides = array<i32>} : memref<8x8x192xf32, #tpu.memory_space<vmem>>, vector<1x4x192xf32>,
    %387 = vector.extract_strided_slice %357 {offsets = [12, 0], sizes = [4, 192], strides = [1, 1]} : vector<32x192xf32> to vector<4x192xf32>
    %c3_150 = arith.constant 3 : index
    %c0_151 = arith.constant 0 : index
    %c0_152 = arith.constant 0 : index
    %388 = vector.load %arg4[%c3_150, %c0_151, %c0_152] : memref<8x8x192xf32, #tpu.memory_space<vmem>>, vector<1x4x192xf32>
    %389 = vector.shape_cast %388 : vector<1x4x192xf32> to vector<4x192xf32>
    %390 = vector.shape_cast %387 : vector<4x192xf32> to vector<1x4x192xf32>
    tpu.vector_store %arg4[%c3_150, %c0_151, %c0_152], %390 {strides = array<i32>} : memref<8x8x192xf32, #tpu.memory_space<vmem>>, vector<1x4x192xf32>,
    %391 = vector.extract_strided_slice %362 {offsets = [16, 0], sizes = [4, 192], strides = [1, 1]} : vector<32x192xf32> to vector<4x192xf32>
    %c3_153 = arith.constant 3 : index
    %c4_154 = arith.constant 4 : index
    %c0_155 = arith.constant 0 : index
    %392 = vector.load %arg4[%c3_153, %c4_154, %c0_155] : memref<8x8x192xf32, #tpu.memory_space<vmem>>, vector<1x4x192xf32>
    %393 = vector.shape_cast %392 : vector<1x4x192xf32> to vector<4x192xf32>
    %394 = vector.shape_cast %391 : vector<4x192xf32> to vector<1x4x192xf32>
    tpu.vector_store %arg4[%c3_153, %c4_154, %c0_155], %394 {strides = array<i32>} : memref<8x8x192xf32, #tpu.memory_space<vmem>>, vector<1x4x192xf32>,
    %395 = vector.extract_strided_slice %357 {offsets = [16, 0], sizes = [4, 192], strides = [1, 1]} : vector<32x192xf32> to vector<4x192xf32>
    %c4_156 = arith.constant 4 : index
    %c0_157 = arith.constant 0 : index
    %c0_158 = arith.constant 0 : index
    %396 = vector.load %arg4[%c4_156, %c0_157, %c0_158] : memref<8x8x192xf32, #tpu.memory_space<vmem>>, vector<1x4x192xf32>
    %397 = vector.shape_cast %396 : vector<1x4x192xf32> to vector<4x192xf32>
    %398 = vector.shape_cast %395 : vector<4x192xf32> to vector<1x4x192xf32>
    tpu.vector_store %arg4[%c4_156, %c0_157, %c0_158], %398 {strides = array<i32>} : memref<8x8x192xf32, #tpu.memory_space<vmem>>, vector<1x4x192xf32>,
    %399 = vector.extract_strided_slice %362 {offsets = [12, 0], sizes = [4, 192], strides = [1, 1]} : vector<32x192xf32> to vector<4x192xf32>
    %c4_159 = arith.constant 4 : index
    %c4_160 = arith.constant 4 : index
    %c0_161 = arith.constant 0 : index
    %400 = vector.load %arg4[%c4_159, %c4_160, %c0_161] : memref<8x8x192xf32, #tpu.memory_space<vmem>>, vector<1x4x192xf32>
    %401 = vector.shape_cast %400 : vector<1x4x192xf32> to vector<4x192xf32>
    %402 = vector.shape_cast %399 : vector<4x192xf32> to vector<1x4x192xf32>
    tpu.vector_store %arg4[%c4_159, %c4_160, %c0_161], %402 {strides = array<i32>} : memref<8x8x192xf32, #tpu.memory_space<vmem>>, vector<1x4x192xf32>,
    %403 = vector.extract_strided_slice %357 {offsets = [20, 0], sizes = [4, 192], strides = [1, 1]} : vector<32x192xf32> to vector<4x192xf32>
    %c5_162 = arith.constant 5 : index
    %c0_163 = arith.constant 0 : index
    %c0_164 = arith.constant 0 : index
    %404 = vector.load %arg4[%c5_162, %c0_163, %c0_164] : memref<8x8x192xf32, #tpu.memory_space<vmem>>, vector<1x4x192xf32>
    %405 = vector.shape_cast %404 : vector<1x4x192xf32> to vector<4x192xf32>
    %406 = vector.shape_cast %403 : vector<4x192xf32> to vector<1x4x192xf32>
    tpu.vector_store %arg4[%c5_162, %c0_163, %c0_164], %406 {strides = array<i32>} : memref<8x8x192xf32, #tpu.memory_space<vmem>>, vector<1x4x192xf32>,
    %407 = vector.extract_strided_slice %362 {offsets = [8, 0], sizes = [4, 192], strides = [1, 1]} : vector<32x192xf32> to vector<4x192xf32>
    %c5_165 = arith.constant 5 : index
    %c4_166 = arith.constant 4 : index
    %c0_167 = arith.constant 0 : index
    %408 = vector.load %arg4[%c5_165, %c4_166, %c0_167] : memref<8x8x192xf32, #tpu.memory_space<vmem>>, vector<1x4x192xf32>
    %409 = vector.shape_cast %408 : vector<1x4x192xf32> to vector<4x192xf32>
    %410 = vector.shape_cast %407 : vector<4x192xf32> to vector<1x4x192xf32>
    tpu.vector_store %arg4[%c5_165, %c4_166, %c0_167], %410 {strides = array<i32>} : memref<8x8x192xf32, #tpu.memory_space<vmem>>, vector<1x4x192xf32>,
    %411 = vector.extract_strided_slice %357 {offsets = [24, 0], sizes = [4, 192], strides = [1, 1]} : vector<32x192xf32> to vector<4x192xf32>
    %c6_168 = arith.constant 6 : index
    %c0_169 = arith.constant 0 : index
    %c0_170 = arith.constant 0 : index
    %412 = vector.load %arg4[%c6_168, %c0_169, %c0_170] : memref<8x8x192xf32, #tpu.memory_space<vmem>>, vector<1x4x192xf32>
    %413 = vector.shape_cast %412 : vector<1x4x192xf32> to vector<4x192xf32>
    %414 = vector.shape_cast %411 : vector<4x192xf32> to vector<1x4x192xf32>
    tpu.vector_store %arg4[%c6_168, %c0_169, %c0_170], %414 {strides = array<i32>} : memref<8x8x192xf32, #tpu.memory_space<vmem>>, vector<1x4x192xf32>,
    %415 = vector.extract_strided_slice %362 {offsets = [4, 0], sizes = [4, 192], strides = [1, 1]} : vector<32x192xf32> to vector<4x192xf32>
    %c6_171 = arith.constant 6 : index
    %c4_172 = arith.constant 4 : index
    %c0_173 = arith.constant 0 : index
    %416 = vector.load %arg4[%c6_171, %c4_172, %c0_173] : memref<8x8x192xf32, #tpu.memory_space<vmem>>, vector<1x4x192xf32>
    %417 = vector.shape_cast %416 : vector<1x4x192xf32> to vector<4x192xf32>
    %418 = vector.shape_cast %415 : vector<4x192xf32> to vector<1x4x192xf32>
    tpu.vector_store %arg4[%c6_171, %c4_172, %c0_173], %418 {strides = array<i32>} : memref<8x8x192xf32, #tpu.memory_space<vmem>>, vector<1x4x192xf32>,
    %419 = vector.extract_strided_slice %357 {offsets = [28, 0], sizes = [4, 192], strides = [1, 1]} : vector<32x192xf32> to vector<4x192xf32>
    %c7_174 = arith.constant 7 : index
    %c0_175 = arith.constant 0 : index
    %c0_176 = arith.constant 0 : index
    %420 = vector.load %arg4[%c7_174, %c0_175, %c0_176] : memref<8x8x192xf32, #tpu.memory_space<vmem>>, vector<1x4x192xf32>
    %421 = vector.shape_cast %420 : vector<1x4x192xf32> to vector<4x192xf32>
    %422 = vector.shape_cast %419 : vector<4x192xf32> to vector<1x4x192xf32>
    tpu.vector_store %arg4[%c7_174, %c0_175, %c0_176], %422 {strides = array<i32>} : memref<8x8x192xf32, #tpu.memory_space<vmem>>, vector<1x4x192xf32>,
    %423 = vector.extract_strided_slice %362 {offsets = [0, 0], sizes = [4, 192], strides = [1, 1]} : vector<32x192xf32> to vector<4x192xf32>
    %c7_177 = arith.constant 7 : index
    %c4_178 = arith.constant 4 : index
    %c0_179 = arith.constant 0 : index
    %424 = vector.load %arg4[%c7_177, %c4_178, %c0_179] : memref<8x8x192xf32, #tpu.memory_space<vmem>>, vector<1x4x192xf32>
    %425 = vector.shape_cast %424 : vector<1x4x192xf32> to vector<4x192xf32>
    %426 = vector.shape_cast %423 : vector<4x192xf32> to vector<1x4x192xf32>
    tpu.vector_store %arg4[%c7_177, %c4_178, %c0_179], %426 {strides = array<i32>} : memref<8x8x192xf32, #tpu.memory_space<vmem>>, vector<1x4x192xf32>,
    %c320 = arith.constant 320 : index
    %c0_180 = arith.constant 0 : index
    %427 = vector.load %arg2[%c320, %c0_180] : memref<544x192xf32, #tpu.memory_space<vmem>>, vector<64x192xf32>
    %c384 = arith.constant 384 : index
    %c0_181 = arith.constant 0 : index
    %428 = vector.load %arg2[%c384, %c0_181] : memref<544x192xf32, #tpu.memory_space<vmem>>, vector<8x64xf32>
    %cst_182 = arith.constant 0.000000e+00 : f32
    %429 = vector.broadcast %cst_182 : f32 to vector<8x64xf32>
    %c0_183 = arith.constant 0 : index
    %c0_184 = arith.constant 0 : index
    %c0_185 = arith.constant 0 : index
    %430 = vector.load %arg4[%c0_183, %c0_184, %c0_185] : memref<8x8x192xf32, #tpu.memory_space<vmem>>, vector<1x8x192xf32>
    %431 = vector.shape_cast %430 : vector<1x8x192xf32> to vector<8x192xf32>
    %cst_186 = arith.constant dense<0.000000e+00> : vector<8x192xf32>
    %432 = tpu.matmul %429, %427, %cst_186 {dimension_numbers = #tpu.dot_dimension_numbers<[1], [0], [0], [1], [0, 0, 1, 1], [], []>} : vector<8x64xf32>, vector<64x192xf32>, vector<8x192xf32> -> vector<8x192xf32>
    %433 = vector.extract_strided_slice %431 {offsets = [0, 0], sizes = [8, 128], strides = [1, 1]} : vector<8x192xf32> to vector<8x128xf32>
    %434 = vector.extract_strided_slice %432 {offsets = [0, 0], sizes = [8, 128], strides = [1, 1]} : vector<8x192xf32> to vector<8x128xf32>
    %435 = arith.addf %433, %434 : vector<8x128xf32>
    %436 = arith.negf %435 : vector<8x128xf32>
    %437 = math.exp %436 : vector<8x128xf32>
    %cst_187 = arith.constant 1.000000e+00 : f32
    %438 = vector.broadcast %cst_187 : f32 to vector<8x128xf32>
    %439 = arith.addf %438, %437 : vector<8x128xf32>
    %440 = arith.divf %438, %439 : vector<8x128xf32>
    %441 = vector.extract_strided_slice %440 {offsets = [0, 0], sizes = [8, 64], strides = [1, 1]} : vector<8x128xf32> to vector<8x64xf32>
    %442 = vector.extract_strided_slice %440 {offsets = [0, 64], sizes = [8, 64], strides = [1, 1]} : vector<8x128xf32> to vector<8x64xf32>
    %443 = vector.extract_strided_slice %431 {offsets = [0, 128], sizes = [8, 64], strides = [1, 1]} : vector<8x192xf32> to vector<8x64xf32>
    %444 = vector.extract_strided_slice %432 {offsets = [0, 128], sizes = [8, 64], strides = [1, 1]} : vector<8x192xf32> to vector<8x64xf32>
    %445 = arith.addf %444, %428 : vector<8x64xf32>
    %446 = arith.mulf %441, %445 : vector<8x64xf32>
    %447 = arith.addf %443, %446 : vector<8x64xf32>
    %448 = math.tanh %447 : vector<8x64xf32>
    %449 = arith.subf %429, %448 : vector<8x64xf32>
    %450 = arith.mulf %442, %449 : vector<8x64xf32>
    %451 = arith.addf %448, %450 : vector<8x64xf32>
    %452 = vector.extract_strided_slice %2 {offsets = [0, 0, 0], sizes = [1, 8, 64], strides = [1, 1, 1]} : vector<16x8x64xi1> to vector<1x8x64xi1>
    %453 = vector.shape_cast %452 : vector<1x8x64xi1> to vector<8x64xi1>
    %454 = arith.select %453, %451, %429 : vector<8x64xi1>, vector<8x64xf32>
    %455 = vector.extract_strided_slice %2 {offsets = [8, 0, 0], sizes = [1, 8, 64], strides = [1, 1, 1]} : vector<16x8x64xi1> to vector<1x8x64xi1>
    %456 = vector.shape_cast %455 : vector<1x8x64xi1> to vector<8x64xi1>
    %457 = arith.select %456, %454, %9 : vector<8x64xi1>, vector<8x64xf32>
    %c1_188 = arith.constant 1 : index
    %c0_189 = arith.constant 0 : index
    %c0_190 = arith.constant 0 : index
    %458 = vector.load %arg4[%c1_188, %c0_189, %c0_190] : memref<8x8x192xf32, #tpu.memory_space<vmem>>, vector<1x8x192xf32>
    %459 = vector.shape_cast %458 : vector<1x8x192xf32> to vector<8x192xf32>
    %cst_191 = arith.constant dense<0.000000e+00> : vector<8x192xf32>
    %460 = tpu.matmul %454, %427, %cst_191 {dimension_numbers = #tpu.dot_dimension_numbers<[1], [0], [0], [1], [0, 0, 1, 1], [], []>} : vector<8x64xf32>, vector<64x192xf32>, vector<8x192xf32> -> vector<8x192xf32>
    %461 = vector.extract_strided_slice %459 {offsets = [0, 0], sizes = [8, 128], strides = [1, 1]} : vector<8x192xf32> to vector<8x128xf32>
    %462 = vector.extract_strided_slice %460 {offsets = [0, 0], sizes = [8, 128], strides = [1, 1]} : vector<8x192xf32> to vector<8x128xf32>
    %463 = arith.addf %461, %462 : vector<8x128xf32>
    %464 = arith.negf %463 : vector<8x128xf32>
    %465 = math.exp %464 : vector<8x128xf32>
    %cst_192 = arith.constant 1.000000e+00 : f32
    %466 = vector.broadcast %cst_192 : f32 to vector<8x128xf32>
    %467 = arith.addf %466, %465 : vector<8x128xf32>
    %468 = arith.divf %466, %467 : vector<8x128xf32>
    %469 = vector.extract_strided_slice %468 {offsets = [0, 0], sizes = [8, 64], strides = [1, 1]} : vector<8x128xf32> to vector<8x64xf32>
    %470 = vector.extract_strided_slice %468 {offsets = [0, 64], sizes = [8, 64], strides = [1, 1]} : vector<8x128xf32> to vector<8x64xf32>
    %471 = vector.extract_strided_slice %459 {offsets = [0, 128], sizes = [8, 64], strides = [1, 1]} : vector<8x192xf32> to vector<8x64xf32>
    %472 = vector.extract_strided_slice %460 {offsets = [0, 128], sizes = [8, 64], strides = [1, 1]} : vector<8x192xf32> to vector<8x64xf32>
    %473 = arith.addf %472, %428 : vector<8x64xf32>
    %474 = arith.mulf %469, %473 : vector<8x64xf32>
    %475 = arith.addf %471, %474 : vector<8x64xf32>
    %476 = math.tanh %475 : vector<8x64xf32>
    %477 = arith.subf %454, %476 : vector<8x64xf32>
    %478 = arith.mulf %470, %477 : vector<8x64xf32>
    %479 = arith.addf %476, %478 : vector<8x64xf32>
    %480 = vector.extract_strided_slice %2 {offsets = [1, 0, 0], sizes = [1, 8, 64], strides = [1, 1, 1]} : vector<16x8x64xi1> to vector<1x8x64xi1>
    %481 = vector.shape_cast %480 : vector<1x8x64xi1> to vector<8x64xi1>
    %482 = arith.select %481, %479, %454 : vector<8x64xi1>, vector<8x64xf32>
    %483 = vector.extract_strided_slice %2 {offsets = [9, 0, 0], sizes = [1, 8, 64], strides = [1, 1, 1]} : vector<16x8x64xi1> to vector<1x8x64xi1>
    %484 = vector.shape_cast %483 : vector<1x8x64xi1> to vector<8x64xi1>
    %485 = arith.select %484, %482, %457 : vector<8x64xi1>, vector<8x64xf32>
    %c2_193 = arith.constant 2 : index
    %c0_194 = arith.constant 0 : index
    %c0_195 = arith.constant 0 : index
    %486 = vector.load %arg4[%c2_193, %c0_194, %c0_195] : memref<8x8x192xf32, #tpu.memory_space<vmem>>, vector<1x8x192xf32>
    %487 = vector.shape_cast %486 : vector<1x8x192xf32> to vector<8x192xf32>
    %cst_196 = arith.constant dense<0.000000e+00> : vector<8x192xf32>
    %488 = tpu.matmul %482, %427, %cst_196 {dimension_numbers = #tpu.dot_dimension_numbers<[1], [0], [0], [1], [0, 0, 1, 1], [], []>} : vector<8x64xf32>, vector<64x192xf32>, vector<8x192xf32> -> vector<8x192xf32>
    %489 = vector.extract_strided_slice %487 {offsets = [0, 0], sizes = [8, 128], strides = [1, 1]} : vector<8x192xf32> to vector<8x128xf32>
    %490 = vector.extract_strided_slice %488 {offsets = [0, 0], sizes = [8, 128], strides = [1, 1]} : vector<8x192xf32> to vector<8x128xf32>
    %491 = arith.addf %489, %490 : vector<8x128xf32>
    %492 = arith.negf %491 : vector<8x128xf32>
    %493 = math.exp %492 : vector<8x128xf32>
    %cst_197 = arith.constant 1.000000e+00 : f32
    %494 = vector.broadcast %cst_197 : f32 to vector<8x128xf32>
    %495 = arith.addf %494, %493 : vector<8x128xf32>
    %496 = arith.divf %494, %495 : vector<8x128xf32>
    %497 = vector.extract_strided_slice %496 {offsets = [0, 0], sizes = [8, 64], strides = [1, 1]} : vector<8x128xf32> to vector<8x64xf32>
    %498 = vector.extract_strided_slice %496 {offsets = [0, 64], sizes = [8, 64], strides = [1, 1]} : vector<8x128xf32> to vector<8x64xf32>
    %499 = vector.extract_strided_slice %487 {offsets = [0, 128], sizes = [8, 64], strides = [1, 1]} : vector<8x192xf32> to vector<8x64xf32>
    %500 = vector.extract_strided_slice %488 {offsets = [0, 128], sizes = [8, 64], strides = [1, 1]} : vector<8x192xf32> to vector<8x64xf32>
    %501 = arith.addf %500, %428 : vector<8x64xf32>
    %502 = arith.mulf %497, %501 : vector<8x64xf32>
    %503 = arith.addf %499, %502 : vector<8x64xf32>
    %504 = math.tanh %503 : vector<8x64xf32>
    %505 = arith.subf %482, %504 : vector<8x64xf32>
    %506 = arith.mulf %498, %505 : vector<8x64xf32>
    %507 = arith.addf %504, %506 : vector<8x64xf32>
    %508 = vector.extract_strided_slice %2 {offsets = [2, 0, 0], sizes = [1, 8, 64], strides = [1, 1, 1]} : vector<16x8x64xi1> to vector<1x8x64xi1>
    %509 = vector.shape_cast %508 : vector<1x8x64xi1> to vector<8x64xi1>
    %510 = arith.select %509, %507, %482 : vector<8x64xi1>, vector<8x64xf32>
    %511 = vector.extract_strided_slice %2 {offsets = [10, 0, 0], sizes = [1, 8, 64], strides = [1, 1, 1]} : vector<16x8x64xi1> to vector<1x8x64xi1>
    %512 = vector.shape_cast %511 : vector<1x8x64xi1> to vector<8x64xi1>
    %513 = arith.select %512, %510, %485 : vector<8x64xi1>, vector<8x64xf32>
    %c3_198 = arith.constant 3 : index
    %c0_199 = arith.constant 0 : index
    %c0_200 = arith.constant 0 : index
    %514 = vector.load %arg4[%c3_198, %c0_199, %c0_200] : memref<8x8x192xf32, #tpu.memory_space<vmem>>, vector<1x8x192xf32>
    %515 = vector.shape_cast %514 : vector<1x8x192xf32> to vector<8x192xf32>
    %cst_201 = arith.constant dense<0.000000e+00> : vector<8x192xf32>
    %516 = tpu.matmul %510, %427, %cst_201 {dimension_numbers = #tpu.dot_dimension_numbers<[1], [0], [0], [1], [0, 0, 1, 1], [], []>} : vector<8x64xf32>, vector<64x192xf32>, vector<8x192xf32> -> vector<8x192xf32>
    %517 = vector.extract_strided_slice %515 {offsets = [0, 0], sizes = [8, 128], strides = [1, 1]} : vector<8x192xf32> to vector<8x128xf32>
    %518 = vector.extract_strided_slice %516 {offsets = [0, 0], sizes = [8, 128], strides = [1, 1]} : vector<8x192xf32> to vector<8x128xf32>
    %519 = arith.addf %517, %518 : vector<8x128xf32>
    %520 = arith.negf %519 : vector<8x128xf32>
    %521 = math.exp %520 : vector<8x128xf32>
    %cst_202 = arith.constant 1.000000e+00 : f32
    %522 = vector.broadcast %cst_202 : f32 to vector<8x128xf32>
    %523 = arith.addf %522, %521 : vector<8x128xf32>
    %524 = arith.divf %522, %523 : vector<8x128xf32>
    %525 = vector.extract_strided_slice %524 {offsets = [0, 0], sizes = [8, 64], strides = [1, 1]} : vector<8x128xf32> to vector<8x64xf32>
    %526 = vector.extract_strided_slice %524 {offsets = [0, 64], sizes = [8, 64], strides = [1, 1]} : vector<8x128xf32> to vector<8x64xf32>
    %527 = vector.extract_strided_slice %515 {offsets = [0, 128], sizes = [8, 64], strides = [1, 1]} : vector<8x192xf32> to vector<8x64xf32>
    %528 = vector.extract_strided_slice %516 {offsets = [0, 128], sizes = [8, 64], strides = [1, 1]} : vector<8x192xf32> to vector<8x64xf32>
    %529 = arith.addf %528, %428 : vector<8x64xf32>
    %530 = arith.mulf %525, %529 : vector<8x64xf32>
    %531 = arith.addf %527, %530 : vector<8x64xf32>
    %532 = math.tanh %531 : vector<8x64xf32>
    %533 = arith.subf %510, %532 : vector<8x64xf32>
    %534 = arith.mulf %526, %533 : vector<8x64xf32>
    %535 = arith.addf %532, %534 : vector<8x64xf32>
    %536 = vector.extract_strided_slice %2 {offsets = [3, 0, 0], sizes = [1, 8, 64], strides = [1, 1, 1]} : vector<16x8x64xi1> to vector<1x8x64xi1>
    %537 = vector.shape_cast %536 : vector<1x8x64xi1> to vector<8x64xi1>
    %538 = arith.select %537, %535, %510 : vector<8x64xi1>, vector<8x64xf32>
    %539 = vector.extract_strided_slice %2 {offsets = [11, 0, 0], sizes = [1, 8, 64], strides = [1, 1, 1]} : vector<16x8x64xi1> to vector<1x8x64xi1>
    %540 = vector.shape_cast %539 : vector<1x8x64xi1> to vector<8x64xi1>
    %541 = arith.select %540, %538, %513 : vector<8x64xi1>, vector<8x64xf32>
    %c4_203 = arith.constant 4 : index
    %c0_204 = arith.constant 0 : index
    %c0_205 = arith.constant 0 : index
    %542 = vector.load %arg4[%c4_203, %c0_204, %c0_205] : memref<8x8x192xf32, #tpu.memory_space<vmem>>, vector<1x8x192xf32>
    %543 = vector.shape_cast %542 : vector<1x8x192xf32> to vector<8x192xf32>
    %cst_206 = arith.constant dense<0.000000e+00> : vector<8x192xf32>
    %544 = tpu.matmul %538, %427, %cst_206 {dimension_numbers = #tpu.dot_dimension_numbers<[1], [0], [0], [1], [0, 0, 1, 1], [], []>} : vector<8x64xf32>, vector<64x192xf32>, vector<8x192xf32> -> vector<8x192xf32>
    %545 = vector.extract_strided_slice %543 {offsets = [0, 0], sizes = [8, 128], strides = [1, 1]} : vector<8x192xf32> to vector<8x128xf32>
    %546 = vector.extract_strided_slice %544 {offsets = [0, 0], sizes = [8, 128], strides = [1, 1]} : vector<8x192xf32> to vector<8x128xf32>
    %547 = arith.addf %545, %546 : vector<8x128xf32>
    %548 = arith.negf %547 : vector<8x128xf32>
    %549 = math.exp %548 : vector<8x128xf32>
    %cst_207 = arith.constant 1.000000e+00 : f32
    %550 = vector.broadcast %cst_207 : f32 to vector<8x128xf32>
    %551 = arith.addf %550, %549 : vector<8x128xf32>
    %552 = arith.divf %550, %551 : vector<8x128xf32>
    %553 = vector.extract_strided_slice %552 {offsets = [0, 0], sizes = [8, 64], strides = [1, 1]} : vector<8x128xf32> to vector<8x64xf32>
    %554 = vector.extract_strided_slice %552 {offsets = [0, 64], sizes = [8, 64], strides = [1, 1]} : vector<8x128xf32> to vector<8x64xf32>
    %555 = vector.extract_strided_slice %543 {offsets = [0, 128], sizes = [8, 64], strides = [1, 1]} : vector<8x192xf32> to vector<8x64xf32>
    %556 = vector.extract_strided_slice %544 {offsets = [0, 128], sizes = [8, 64], strides = [1, 1]} : vector<8x192xf32> to vector<8x64xf32>
    %557 = arith.addf %556, %428 : vector<8x64xf32>
    %558 = arith.mulf %553, %557 : vector<8x64xf32>
    %559 = arith.addf %555, %558 : vector<8x64xf32>
    %560 = math.tanh %559 : vector<8x64xf32>
    %561 = arith.subf %538, %560 : vector<8x64xf32>
    %562 = arith.mulf %554, %561 : vector<8x64xf32>
    %563 = arith.addf %560, %562 : vector<8x64xf32>
    %564 = vector.extract_strided_slice %2 {offsets = [4, 0, 0], sizes = [1, 8, 64], strides = [1, 1, 1]} : vector<16x8x64xi1> to vector<1x8x64xi1>
    %565 = vector.shape_cast %564 : vector<1x8x64xi1> to vector<8x64xi1>
    %566 = arith.select %565, %563, %538 : vector<8x64xi1>, vector<8x64xf32>
    %567 = vector.extract_strided_slice %2 {offsets = [12, 0, 0], sizes = [1, 8, 64], strides = [1, 1, 1]} : vector<16x8x64xi1> to vector<1x8x64xi1>
    %568 = vector.shape_cast %567 : vector<1x8x64xi1> to vector<8x64xi1>
    %569 = arith.select %568, %566, %541 : vector<8x64xi1>, vector<8x64xf32>
    %c5_208 = arith.constant 5 : index
    %c0_209 = arith.constant 0 : index
    %c0_210 = arith.constant 0 : index
    %570 = vector.load %arg4[%c5_208, %c0_209, %c0_210] : memref<8x8x192xf32, #tpu.memory_space<vmem>>, vector<1x8x192xf32>
    %571 = vector.shape_cast %570 : vector<1x8x192xf32> to vector<8x192xf32>
    %cst_211 = arith.constant dense<0.000000e+00> : vector<8x192xf32>
    %572 = tpu.matmul %566, %427, %cst_211 {dimension_numbers = #tpu.dot_dimension_numbers<[1], [0], [0], [1], [0, 0, 1, 1], [], []>} : vector<8x64xf32>, vector<64x192xf32>, vector<8x192xf32> -> vector<8x192xf32>
    %573 = vector.extract_strided_slice %571 {offsets = [0, 0], sizes = [8, 128], strides = [1, 1]} : vector<8x192xf32> to vector<8x128xf32>
    %574 = vector.extract_strided_slice %572 {offsets = [0, 0], sizes = [8, 128], strides = [1, 1]} : vector<8x192xf32> to vector<8x128xf32>
    %575 = arith.addf %573, %574 : vector<8x128xf32>
    %576 = arith.negf %575 : vector<8x128xf32>
    %577 = math.exp %576 : vector<8x128xf32>
    %cst_212 = arith.constant 1.000000e+00 : f32
    %578 = vector.broadcast %cst_212 : f32 to vector<8x128xf32>
    %579 = arith.addf %578, %577 : vector<8x128xf32>
    %580 = arith.divf %578, %579 : vector<8x128xf32>
    %581 = vector.extract_strided_slice %580 {offsets = [0, 0], sizes = [8, 64], strides = [1, 1]} : vector<8x128xf32> to vector<8x64xf32>
    %582 = vector.extract_strided_slice %580 {offsets = [0, 64], sizes = [8, 64], strides = [1, 1]} : vector<8x128xf32> to vector<8x64xf32>
    %583 = vector.extract_strided_slice %571 {offsets = [0, 128], sizes = [8, 64], strides = [1, 1]} : vector<8x192xf32> to vector<8x64xf32>
    %584 = vector.extract_strided_slice %572 {offsets = [0, 128], sizes = [8, 64], strides = [1, 1]} : vector<8x192xf32> to vector<8x64xf32>
    %585 = arith.addf %584, %428 : vector<8x64xf32>
    %586 = arith.mulf %581, %585 : vector<8x64xf32>
    %587 = arith.addf %583, %586 : vector<8x64xf32>
    %588 = math.tanh %587 : vector<8x64xf32>
    %589 = arith.subf %566, %588 : vector<8x64xf32>
    %590 = arith.mulf %582, %589 : vector<8x64xf32>
    %591 = arith.addf %588, %590 : vector<8x64xf32>
    %592 = vector.extract_strided_slice %2 {offsets = [5, 0, 0], sizes = [1, 8, 64], strides = [1, 1, 1]} : vector<16x8x64xi1> to vector<1x8x64xi1>
    %593 = vector.shape_cast %592 : vector<1x8x64xi1> to vector<8x64xi1>
    %594 = arith.select %593, %591, %566 : vector<8x64xi1>, vector<8x64xf32>
    %595 = vector.extract_strided_slice %2 {offsets = [13, 0, 0], sizes = [1, 8, 64], strides = [1, 1, 1]} : vector<16x8x64xi1> to vector<1x8x64xi1>
    %596 = vector.shape_cast %595 : vector<1x8x64xi1> to vector<8x64xi1>
    %597 = arith.select %596, %594, %569 : vector<8x64xi1>, vector<8x64xf32>
    %c6_213 = arith.constant 6 : index
    %c0_214 = arith.constant 0 : index
    %c0_215 = arith.constant 0 : index
    %598 = vector.load %arg4[%c6_213, %c0_214, %c0_215] : memref<8x8x192xf32, #tpu.memory_space<vmem>>, vector<1x8x192xf32>
    %599 = vector.shape_cast %598 : vector<1x8x192xf32> to vector<8x192xf32>
    %cst_216 = arith.constant dense<0.000000e+00> : vector<8x192xf32>
    %600 = tpu.matmul %594, %427, %cst_216 {dimension_numbers = #tpu.dot_dimension_numbers<[1], [0], [0], [1], [0, 0, 1, 1], [], []>} : vector<8x64xf32>, vector<64x192xf32>, vector<8x192xf32> -> vector<8x192xf32>
    %601 = vector.extract_strided_slice %599 {offsets = [0, 0], sizes = [8, 128], strides = [1, 1]} : vector<8x192xf32> to vector<8x128xf32>
    %602 = vector.extract_strided_slice %600 {offsets = [0, 0], sizes = [8, 128], strides = [1, 1]} : vector<8x192xf32> to vector<8x128xf32>
    %603 = arith.addf %601, %602 : vector<8x128xf32>
    %604 = arith.negf %603 : vector<8x128xf32>
    %605 = math.exp %604 : vector<8x128xf32>
    %cst_217 = arith.constant 1.000000e+00 : f32
    %606 = vector.broadcast %cst_217 : f32 to vector<8x128xf32>
    %607 = arith.addf %606, %605 : vector<8x128xf32>
    %608 = arith.divf %606, %607 : vector<8x128xf32>
    %609 = vector.extract_strided_slice %608 {offsets = [0, 0], sizes = [8, 64], strides = [1, 1]} : vector<8x128xf32> to vector<8x64xf32>
    %610 = vector.extract_strided_slice %608 {offsets = [0, 64], sizes = [8, 64], strides = [1, 1]} : vector<8x128xf32> to vector<8x64xf32>
    %611 = vector.extract_strided_slice %599 {offsets = [0, 128], sizes = [8, 64], strides = [1, 1]} : vector<8x192xf32> to vector<8x64xf32>
    %612 = vector.extract_strided_slice %600 {offsets = [0, 128], sizes = [8, 64], strides = [1, 1]} : vector<8x192xf32> to vector<8x64xf32>
    %613 = arith.addf %612, %428 : vector<8x64xf32>
    %614 = arith.mulf %609, %613 : vector<8x64xf32>
    %615 = arith.addf %611, %614 : vector<8x64xf32>
    %616 = math.tanh %615 : vector<8x64xf32>
    %617 = arith.subf %594, %616 : vector<8x64xf32>
    %618 = arith.mulf %610, %617 : vector<8x64xf32>
    %619 = arith.addf %616, %618 : vector<8x64xf32>
    %620 = vector.extract_strided_slice %2 {offsets = [6, 0, 0], sizes = [1, 8, 64], strides = [1, 1, 1]} : vector<16x8x64xi1> to vector<1x8x64xi1>
    %621 = vector.shape_cast %620 : vector<1x8x64xi1> to vector<8x64xi1>
    %622 = arith.select %621, %619, %594 : vector<8x64xi1>, vector<8x64xf32>
    %623 = vector.extract_strided_slice %2 {offsets = [14, 0, 0], sizes = [1, 8, 64], strides = [1, 1, 1]} : vector<16x8x64xi1> to vector<1x8x64xi1>
    %624 = vector.shape_cast %623 : vector<1x8x64xi1> to vector<8x64xi1>
    %625 = arith.select %624, %622, %597 : vector<8x64xi1>, vector<8x64xf32>
    %c7_218 = arith.constant 7 : index
    %c0_219 = arith.constant 0 : index
    %c0_220 = arith.constant 0 : index
    %626 = vector.load %arg4[%c7_218, %c0_219, %c0_220] : memref<8x8x192xf32, #tpu.memory_space<vmem>>, vector<1x8x192xf32>
    %627 = vector.shape_cast %626 : vector<1x8x192xf32> to vector<8x192xf32>
    %cst_221 = arith.constant dense<0.000000e+00> : vector<8x192xf32>
    %628 = tpu.matmul %622, %427, %cst_221 {dimension_numbers = #tpu.dot_dimension_numbers<[1], [0], [0], [1], [0, 0, 1, 1], [], []>} : vector<8x64xf32>, vector<64x192xf32>, vector<8x192xf32> -> vector<8x192xf32>
    %629 = vector.extract_strided_slice %627 {offsets = [0, 0], sizes = [8, 128], strides = [1, 1]} : vector<8x192xf32> to vector<8x128xf32>
    %630 = vector.extract_strided_slice %628 {offsets = [0, 0], sizes = [8, 128], strides = [1, 1]} : vector<8x192xf32> to vector<8x128xf32>
    %631 = arith.addf %629, %630 : vector<8x128xf32>
    %632 = arith.negf %631 : vector<8x128xf32>
    %633 = math.exp %632 : vector<8x128xf32>
    %cst_222 = arith.constant 1.000000e+00 : f32
    %634 = vector.broadcast %cst_222 : f32 to vector<8x128xf32>
    %635 = arith.addf %634, %633 : vector<8x128xf32>
    %636 = arith.divf %634, %635 : vector<8x128xf32>
    %637 = vector.extract_strided_slice %636 {offsets = [0, 0], sizes = [8, 64], strides = [1, 1]} : vector<8x128xf32> to vector<8x64xf32>
    %638 = vector.extract_strided_slice %636 {offsets = [0, 64], sizes = [8, 64], strides = [1, 1]} : vector<8x128xf32> to vector<8x64xf32>
    %639 = vector.extract_strided_slice %627 {offsets = [0, 128], sizes = [8, 64], strides = [1, 1]} : vector<8x192xf32> to vector<8x64xf32>
    %640 = vector.extract_strided_slice %628 {offsets = [0, 128], sizes = [8, 64], strides = [1, 1]} : vector<8x192xf32> to vector<8x64xf32>
    %641 = arith.addf %640, %428 : vector<8x64xf32>
    %642 = arith.mulf %637, %641 : vector<8x64xf32>
    %643 = arith.addf %639, %642 : vector<8x64xf32>
    %644 = math.tanh %643 : vector<8x64xf32>
    %645 = arith.subf %622, %644 : vector<8x64xf32>
    %646 = arith.mulf %638, %645 : vector<8x64xf32>
    %647 = arith.addf %644, %646 : vector<8x64xf32>
    %648 = vector.extract_strided_slice %2 {offsets = [7, 0, 0], sizes = [1, 8, 64], strides = [1, 1, 1]} : vector<16x8x64xi1> to vector<1x8x64xi1>
    %649 = vector.shape_cast %648 : vector<1x8x64xi1> to vector<8x64xi1>
    %650 = arith.select %649, %647, %622 : vector<8x64xi1>, vector<8x64xf32>
    %651 = vector.extract_strided_slice %2 {offsets = [15, 0, 0], sizes = [1, 8, 64], strides = [1, 1, 1]} : vector<16x8x64xi1> to vector<1x8x64xi1>
    %652 = vector.shape_cast %651 : vector<1x8x64xi1> to vector<8x64xi1>
    %653 = arith.select %652, %650, %625 : vector<8x64xi1>, vector<8x64xf32>
    %654 = vector.extract_strided_slice %650 {offsets = [0, 0], sizes = [4, 64], strides = [1, 1]} : vector<8x64xf32> to vector<4x64xf32>
    %655 = vector.extract_strided_slice %653 {offsets = [4, 0], sizes = [4, 64], strides = [1, 1]} : vector<8x64xf32> to vector<4x64xf32>
    %656 = arith.addf %654, %655 : vector<4x64xf32>
    %c392 = arith.constant 392 : index
    %c0_223 = arith.constant 0 : index
    %657 = vector.load %arg2[%c392, %c0_223] : memref<544x192xf32, #tpu.memory_space<vmem>>, vector<64x32xf32>
    %cst_224 = arith.constant dense<0.000000e+00> : vector<4x32xf32>
    %658 = tpu.matmul %656, %657, %cst_224 {dimension_numbers = #tpu.dot_dimension_numbers<[1], [0], [0], [1], [0, 0, 1, 1], [], []>} : vector<4x64xf32>, vector<64x32xf32>, vector<4x32xf32> -> vector<4x32xf32>
    %c456 = arith.constant 456 : index
    %c0_225 = arith.constant 0 : index
    %659 = vector.load %arg2[%c456, %c0_225] : memref<544x192xf32, #tpu.memory_space<vmem>>, vector<1x32xf32>
    %660 = vector.broadcast %659 : vector<1x32xf32> to vector<4x32xf32>
    %661 = arith.addf %658, %660 : vector<4x32xf32>
    %c464 = arith.constant 464 : index
    %c0_226 = arith.constant 0 : index
    %662 = vector.load %arg2[%c464, %c0_226] : memref<544x192xf32, #tpu.memory_space<vmem>>, vector<32x32xf32>
    %cst_227 = arith.constant dense<0.000000e+00> : vector<4x32xf32>
    %663 = tpu.matmul %661, %662, %cst_227 {dimension_numbers = #tpu.dot_dimension_numbers<[1], [0], [0], [1], [0, 0, 1, 1], [], []>} : vector<4x32xf32>, vector<32x32xf32>, vector<4x32xf32> -> vector<4x32xf32>
    %c496 = arith.constant 496 : index
    %c0_228 = arith.constant 0 : index
    %664 = vector.load %arg2[%c496, %c0_228] : memref<544x192xf32, #tpu.memory_space<vmem>>, vector<1x32xf32>
    %665 = vector.broadcast %664 : vector<1x32xf32> to vector<4x32xf32>
    %666 = arith.addf %663, %665 : vector<4x32xf32>
    %cst_229 = arith.constant 0.000000e+00 : f32
    %667 = vector.broadcast %cst_229 : f32 to vector<4x32xf32>
    %668 = arith.cmpf oge, %666, %667 : vector<4x32xf32>
    %cst_230 = arith.constant 0.00999999977 : f32
    %669 = vector.broadcast %cst_230 : f32 to vector<4x32xf32>
    %670 = arith.mulf %669, %666 : vector<4x32xf32>
    %671 = arith.select %668, %666, %670 : vector<4x32xi1>, vector<4x32xf32>
    %c504 = arith.constant 504 : index
    %c0_231 = arith.constant 0 : index
    %672 = vector.load %arg2[%c504, %c0_231] : memref<544x192xf32, #tpu.memory_space<vmem>>, vector<32x3xf32>
    %cst_232 = arith.constant dense<0.000000e+00> : vector<4x3xf32>
    %673 = tpu.matmul %671, %672, %cst_232 {dimension_numbers = #tpu.dot_dimension_numbers<[1], [0], [0], [1], [0, 0, 1, 1], [], []>} : vector<4x32xf32>, vector<32x3xf32>, vector<4x3xf32> -> vector<4x3xf32>
    %c536 = arith.constant 536 : index
    %c0_233 = arith.constant 0 : index
    %674 = vector.load %arg2[%c536, %c0_233] : memref<544x192xf32, #tpu.memory_space<vmem>>, vector<1x3xf32>
    %675 = vector.broadcast %674 : vector<1x3xf32> to vector<4x3xf32>
    %676 = arith.addf %673, %675 : vector<4x3xf32>
    %c0_234 = arith.constant 0 : index
    %c0_235 = arith.constant 0 : index
    %677 = vector.load %arg3[%c0_234, %c0_235] : memref<4x3xf32, #tpu.memory_space<vmem>>, vector<4x3xf32>
    tpu.vector_store %arg3[%c0_234, %c0_235], %676 {strides = array<i32>} : memref<4x3xf32, #tpu.memory_space<vmem>>, vector<4x3xf32>,
    return
  }
}

</mosaic_0001>

<llo_original>
// kernel: seq_model_forward.1
$region0: #{seq_model_forward.1}
  #allocation0 [shape = 'u32[]', space=smem, size = 0x4, offset = 0x4, fixed_abs, tag = 'smem constant byte address 0x4 - core index']
  #allocation1 [shape = 'u32[144,128]{1,0:T(1,128)}', space=vmem, size = 0x12000, scoped, tag = 'internal scratch']
  #allocation2 [shape = 'f32[8,8,192]{2,1,0:T(8,128)}', space=vmem, size = 0x10000, scoped, tag = 'scratch operand']
  #allocation3 [shape = 'f32[8,8,64]{2,1,0:T(8,128)}', space=vmem, size = 0x8000, scoped, tag = 'scratch operand']
  %s0 = inlined_call_operand.vmem [shape: f32[32,16], index: 0, kind: input, shape index: {}]
  %s1 = inlined_call_operand.vmem [shape: f32[16,8,64], index: 1, kind: input, shape index: {}]
  %s2 = inlined_call_operand.vmem [shape: f32[544,192], index: 2, kind: input, shape index: {}]
  %s3 = inlined_call_operand.hbm [shape: f32[4,3], index: 3, kind: output, shape index: {}]
  %s4 = sld [smem:[#allocation0]]
  $region22: #{seq_model_forward.1} parent=0
    _
  %s6 = ssub.s32 1, %s4
  %s7 = scalar_select 0, %s6, %s4
  $region1: #{seq_model_forward.1} parent=0
    #allocation4 [shape = 'u8[2048]{0}', space=vmem, size = 0x800, scoped, tag = 'output window, operand 0, single buffered']
    #allocation5 [shape = 's32[1]{0}', space=sflag, size = 0x4, scoped, tag = 'scoped memory for seq_model_forward.1']
    %8 = vsyncpa [#allocation5], 0
    // Predicated region
    $region2: #{seq_model_forward.1} parent=1 // pred_check
      _
    $region3: #{seq_model_forward.1} parent=1 // pred_check_branch
      %10 = sbr.rel (0) target = $region5
    $region4: #{seq_model_forward.1} parent=1 // pred_region
      _
    $region5: #{seq_model_forward.1} parent=1 // pred_fallthru
      _
    // Predicated region
    $region6: #{seq_model_forward.1} parent=1 // pred_check
      _
    $region7: #{seq_model_forward.1} parent=1 // pred_check_branch
      %12 = sbr.rel (0) target = $region9
    $region8: #{seq_model_forward.1} parent=1 // pred_region
      _
    $region9: #{seq_model_forward.1} parent=1 // pred_fallthru
      _
    // Predicated region
    $region10: #{seq_model_forward.1} parent=1 // pred_check
      _
    $region11: #{seq_model_forward.1} parent=1 // pred_check_branch
      %14 = sbr.rel (0) target = $region13
    $region12: #{seq_model_forward.1} parent=1 // pred_region
      _
    $region13: #{seq_model_forward.1} parent=1 // pred_fallthru
      _
    %v15 = vld [vmem:[%s1] sm:$0xff]
    %v16 = vld [vmem:[%s1 + $0x8] sm:$0xff]
    %v17 = vld [vmem:[%s1 + $0x10] sm:$0xff]
    %v18 = vld [vmem:[%s1 + $0x18] sm:$0xff]
    %v19 = vld [vmem:[%s1 + $0x20] sm:$0xff]
    %v20 = vld [vmem:[%s1 + $0x28] sm:$0xff]
    %v21 = vld [vmem:[%s1 + $0x30] sm:$0xff]
    %v22 = vld [vmem:[%s1 + $0x38] sm:$0xff]
    %v23 = vld [vmem:[%s1 + $0x40] sm:$0xff]
    %v24 = vld [vmem:[%s1 + $0x48] sm:$0xff]
    %v25 = vld [vmem:[%s1 + $0x50] sm:$0xff]
    %v26 = vld [vmem:[%s1 + $0x58] sm:$0xff]
    %v27 = vld [vmem:[%s1 + $0x60] sm:$0xff]
    %v28 = vld [vmem:[%s1 + $0x68] sm:$0xff]
    %v29 = vld [vmem:[%s1 + $0x70] sm:$0xff]
    %v30 = vld [vmem:[%s1 + $0x78] sm:$0xff]
    %vm31 = vcmp.gt.f32.partialorder %v15, 0.0
    %vm32 = vcmp.gt.f32.partialorder %v16, 0.0
    %vm33 = vcmp.gt.f32.partialorder %v17, 0.0
    %vm34 = vcmp.gt.f32.partialorder %v18, 0.0
    %vm35 = vcmp.gt.f32.partialorder %v19, 0.0
    %vm36 = vcmp.gt.f32.partialorder %v20, 0.0
    %vm37 = vcmp.gt.f32.partialorder %v21, 0.0
    %vm38 = vcmp.gt.f32.partialorder %v22, 0.0
    %vm39 = vcmp.gt.f32.partialorder %v23, 0.0
    %vm40 = vcmp.gt.f32.partialorder %v24, 0.0
    %vm41 = vcmp.gt.f32.partialorder %v25, 0.0
    %vm42 = vcmp.gt.f32.partialorder %v26, 0.0
    %vm43 = vcmp.gt.f32.partialorder %v27, 0.0
    %vm44 = vcmp.gt.f32.partialorder %v28, 0.0
    %vm45 = vcmp.gt.f32.partialorder %v29, 0.0
    %vm46 = vcmp.gt.f32.partialorder %v30, 0.0
    %v47 = vld [vmem:[%s0] sm:$0xff]
    %v48 = vld [vmem:[%s0 + $0x8] sm:$0xff]
    %v49 = vld [vmem:[%s0 + $0x10] sm:$0xff]
    %v50 = vld [vmem:[%s0 + $0x18] sm:$0xff]
    %v51 = vld [vmem:[%s2] sm:$0xff]
    %v52 = vld [vmem:[%s2 + $0x10] sm:$0xff]
    %v53 = vld [vmem:[%s2 + $0x20] ss:$0 sm:$0xff]
    %vm54 = vcmask 130048
    %v56 = vsel %vm54, %v47, 0
    %v59 = vsel %vm54, %v48, 0
    %v62 = vsel %vm54, %v49, 0
    %v65 = vsel %vm54, %v50, 0
    %67 = vmatprep.subr.mxu0 0.0
    %68 = vmatpush1.msra.mxu0 %v51
    %69 = vmatprep.subr.mxu0 0.0
    %70 = vmatpush1.msra.mxu0 %v52
    %71 = vmatprep.subr.mxu0 0.0
    %72 = vmatpush1.msra.mxu0 0.0
    %73 = vmatprep.subr.mxu0 0.0
    %74 = vmatpush1.msra.mxu0 0.0
    %75 = vmatprep.subr.mxu0 0.0
    %76 = vmatpush1.msra.mxu0 0.0
    %77 = vmatprep.subr.mxu0 0.0
    %78 = vmatpush1.msra.mxu0 0.0
    %79 = vmatprep.subr.mxu0 0.0
    %80 = vmatpush1.msra.mxu0 0.0
    %81 = vmatprep.subr.mxu0 0.0
    %82 = vmatpush1.msra.mxu0 0.0
    %83 = vmatprep.subr.mxu0 0.0
    %84 = vmatpush1.msra.mxu0 0.0
    %85 = vmatprep.subr.mxu0 0.0
    %86 = vmatpush1.msra.mxu0 0.0
    %87 = vmatprep.subr.mxu0 0.0
    %88 = vmatpush1.msra.mxu0 0.0
    %89 = vmatprep.subr.mxu0 0.0
    %90 = vmatpush1.msra.mxu0 0.0
    %91 = vmatprep.subr.mxu0 0.0
    %92 = vmatpush1.msra.mxu0 0.0
    %93 = vmatprep.subr.mxu0 0.0
    %94 = vmatpush1.msra.mxu0 0.0
    %95 = vmatprep.subr.mxu0 0.0
    %96 = vmatpush1.msra.mxu0 0.0
    %97 = vmatprep.subr.mxu0 0.0
    %98 = vmatpush1.msra.mxu0 0.0
    %99 = vmatprep.subr.mxu0 0.0
    %100 = vmatpush1.msra.mxu0 0.0
    %101 = vmatprep.subr.mxu0 0.0
    %102 = vmatpush1.msra.mxu0 0.0
    %103 = vmatprep.subr.mxu0 0.0
    %104 = vmatpush1.msra.mxu0 0.0
    %105 = vmatprep.subr.mxu0 0.0
    %106 = vmatpush1.msra.mxu0 0.0
    %107 = vmatprep.subr.mxu0 0.0
    %108 = vmatpush1.msra.mxu0 0.0
    %109 = vmatprep.subr.mxu0 0.0
    %110 = vmatpush1.msra.mxu0 0.0
    %111 = vmatprep.subr.mxu0 0.0
    %112 = vmatpush1.msra.mxu0 0.0
    %113 = vmatprep.subr.mxu0 0.0
    %114 = vmatpush1.msra.mxu0 0.0
    %115 = vmatprep.subr.mxu0 0.0
    %116 = vmatpush1.msra.mxu0 0.0
    %117 = vmatprep.subr.mxu0 0.0
    %118 = vmatpush1.msra.mxu0 0.0
    %119 = vmatprep.subr.mxu0 0.0
    %120 = vmatpush1.msra.mxu0 0.0
    %121 = vmatprep.subr.mxu0 0.0
    %122 = vmatpush1.msra.mxu0 0.0
    %123 = vmatprep.subr.mxu0 0.0
    %124 = vmatpush1.msra.mxu0 0.0
    %125 = vmatprep.subr.mxu0 0.0
    %126 = vmatpush1.msra.mxu0 0.0
    %127 = vmatprep.subr.mxu0 0.0
    %128 = vmatpush1.msra.mxu0 0.0
    %129 = vmatprep.subr.mxu0 0.0
    %130 = vmatpush1.msra.mxu0 0.0
    %131 = vmatprep.mubr.f32.mxu0 0.0
    %132 = vmatmul.mubr.f32.gmra.mrb[0].mxu0 %v56
    %v133 = vpop.f32.mrb[0].mxu0
    %v134 = vadd.f32 %v53, %v133
    %v135 = vpop.f32.mrb[0].mxu0
    %136 = vmatprep.mubr.f32.mxu0 0.0
    %137 = vmatmul.mubr.f32.gmra.mrb[0].mxu0 %v59
    %v138 = vpop.f32.mrb[0].mxu0
    %v139 = vadd.f32 %v53, %v138
    %v140 = vpop.f32.mrb[0].mxu0
    %141 = vmatprep.mubr.f32.mxu0 0.0
    %142 = vmatmul.mubr.f32.gmra.mrb[0].mxu0 %v62
    %v143 = vpop.f32.mrb[0].mxu0
    %v144 = vadd.f32 %v53, %v143
    %v145 = vpop.f32.mrb[0].mxu0
    %146 = vmatprep.mubr.f32.mxu0 0.0
    %147 = vmatmul.mubr.f32.gmra.mrb[0].mxu0 %v65
    %v148 = vpop.f32.mrb[0].mxu0
    %v149 = vadd.f32 %v53, %v148
    %v150 = vpop.f32.mrb[0].mxu0
    %151 = vdwg.mxu0
    %v152 = vld [vmem:[%s2 + $0x30] sm:$0xff]
    %v153 = vld [vmem:[%s2 + $0x38] sm:$0xff]
    %v154 = vld [vmem:[%s2 + $0x40] sm:$0xff]
    %v155 = vld [vmem:[%s2 + $0x48] sm:$0xff]
    %v156 = vld [vmem:[%s2 + $0x50] sm:$0xff]
    %v157 = vld [vmem:[%s2 + $0x58] sm:$0xff]
    %v158 = vld [vmem:[%s2 + $0x60] sm:$0xff]
    %v159 = vld [vmem:[%s2 + $0x68] sm:$0xff]
    %s160 = scalar_lea.vmem %s2, 176
    %v161 = vld [vmem:[%s160] ss:$8 sm:$0x3]
    %v163 = vlaneseq
    %v164 = vshrl.u32 %v163, 7
    %v165 = vsub.s32 0, %v164
    %v166 = vrot.slane %v161, %v165
    %v167 = vlaneseq
    %v168 = vshrl.u32 %v167, 7
    %v169 = vsub.s32 1, %v168
    %v170 = vrot.slane %v161, %v169
    %vm173 = vcmask 261120
    %v175 = vsel %vm173, %v134, 0
    %v178 = vsel %vm173, %v139, 0
    %v181 = vsel %vm173, %v144, 0
    %v184 = vsel %vm173, %v149, 0
    %186 = vmatprep.subr.mxu0 %v153
    %187 = vmatpush1.msra.mxu0 %v152
    %188 = vmatprep.subr.mxu0 %v155
    %189 = vmatpush1.msra.mxu0 %v154
    %190 = vmatprep.subr.mxu0 %v157
    %191 = vmatpush1.msra.mxu0 %v156
    %192 = vmatprep.subr.mxu0 %v159
    %193 = vmatpush1.msra.mxu0 %v158
    %194 = vmatprep.subr.mxu0 0.0
    %195 = vmatpush1.msra.mxu0 0.0
    %196 = vmatprep.subr.mxu0 0.0
    %197 = vmatpush1.msra.mxu0 0.0
    %198 = vmatprep.subr.mxu0 0.0
    %199 = vmatpush1.msra.mxu0 0.0
    %200 = vmatprep.subr.mxu0 0.0
    %201 = vmatpush1.msra.mxu0 0.0
    %202 = vmatprep.subr.mxu0 0.0
    %203 = vmatpush1.msra.mxu0 0.0
    %204 = vmatprep.subr.mxu0 0.0
    %205 = vmatpush1.msra.mxu0 0.0
    %206 = vmatprep.subr.mxu0 0.0
    %207 = vmatpush1.msra.mxu0 0.0
    %208 = vmatprep.subr.mxu0 0.0
    %209 = vmatpush1.msra.mxu0 0.0
    %210 = vmatprep.subr.mxu0 0.0
    %211 = vmatpush1.msra.mxu0 0.0
    %212 = vmatprep.subr.mxu0 0.0
    %213 = vmatpush1.msra.mxu0 0.0
    %214 = vmatprep.subr.mxu0 0.0
    %215 = vmatpush1.msra.mxu0 0.0
    %216 = vmatprep.subr.mxu0 0.0
    %217 = vmatpush1.msra.mxu0 0.0
    %218 = vmatprep.subr.mxu0 0.0
    %219 = vmatpush1.msra.mxu0 0.0
    %220 = vmatprep.subr.mxu0 0.0
    %221 = vmatpush1.msra.mxu0 0.0
    %222 = vmatprep.subr.mxu0 0.0
    %223 = vmatpush1.msra.mxu0 0.0
    %224 = vmatprep.subr.mxu0 0.0
    %225 = vmatpush1.msra.mxu0 0.0
    %226 = vmatprep.subr.mxu0 0.0
    %227 = vmatpush1.msra.mxu0 0.0
    %228 = vmatprep.subr.mxu0 0.0
    %229 = vmatpush1.msra.mxu0 0.0
    %230 = vmatprep.subr.mxu0 0.0
    %231 = vmatpush1.msra.mxu0 0.0
    %232 = vmatprep.subr.mxu0 0.0
    %233 = vmatpush1.msra.mxu0 0.0
    %234 = vmatprep.subr.mxu0 0.0
    %235 = vmatpush1.msra.mxu0 0.0
    %236 = vmatprep.subr.mxu0 0.0
    %237 = vmatpush1.msra.mxu0 0.0
    %238 = vmatprep.subr.mxu0 0.0
    %239 = vmatpush1.msra.mxu0 0.0
    %240 = vmatprep.subr.mxu0 0.0
    %241 = vmatpush1.msra.mxu0 0.0
    %242 = vmatprep.subr.mxu0 0.0
    %243 = vmatpush1.msra.mxu0 0.0
    %244 = vmatprep.subr.mxu0 0.0
    %245 = vmatpush1.msra.mxu0 0.0
    %246 = vmatprep.subr.mxu0 0.0
    %247 = vmatpush1.msra.mxu0 0.0
    %248 = vmatprep.subr.mxu0 0.0
    %249 = vmatpush1.msra.mxu0 0.0
    %250 = vmatprep.mubr.f32.mxu0 0.0
    %251 = vmatmul.mubr.f32.gmra.mrb[0].mxu0 %v175
    %v252 = vpop.f32.mrb[0].mxu0
    %v253 = vadd.f32 %v166, %v252
    %v254 = vpop.f32.mrb[0].mxu0
    %v255 = vadd.f32 %v170, %v254
    %256 = vmatprep.mubr.f32.mxu0 0.0
    %257 = vmatmul.mubr.f32.gmra.mrb[0].mxu0 %v178
    %v258 = vpop.f32.mrb[0].mxu0
    %v259 = vadd.f32 %v166, %v258
    %v260 = vpop.f32.mrb[0].mxu0
    %v261 = vadd.f32 %v170, %v260
    %262 = vmatprep.mubr.f32.mxu0 0.0
    %263 = vmatmul.mubr.f32.gmra.mrb[0].mxu0 %v181
    %v264 = vpop.f32.mrb[0].mxu0
    %v265 = vadd.f32 %v166, %v264
    %v266 = vpop.f32.mrb[0].mxu0
    %v267 = vadd.f32 %v170, %v266
    %268 = vmatprep.mubr.f32.mxu0 0.0
    %269 = vmatmul.mubr.f32.gmra.mrb[0].mxu0 %v184
    %v270 = vpop.f32.mrb[0].mxu0
    %v271 = vadd.f32 %v166, %v270
    %v272 = vpop.f32.mrb[0].mxu0
    %v273 = vadd.f32 %v170, %v272
    %274 = vdwg.mxu0
    %v275 = vld [vmem:[%s2 + $0x70] sm:$0xff]
    %v276 = vld [vmem:[%s2 + $0x78] sm:$0xff]
    %v277 = vld [vmem:[%s2 + $0x80] sm:$0xff]
    %v278 = vld [vmem:[%s2 + $0x88] sm:$0xff]
    %v279 = vld [vmem:[%s2 + $0x90] sm:$0xff]
    %v280 = vld [vmem:[%s2 + $0x98] sm:$0xff]
    %v281 = vld [vmem:[%s2 + $0xa0] sm:$0xff]
    %v282 = vld [vmem:[%s2 + $0xa8] sm:$0xff]
    %s283 = scalar_lea.vmem %s2, 192
    %v284 = vld [vmem:[%s283] ss:$8 sm:$0x3]
    %v286 = vlaneseq
    %v287 = vshrl.u32 %v286, 7
    %v288 = vsub.s32 0, %v287
    %v289 = vrot.slane %v284, %v288
    %v290 = vlaneseq
    %v291 = vshrl.u32 %v290, 7
    %v292 = vsub.s32 1, %v291
    %v293 = vrot.slane %v284, %v292
    %296 = vmatprep.subr.mxu0 %v276
    %297 = vmatpush1.msra.mxu0 %v275
    %298 = vmatprep.subr.mxu0 %v278
    %299 = vmatpush1.msra.mxu0 %v277
    %300 = vmatprep.subr.mxu0 %v280
    %301 = vmatpush1.msra.mxu0 %v279
    %302 = vmatprep.subr.mxu0 %v282
    %303 = vmatpush1.msra.mxu0 %v281
    %304 = vmatprep.subr.mxu0 0.0
    %305 = vmatpush1.msra.mxu0 0.0
    %306 = vmatprep.subr.mxu0 0.0
    %307 = vmatpush1.msra.mxu0 0.0
    %308 = vmatprep.subr.mxu0 0.0
    %309 = vmatpush1.msra.mxu0 0.0
    %310 = vmatprep.subr.mxu0 0.0
    %311 = vmatpush1.msra.mxu0 0.0
    %312 = vmatprep.subr.mxu0 0.0
    %313 = vmatpush1.msra.mxu0 0.0
    %314 = vmatprep.subr.mxu0 0.0
    %315 = vmatpush1.msra.mxu0 0.0
    %316 = vmatprep.subr.mxu0 0.0
    %317 = vmatpush1.msra.mxu0 0.0
    %318 = vmatprep.subr.mxu0 0.0
    %319 = vmatpush1.msra.mxu0 0.0
    %320 = vmatprep.subr.mxu0 0.0
    %321 = vmatpush1.msra.mxu0 0.0
    %322 = vmatprep.subr.mxu0 0.0
    %323 = vmatpush1.msra.mxu0 0.0
    %324 = vmatprep.subr.mxu0 0.0
    %325 = vmatpush1.msra.mxu0 0.0
    %326 = vmatprep.subr.mxu0 0.0
    %327 = vmatpush1.msra.mxu0 0.0
    %328 = vmatprep.subr.mxu0 0.0
    %329 = vmatpush1.msra.mxu0 0.0
    %330 = vmatprep.subr.mxu0 0.0
    %331 = vmatpush1.msra.mxu0 0.0
    %332 = vmatprep.subr.mxu0 0.0
    %333 = vmatpush1.msra.mxu0 0.0
    %334 = vmatprep.subr.mxu0 0.0
    %335 = vmatpush1.msra.mxu0 0.0
    %336 = vmatprep.subr.mxu0 0.0
    %337 = vmatpush1.msra.mxu0 0.0
    %338 = vmatprep.subr.mxu0 0.0
    %339 = vmatpush1.msra.mxu0 0.0
    %340 = vmatprep.subr.mxu0 0.0
    %341 = vmatpush1.msra.mxu0 0.0
    %342 = vmatprep.subr.mxu0 0.0
    %343 = vmatpush1.msra.mxu0 0.0
    %344 = vmatprep.subr.mxu0 0.0
    %345 = vmatpush1.msra.mxu0 0.0
    %346 = vmatprep.subr.mxu0 0.0
    %347 = vmatpush1.msra.mxu0 0.0
    %348 = vmatprep.subr.mxu0 0.0
    %349 = vmatpush1.msra.mxu0 0.0
    %350 = vmatprep.subr.mxu0 0.0
    %351 = vmatpush1.msra.mxu0 0.0
    %352 = vmatprep.subr.mxu0 0.0
    %353 = vmatpush1.msra.mxu0 0.0
    %354 = vmatprep.subr.mxu0 0.0
    %355 = vmatpush1.msra.mxu0 0.0
    %356 = vmatprep.subr.mxu0 0.0
    %357 = vmatpush1.msra.mxu0 0.0
    %358 = vmatprep.subr.mxu0 0.0
    %359 = vmatpush1.msra.mxu0 0.0
    %360 = vmatprep.mubr.f32.mxu0 0.0
    %361 = vmatmul.mubr.f32.gmra.mrb[0].mxu0 %v175
    %v362 = vpop.f32.mrb[0].mxu0
    %v363 = vadd.f32 %v289, %v362
    %v364 = vpop.f32.mrb[0].mxu0
    %v365 = vadd.f32 %v293, %v364
    %366 = vmatprep.mubr.f32.mxu0 0.0
    %367 = vmatmul.mubr.f32.gmra.mrb[0].mxu0 %v178
    %v368 = vpop.f32.mrb[0].mxu0
    %v369 = vadd.f32 %v289, %v368
    %v370 = vpop.f32.mrb[0].mxu0
    %v371 = vadd.f32 %v293, %v370
    %372 = vmatprep.mubr.f32.mxu0 0.0
    %373 = vmatmul.mubr.f32.gmra.mrb[0].mxu0 %v181
    %v374 = vpop.f32.mrb[0].mxu0
    %v375 = vadd.f32 %v289, %v374
    %v376 = vpop.f32.mrb[0].mxu0
    %v377 = vadd.f32 %v293, %v376
    %378 = vmatprep.mubr.f32.mxu0 0.0
    %379 = vmatmul.mubr.f32.gmra.mrb[0].mxu0 %v184
    %v380 = vpop.f32.mrb[0].mxu0
    %v381 = vadd.f32 %v289, %v380
    %v382 = vpop.f32.mrb[0].mxu0
    %v383 = vadd.f32 %v293, %v382
    %384 = vdwg.mxu0
    %385 = vst [vmem:[#allocation2] sm:$0xf] %v253
    %vm386 = vcmask 519168
    %387 = vst.msk [vmem:[#allocation2 + $0x8] sm:$0xf] %vm386, %v255
    %388 = vst [vmem:[#allocation2] sm:$0xf0] %v381
    %vm389 = vcmask 523268
    %390 = vst.msk [vmem:[#allocation2 + $0x8] sm:$0xf0] %vm389, %v383
    %v393 = vrot.slane %v253, 4
    %v394 = vrot.slane %v255, 4
    %s397 = scalar_lea.vmem [#allocation2], 16
    %398 = vst [vmem:[%s397] sm:$0xf] %v393
    %399 = vst.msk [vmem:[%s397 + $0x8] sm:$0xf] %vm386, %v394
    %v402 = vrot.slane %v381, 4
    %v403 = vrot.slane %v383, 4
    %406 = vst [vmem:[%s397] sm:$0xf0] %v402
    %407 = vst.msk [vmem:[%s397 + $0x8] sm:$0xf0] %vm389, %v403
    %s408 = scalar_lea.vmem [#allocation2], 32
    %409 = vst [vmem:[%s408] sm:$0xf] %v259
    %410 = vst.msk [vmem:[%s408 + $0x8] sm:$0xf] %vm386, %v261
    %411 = vst [vmem:[%s408] sm:$0xf0] %v375
    %412 = vst.msk [vmem:[%s408 + $0x8] sm:$0xf0] %vm389, %v377
    %v415 = vrot.slane %v259, 4
    %v416 = vrot.slane %v261, 4
    %s419 = scalar_lea.vmem [#allocation2], 48
    %420 = vst [vmem:[%s419] sm:$0xf] %v415
    %421 = vst.msk [vmem:[%s419 + $0x8] sm:$0xf] %vm386, %v416
    %v424 = vrot.slane %v375, 4
    %v425 = vrot.slane %v377, 4
    %428 = vst [vmem:[%s419] sm:$0xf0] %v424
    %429 = vst.msk [vmem:[%s419 + $0x8] sm:$0xf0] %vm389, %v425
    %s430 = scalar_lea.vmem [#allocation2], 64
    %431 = vst [vmem:[%s430] sm:$0xf] %v265
    %432 = vst.msk [vmem:[%s430 + $0x8] sm:$0xf] %vm386, %v267
    %433 = vst [vmem:[%s430] sm:$0xf0] %v369
    %434 = vst.msk [vmem:[%s430 + $0x8] sm:$0xf0] %vm389, %v371
    %v437 = vrot.slane %v265, 4
    %v438 = vrot.slane %v267, 4
    %s441 = scalar_lea.vmem [#allocation2], 80
    %442 = vst [vmem:[%s441] sm:$0xf] %v437
    %443 = vst.msk [vmem:[%s441 + $0x8] sm:$0xf] %vm386, %v438
    %v446 = vrot.slane %v369, 4
    %v447 = vrot.slane %v371, 4
    %450 = vst [vmem:[%s441] sm:$0xf0] %v446
    %451 = vst.msk [vmem:[%s441 + $0x8] sm:$0xf0] %vm389, %v447
    %s452 = scalar_lea.vmem [#allocation2], 96
    %453 = vst [vmem:[%s452] sm:$0xf] %v271
    %454 = vst.msk [vmem:[%s452 + $0x8] sm:$0xf] %vm386, %v273
    %455 = vst [vmem:[%s452] sm:$0xf0] %v363
    %456 = vst.msk [vmem:[%s452 + $0x8] sm:$0xf0] %vm389, %v365
    %v459 = vrot.slane %v271, 4
    %v460 = vrot.slane %v273, 4
    %s463 = scalar_lea.vmem [#allocation2], 112
    %464 = vst [vmem:[%s463] sm:$0xf] %v459
    %465 = vst.msk [vmem:[%s463 + $0x8] sm:$0xf] %vm386, %v460
    %v468 = vrot.slane %v363, 4
    %v469 = vrot.slane %v365, 4
    %472 = vst [vmem:[%s463] sm:$0xf0] %v468
    %473 = vst.msk [vmem:[%s463 + $0x8] sm:$0xf0] %vm389, %v469
    %v474 = vld [vmem:[%s2 + $0xd0] sm:$0xff]
    %v475 = vld [vmem:[%s2 + $0xd8] sm:$0xff]
    %v476 = vld [vmem:[%s2 + $0xe0] sm:$0xff]
    %v477 = vld [vmem:[%s2 + $0xe8] sm:$0xff]
    %v478 = vld [vmem:[%s2 + $0xf0] sm:$0xff]
    %v479 = vld [vmem:[%s2 + $0xf8] sm:$0xff]
    %v480 = vld [vmem:[%s2 + $0x100] sm:$0xff]
    %v481 = vld [vmem:[%s2 + $0x108] sm:$0xff]
    %v482 = vld [vmem:[%s2 + $0x110] sm:$0xff]
    %v483 = vld [vmem:[%s2 + $0x118] sm:$0xff]
    %v484 = vld [vmem:[%s2 + $0x120] sm:$0xff]
    %v485 = vld [vmem:[%s2 + $0x128] sm:$0xff]
    %v486 = vld [vmem:[%s2 + $0x130] sm:$0xff]
    %v487 = vld [vmem:[%s2 + $0x138] sm:$0xff]
    %v488 = vld [vmem:[%s2 + $0x140] sm:$0xff]
    %v489 = vld [vmem:[%s2 + $0x148] sm:$0xff]
    %v490 = vld [vmem:[%s2 + $0x150] sm:$0xff]
    %v491 = vld [vmem:[#allocation2] sm:$0xff]
    %v492 = vld [vmem:[#allocation2 + $0x8] sm:$0xff]
    %vm493 = vcmask 523264
    %v495 = vsel %vm493, 0.0, 0
    %497 = vmatprep.subr.mxu0 %v475
    %498 = vmatpush1.msra.mxu0 %v474
    %499 = vmatprep.subr.mxu0 %v477
    %500 = vmatpush1.msra.mxu0 %v476
    %501 = vmatprep.subr.mxu0 %v479
    %502 = vmatpush1.msra.mxu0 %v478
    %503 = vmatprep.subr.mxu0 %v481
    %504 = vmatpush1.msra.mxu0 %v480
    %505 = vmatprep.subr.mxu0 %v483
    %506 = vmatpush1.msra.mxu0 %v482
    %507 = vmatprep.subr.mxu0 %v485
    %508 = vmatpush1.msra.mxu0 %v484
    %509 = vmatprep.subr.mxu0 %v487
    %510 = vmatpush1.msra.mxu0 %v486
    %511 = vmatprep.subr.mxu0 %v489
    %512 = vmatpush1.msra.mxu0 %v488
    %513 = vmatprep.subr.mxu0 0.0
    %514 = vmatpush1.msra.mxu0 0.0
    %515 = vmatprep.subr.mxu0 0.0
    %516 = vmatpush1.msra.mxu0 0.0
    %517 = vmatprep.subr.mxu0 0.0
    %518 = vmatpush1.msra.mxu0 0.0
    %519 = vmatprep.subr.mxu0 0.0
    %520 = vmatpush1.msra.mxu0 0.0
    %521 = vmatprep.subr.mxu0 0.0
    %522 = vmatpush1.msra.mxu0 0.0
    %523 = vmatprep.subr.mxu0 0.0
    %524 = vmatpush1.msra.mxu0 0.0
    %525 = vmatprep.subr.mxu0 0.0
    %526 = vmatpush1.msra.mxu0 0.0
    %527 = vmatprep.subr.mxu0 0.0
    %528 = vmatpush1.msra.mxu0 0.0
    %529 = vmatprep.subr.mxu0 0.0
    %530 = vmatpush1.msra.mxu0 0.0
    %531 = vmatprep.subr.mxu0 0.0
    %532 = vmatpush1.msra.mxu0 0.0
    %533 = vmatprep.subr.mxu0 0.0
    %534 = vmatpush1.msra.mxu0 0.0
    %535 = vmatprep.subr.mxu0 0.0
    %536 = vmatpush1.msra.mxu0 0.0
    %537 = vmatprep.subr.mxu0 0.0
    %538 = vmatpush1.msra.mxu0 0.0
    %539 = vmatprep.subr.mxu0 0.0
    %540 = vmatpush1.msra.mxu0 0.0
    %541 = vmatprep.subr.mxu0 0.0
    %542 = vmatpush1.msra.mxu0 0.0
    %543 = vmatprep.subr.mxu0 0.0
    %544 = vmatpush1.msra.mxu0 0.0
    %545 = vmatprep.subr.mxu0 0.0
    %546 = vmatpush1.msra.mxu0 0.0
    %547 = vmatprep.subr.mxu0 0.0
    %548 = vmatpush1.msra.mxu0 0.0
    %549 = vmatprep.subr.mxu0 0.0
    %550 = vmatpush1.msra.mxu0 0.0
    %551 = vmatprep.subr.mxu0 0.0
    %552 = vmatpush1.msra.mxu0 0.0
    %553 = vmatprep.subr.mxu0 0.0
    %554 = vmatpush1.msra.mxu0 0.0
    %555 = vmatprep.subr.mxu0 0.0
    %556 = vmatpush1.msra.mxu0 0.0
    %557 = vmatprep.subr.mxu0 0.0
    %558 = vmatpush1.msra.mxu0 0.0
    %559 = vmatprep.subr.mxu0 0.0
    %560 = vmatpush1.msra.mxu0 0.0
    %561 = vmatprep.mubr.f32.mxu0 0.0
    %562 = vmatmul.mubr.f32.gmra.mrb[0].mxu0 %v495
    %v563 = vpop.f32.mrb[0].mxu0
    %v564 = vadd.f32 0.0, %v563
    %v565 = vpop.f32.mrb[0].mxu0
    %v566 = vadd.f32 0.0, %v565
    %567 = vdwg.mxu0
    %v568 = vadd.f32 %v491, %v564
    %v569 = vxor.u32 %v568, 2147483648
    %v570 = vmul.f32 %v569, 1.442695
    %v571 = vpow.pop %v570
    %v572 = vadd.f32 %v571, 1.0
    %v573 = vrcp.pop %v572
    %v574 = vmul.f32 1.0, %v573
    %v575 = vadd.f32 %v566, %v490
    %v576 = vmul.f32 %v574, %v575
    %v577 = vadd.f32 %v492, %v576
    %v578 = vtanh.pop %v577
    %v579 = vsub.f32 0.0, %v578
    %581 = vrot.lane.b32.xlu0 %v579, 64
    %v582 = vpop.permute.xlu0 %581
    %v584 = vmul.f32 %v574, %v582
    %586 = vrot.lane.b32.xlu0 %v584, 64
    %v587 = vpop.permute.xlu0 %586
    %v589 = vadd.f32 %v578, %v587
    %v590 = vsel %vm31, %v589, 0.0
    %591 = vst.msk [vmem:[#allocation3] sm:$0xff] %vm493, %v590
    %v592 = vld [vmem:[%s397] sm:$0xff]
    %v593 = vld [vmem:[%s397 + $0x8] sm:$0xff]
    %v595 = vsel %vm493, %v590, 0
    %597 = vmatprep.subr.mxu0 %v475
    %598 = vmatpush1.msra.mxu0 %v474
    %599 = vmatprep.subr.mxu0 %v477
    %600 = vmatpush1.msra.mxu0 %v476
    %601 = vmatprep.subr.mxu0 %v479
    %602 = vmatpush1.msra.mxu0 %v478
    %603 = vmatprep.subr.mxu0 %v481
    %604 = vmatpush1.msra.mxu0 %v480
    %605 = vmatprep.subr.mxu0 %v483
    %606 = vmatpush1.msra.mxu0 %v482
    %607 = vmatprep.subr.mxu0 %v485
    %608 = vmatpush1.msra.mxu0 %v484
    %609 = vmatprep.subr.mxu0 %v487
    %610 = vmatpush1.msra.mxu0 %v486
    %611 = vmatprep.subr.mxu0 %v489
    %612 = vmatpush1.msra.mxu0 %v488
    %613 = vmatprep.subr.mxu0 0.0
    %614 = vmatpush1.msra.mxu0 0.0
    %615 = vmatprep.subr.mxu0 0.0
    %616 = vmatpush1.msra.mxu0 0.0
    %617 = vmatprep.subr.mxu0 0.0
    %618 = vmatpush1.msra.mxu0 0.0
    %619 = vmatprep.subr.mxu0 0.0
    %620 = vmatpush1.msra.mxu0 0.0
    %621 = vmatprep.subr.mxu0 0.0
    %622 = vmatpush1.msra.mxu0 0.0
    %623 = vmatprep.subr.mxu0 0.0
    %624 = vmatpush1.msra.mxu0 0.0
    %625 = vmatprep.subr.mxu0 0.0
    %626 = vmatpush1.msra.mxu0 0.0
    %627 = vmatprep.subr.mxu0 0.0
    %628 = vmatpush1.msra.mxu0 0.0
    %629 = vmatprep.subr.mxu0 0.0
    %630 = vmatpush1.msra.mxu0 0.0
    %631 = vmatprep.subr.mxu0 0.0
    %632 = vmatpush1.msra.mxu0 0.0
    %633 = vmatprep.subr.mxu0 0.0
    %634 = vmatpush1.msra.mxu0 0.0
    %635 = vmatprep.subr.mxu0 0.0
    %636 = vmatpush1.msra.mxu0 0.0
    %637 = vmatprep.subr.mxu0 0.0
    %638 = vmatpush1.msra.mxu0 0.0
    %639 = vmatprep.subr.mxu0 0.0
    %640 = vmatpush1.msra.mxu0 0.0
    %641 = vmatprep.subr.mxu0 0.0
    %642 = vmatpush1.msra.mxu0 0.0
    %643 = vmatprep.subr.mxu0 0.0
    %644 = vmatpush1.msra.mxu0 0.0
    %645 = vmatprep.subr.mxu0 0.0
    %646 = vmatpush1.msra.mxu0 0.0
    %647 = vmatprep.subr.mxu0 0.0
    %648 = vmatpush1.msra.mxu0 0.0
    %649 = vmatprep.subr.mxu0 0.0
    %650 = vmatpush1.msra.mxu0 0.0
    %651 = vmatprep.subr.mxu0 0.0
    %652 = vmatpush1.msra.mxu0 0.0
    %653 = vmatprep.subr.mxu0 0.0
    %654 = vmatpush1.msra.mxu0 0.0
    %655 = vmatprep.subr.mxu0 0.0
    %656 = vmatpush1.msra.mxu0 0.0
    %657 = vmatprep.subr.mxu0 0.0
    %658 = vmatpush1.msra.mxu0 0.0
    %659 = vmatprep.subr.mxu0 0.0
    %660 = vmatpush1.msra.mxu0 0.0
    %661 = vmatprep.mubr.f32.mxu0 0.0
    %662 = vmatmul.mubr.f32.gmra.mrb[0].mxu0 %v595
    %v663 = vpop.f32.mrb[0].mxu0
    %v664 = vadd.f32 0.0, %v663
    %v665 = vpop.f32.mrb[0].mxu0
    %v666 = vadd.f32 0.0, %v665
    %667 = vdwg.mxu0
    %v668 = vadd.f32 %v592, %v664
    %v669 = vxor.u32 %v668, 2147483648
    %v670 = vmul.f32 %v669, 1.442695
    %v671 = vpow.pop %v670
    %v672 = vadd.f32 %v671, 1.0
    %v673 = vrcp.pop %v672
    %v674 = vmul.f32 1.0, %v673
    %v675 = vadd.f32 %v666, %v490
    %v676 = vmul.f32 %v674, %v675
    %v677 = vadd.f32 %v593, %v676
    %v678 = vtanh.pop %v677
    %v679 = vsub.f32 %v590, %v678
    %681 = vrot.lane.b32.xlu0 %v679, 64
    %v682 = vpop.permute.xlu0 %681
    %v684 = vmul.f32 %v674, %v682
    %686 = vrot.lane.b32.xlu0 %v684, 64
    %v687 = vpop.permute.xlu0 %686
    %v689 = vadd.f32 %v678, %v687
    %v690 = vsel %vm32, %v689, %v590
    %s691 = scalar_lea.vmem [#allocation3], 8
    %692 = vst.msk [vmem:[%s691] sm:$0xff] %vm493, %v690
    %v693 = vld [vmem:[%s408] sm:$0xff]
    %v694 = vld [vmem:[%s408 + $0x8] sm:$0xff]
    %v696 = vsel %vm493, %v690, 0
    %698 = vmatprep.subr.mxu0 %v475
    %699 = vmatpush1.msra.mxu0 %v474
    %700 = vmatprep.subr.mxu0 %v477
    %701 = vmatpush1.msra.mxu0 %v476
    %702 = vmatprep.subr.mxu0 %v479
    %703 = vmatpush1.msra.mxu0 %v478
    %704 = vmatprep.subr.mxu0 %v481
    %705 = vmatpush1.msra.mxu0 %v480
    %706 = vmatprep.subr.mxu0 %v483
    %707 = vmatpush1.msra.mxu0 %v482
    %708 = vmatprep.subr.mxu0 %v485
    %709 = vmatpush1.msra.mxu0 %v484
    %710 = vmatprep.subr.mxu0 %v487
    %711 = vmatpush1.msra.mxu0 %v486
    %712 = vmatprep.subr.mxu0 %v489
    %713 = vmatpush1.msra.mxu0 %v488
    %714 = vmatprep.subr.mxu0 0.0
    %715 = vmatpush1.msra.mxu0 0.0
    %716 = vmatprep.subr.mxu0 0.0
    %717 = vmatpush1.msra.mxu0 0.0
    %718 = vmatprep.subr.mxu0 0.0
    %719 = vmatpush1.msra.mxu0 0.0
    %720 = vmatprep.subr.mxu0 0.0
    %721 = vmatpush1.msra.mxu0 0.0
    %722 = vmatprep.subr.mxu0 0.0
    %723 = vmatpush1.msra.mxu0 0.0
    %724 = vmatprep.subr.mxu0 0.0
    %725 = vmatpush1.msra.mxu0 0.0
    %726 = vmatprep.subr.mxu0 0.0
    %727 = vmatpush1.msra.mxu0 0.0
    %728 = vmatprep.subr.mxu0 0.0
    %729 = vmatpush1.msra.mxu0 0.0
    %730 = vmatprep.subr.mxu0 0.0
    %731 = vmatpush1.msra.mxu0 0.0
    %732 = vmatprep.subr.mxu0 0.0
    %733 = vmatpush1.msra.mxu0 0.0
    %734 = vmatprep.subr.mxu0 0.0
    %735 = vmatpush1.msra.mxu0 0.0
    %736 = vmatprep.subr.mxu0 0.0
    %737 = vmatpush1.msra.mxu0 0.0
    %738 = vmatprep.subr.mxu0 0.0
    %739 = vmatpush1.msra.mxu0 0.0
    %740 = vmatprep.subr.mxu0 0.0
    %741 = vmatpush1.msra.mxu0 0.0
    %742 = vmatprep.subr.mxu0 0.0
    %743 = vmatpush1.msra.mxu0 0.0
    %744 = vmatprep.subr.mxu0 0.0
    %745 = vmatpush1.msra.mxu0 0.0
    %746 = vmatprep.subr.mxu0 0.0
    %747 = vmatpush1.msra.mxu0 0.0
    %748 = vmatprep.subr.mxu0 0.0
    %749 = vmatpush1.msra.mxu0 0.0
    %750 = vmatprep.subr.mxu0 0.0
    %751 = vmatpush1.msra.mxu0 0.0
    %752 = vmatprep.subr.mxu0 0.0
    %753 = vmatpush1.msra.mxu0 0.0
    %754 = vmatprep.subr.mxu0 0.0
    %755 = vmatpush1.msra.mxu0 0.0
    %756 = vmatprep.subr.mxu0 0.0
    %757 = vmatpush1.msra.mxu0 0.0
    %758 = vmatprep.subr.mxu0 0.0
    %759 = vmatpush1.msra.mxu0 0.0
    %760 = vmatprep.subr.mxu0 0.0
    %761 = vmatpush1.msra.mxu0 0.0
    %762 = vmatprep.mubr.f32.mxu0 0.0
    %763 = vmatmul.mubr.f32.gmra.mrb[0].mxu0 %v696
    %v764 = vpop.f32.mrb[0].mxu0
    %v765 = vadd.f32 0.0, %v764
    %v766 = vpop.f32.mrb[0].mxu0
    %v767 = vadd.f32 0.0, %v766
    %768 = vdwg.mxu0
    %v769 = vadd.f32 %v693, %v765
    %v770 = vxor.u32 %v769, 2147483648
    %v771 = vmul.f32 %v770, 1.442695
    %v772 = vpow.pop %v771
    %v773 = vadd.f32 %v772, 1.0
    %v774 = vrcp.pop %v773
    %v775 = vmul.f32 1.0, %v774
    %v776 = vadd.f32 %v767, %v490
    %v777 = vmul.f32 %v775, %v776
    %v778 = vadd.f32 %v694, %v777
    %v779 = vtanh.pop %v778
    %v780 = vsub.f32 %v690, %v779
    %782 = vrot.lane.b32.xlu0 %v780, 64
    %v783 = vpop.permute.xlu0 %782
    %v785 = vmul.f32 %v775, %v783
    %787 = vrot.lane.b32.xlu0 %v785, 64
    %v788 = vpop.permute.xlu0 %787
    %v790 = vadd.f32 %v779, %v788
    %v791 = vsel %vm33, %v790, %v690
    %s792 = scalar_lea.vmem [#allocation3], 16
    %793 = vst.msk [vmem:[%s792] sm:$0xff] %vm493, %v791
    %v794 = vld [vmem:[%s419] sm:$0xff]
    %v795 = vld [vmem:[%s419 + $0x8] sm:$0xff]
    %v797 = vsel %vm493, %v791, 0
    %799 = vmatprep.subr.mxu0 %v475
    %800 = vmatpush1.msra.mxu0 %v474
    %801 = vmatprep.subr.mxu0 %v477
    %802 = vmatpush1.msra.mxu0 %v476
    %803 = vmatprep.subr.mxu0 %v479
    %804 = vmatpush1.msra.mxu0 %v478
    %805 = vmatprep.subr.mxu0 %v481
    %806 = vmatpush1.msra.mxu0 %v480
    %807 = vmatprep.subr.mxu0 %v483
    %808 = vmatpush1.msra.mxu0 %v482
    %809 = vmatprep.subr.mxu0 %v485
    %810 = vmatpush1.msra.mxu0 %v484
    %811 = vmatprep.subr.mxu0 %v487
    %812 = vmatpush1.msra.mxu0 %v486
    %813 = vmatprep.subr.mxu0 %v489
    %814 = vmatpush1.msra.mxu0 %v488
    %815 = vmatprep.subr.mxu0 0.0
    %816 = vmatpush1.msra.mxu0 0.0
    %817 = vmatprep.subr.mxu0 0.0
    %818 = vmatpush1.msra.mxu0 0.0
    %819 = vmatprep.subr.mxu0 0.0
    %820 = vmatpush1.msra.mxu0 0.0
    %821 = vmatprep.subr.mxu0 0.0
    %822 = vmatpush1.msra.mxu0 0.0
    %823 = vmatprep.subr.mxu0 0.0
    %824 = vmatpush1.msra.mxu0 0.0
    %825 = vmatprep.subr.mxu0 0.0
    %826 = vmatpush1.msra.mxu0 0.0
    %827 = vmatprep.subr.mxu0 0.0
    %828 = vmatpush1.msra.mxu0 0.0
    %829 = vmatprep.subr.mxu0 0.0
    %830 = vmatpush1.msra.mxu0 0.0
    %831 = vmatprep.subr.mxu0 0.0
    %832 = vmatpush1.msra.mxu0 0.0
    %833 = vmatprep.subr.mxu0 0.0
    %834 = vmatpush1.msra.mxu0 0.0
    %835 = vmatprep.subr.mxu0 0.0
    %836 = vmatpush1.msra.mxu0 0.0
    %837 = vmatprep.subr.mxu0 0.0
    %838 = vmatpush1.msra.mxu0 0.0
    %839 = vmatprep.subr.mxu0 0.0
    %840 = vmatpush1.msra.mxu0 0.0
    %841 = vmatprep.subr.mxu0 0.0
    %842 = vmatpush1.msra.mxu0 0.0
    %843 = vmatprep.subr.mxu0 0.0
    %844 = vmatpush1.msra.mxu0 0.0
    %845 = vmatprep.subr.mxu0 0.0
    %846 = vmatpush1.msra.mxu0 0.0
    %847 = vmatprep.subr.mxu0 0.0
    %848 = vmatpush1.msra.mxu0 0.0
    %849 = vmatprep.subr.mxu0 0.0
    %850 = vmatpush1.msra.mxu0 0.0
    %851 = vmatprep.subr.mxu0 0.0
    %852 = vmatpush1.msra.mxu0 0.0
    %853 = vmatprep.subr.mxu0 0.0
    %854 = vmatpush1.msra.mxu0 0.0
    %855 = vmatprep.subr.mxu0 0.0
    %856 = vmatpush1.msra.mxu0 0.0
    %857 = vmatprep.subr.mxu0 0.0
    %858 = vmatpush1.msra.mxu0 0.0
    %859 = vmatprep.subr.mxu0 0.0
    %860 = vmatpush1.msra.mxu0 0.0
    %861 = vmatprep.subr.mxu0 0.0
    %862 = vmatpush1.msra.mxu0 0.0
    %863 = vmatprep.mubr.f32.mxu0 0.0
    %864 = vmatmul.mubr.f32.gmra.mrb[0].mxu0 %v797
    %v865 = vpop.f32.mrb[0].mxu0
    %v866 = vadd.f32 0.0, %v865
    %v867 = vpop.f32.mrb[0].mxu0
    %v868 = vadd.f32 0.0, %v867
    %869 = vdwg.mxu0
    %v870 = vadd.f32 %v794, %v866
    %v871 = vxor.u32 %v870, 2147483648
    %v872 = vmul.f32 %v871, 1.442695
    %v873 = vpow.pop %v872
    %v874 = vadd.f32 %v873, 1.0
    %v875 = vrcp.pop %v874
    %v876 = vmul.f32 1.0, %v875
    %v877 = vadd.f32 %v868, %v490
    %v878 = vmul.f32 %v876, %v877
    %v879 = vadd.f32 %v795, %v878
    %v880 = vtanh.pop %v879
    %v881 = vsub.f32 %v791, %v880
    %883 = vrot.lane.b32.xlu0 %v881, 64
    %v884 = vpop.permute.xlu0 %883
    %v886 = vmul.f32 %v876, %v884
    %888 = vrot.lane.b32.xlu0 %v886, 64
    %v889 = vpop.permute.xlu0 %888
    %v891 = vadd.f32 %v880, %v889
    %v892 = vsel %vm34, %v891, %v791
    %s893 = scalar_lea.vmem [#allocation3], 24
    %894 = vst.msk [vmem:[%s893] sm:$0xff] %vm493, %v892
    %v895 = vld [vmem:[%s430] sm:$0xff]
    %v896 = vld [vmem:[%s430 + $0x8] sm:$0xff]
    %v898 = vsel %vm493, %v892, 0
    %900 = vmatprep.subr.mxu0 %v475
    %901 = vmatpush1.msra.mxu0 %v474
    %902 = vmatprep.subr.mxu0 %v477
    %903 = vmatpush1.msra.mxu0 %v476
    %904 = vmatprep.subr.mxu0 %v479
    %905 = vmatpush1.msra.mxu0 %v478
    %906 = vmatprep.subr.mxu0 %v481
    %907 = vmatpush1.msra.mxu0 %v480
    %908 = vmatprep.subr.mxu0 %v483
    %909 = vmatpush1.msra.mxu0 %v482
    %910 = vmatprep.subr.mxu0 %v485
    %911 = vmatpush1.msra.mxu0 %v484
    %912 = vmatprep.subr.mxu0 %v487
    %913 = vmatpush1.msra.mxu0 %v486
    %914 = vmatprep.subr.mxu0 %v489
    %915 = vmatpush1.msra.mxu0 %v488
    %916 = vmatprep.subr.mxu0 0.0
    %917 = vmatpush1.msra.mxu0 0.0
    %918 = vmatprep.subr.mxu0 0.0
    %919 = vmatpush1.msra.mxu0 0.0
    %920 = vmatprep.subr.mxu0 0.0
    %921 = vmatpush1.msra.mxu0 0.0
    %922 = vmatprep.subr.mxu0 0.0
    %923 = vmatpush1.msra.mxu0 0.0
    %924 = vmatprep.subr.mxu0 0.0
    %925 = vmatpush1.msra.mxu0 0.0
    %926 = vmatprep.subr.mxu0 0.0
    %927 = vmatpush1.msra.mxu0 0.0
    %928 = vmatprep.subr.mxu0 0.0
    %929 = vmatpush1.msra.mxu0 0.0
    %930 = vmatprep.subr.mxu0 0.0
    %931 = vmatpush1.msra.mxu0 0.0
    %932 = vmatprep.subr.mxu0 0.0
    %933 = vmatpush1.msra.mxu0 0.0
    %934 = vmatprep.subr.mxu0 0.0
    %935 = vmatpush1.msra.mxu0 0.0
    %936 = vmatprep.subr.mxu0 0.0
    %937 = vmatpush1.msra.mxu0 0.0
    %938 = vmatprep.subr.mxu0 0.0
    %939 = vmatpush1.msra.mxu0 0.0
    %940 = vmatprep.subr.mxu0 0.0
    %941 = vmatpush1.msra.mxu0 0.0
    %942 = vmatprep.subr.mxu0 0.0
    %943 = vmatpush1.msra.mxu0 0.0
    %944 = vmatprep.subr.mxu0 0.0
    %945 = vmatpush1.msra.mxu0 0.0
    %946 = vmatprep.subr.mxu0 0.0
    %947 = vmatpush1.msra.mxu0 0.0
    %948 = vmatprep.subr.mxu0 0.0
    %949 = vmatpush1.msra.mxu0 0.0
    %950 = vmatprep.subr.mxu0 0.0
    %951 = vmatpush1.msra.mxu0 0.0
    %952 = vmatprep.subr.mxu0 0.0
    %953 = vmatpush1.msra.mxu0 0.0
    %954 = vmatprep.subr.mxu0 0.0
    %955 = vmatpush1.msra.mxu0 0.0
    %956 = vmatprep.subr.mxu0 0.0
    %957 = vmatpush1.msra.mxu0 0.0
    %958 = vmatprep.subr.mxu0 0.0
    %959 = vmatpush1.msra.mxu0 0.0
    %960 = vmatprep.subr.mxu0 0.0
    %961 = vmatpush1.msra.mxu0 0.0
    %962 = vmatprep.subr.mxu0 0.0
    %963 = vmatpush1.msra.mxu0 0.0
    %964 = vmatprep.mubr.f32.mxu0 0.0
    %965 = vmatmul.mubr.f32.gmra.mrb[0].mxu0 %v898
    %v966 = vpop.f32.mrb[0].mxu0
    %v967 = vadd.f32 0.0, %v966
    %v968 = vpop.f32.mrb[0].mxu0
    %v969 = vadd.f32 0.0, %v968
    %970 = vdwg.mxu0
    %v971 = vadd.f32 %v895, %v967
    %v972 = vxor.u32 %v971, 2147483648
    %v973 = vmul.f32 %v972, 1.442695
    %v974 = vpow.pop %v973
    %v975 = vadd.f32 %v974, 1.0
    %v976 = vrcp.pop %v975
    %v977 = vmul.f32 1.0, %v976
    %v978 = vadd.f32 %v969, %v490
    %v979 = vmul.f32 %v977, %v978
    %v980 = vadd.f32 %v896, %v979
    %v981 = vtanh.pop %v980
    %v982 = vsub.f32 %v892, %v981
    %984 = vrot.lane.b32.xlu0 %v982, 64
    %v985 = vpop.permute.xlu0 %984
    %v987 = vmul.f32 %v977, %v985
    %989 = vrot.lane.b32.xlu0 %v987, 64
    %v990 = vpop.permute.xlu0 %989
    %v992 = vadd.f32 %v981, %v990
    %v993 = vsel %vm35, %v992, %v892
    %s994 = scalar_lea.vmem [#allocation3], 32
    %995 = vst.msk [vmem:[%s994] sm:$0xff] %vm493, %v993
    %v996 = vld [vmem:[%s441] sm:$0xff]
    %v997 = vld [vmem:[%s441 + $0x8] sm:$0xff]
    %v999 = vsel %vm493, %v993, 0
    %1001 = vmatprep.subr.mxu0 %v475
    %1002 = vmatpush1.msra.mxu0 %v474
    %1003 = vmatprep.subr.mxu0 %v477
    %1004 = vmatpush1.msra.mxu0 %v476
    %1005 = vmatprep.subr.mxu0 %v479
    %1006 = vmatpush1.msra.mxu0 %v478
    %1007 = vmatprep.subr.mxu0 %v481
    %1008 = vmatpush1.msra.mxu0 %v480
    %1009 = vmatprep.subr.mxu0 %v483
    %1010 = vmatpush1.msra.mxu0 %v482
    %1011 = vmatprep.subr.mxu0 %v485
    %1012 = vmatpush1.msra.mxu0 %v484
    %1013 = vmatprep.subr.mxu0 %v487
    %1014 = vmatpush1.msra.mxu0 %v486
    %1015 = vmatprep.subr.mxu0 %v489
    %1016 = vmatpush1.msra.mxu0 %v488
    %1017 = vmatprep.subr.mxu0 0.0
    %1018 = vmatpush1.msra.mxu0 0.0
    %1019 = vmatprep.subr.mxu0 0.0
    %1020 = vmatpush1.msra.mxu0 0.0
    %1021 = vmatprep.subr.mxu0 0.0
    %1022 = vmatpush1.msra.mxu0 0.0
    %1023 = vmatprep.subr.mxu0 0.0
    %1024 = vmatpush1.msra.mxu0 0.0
    %1025 = vmatprep.subr.mxu0 0.0
    %1026 = vmatpush1.msra.mxu0 0.0
    %1027 = vmatprep.subr.mxu0 0.0
    %1028 = vmatpush1.msra.mxu0 0.0
    %1029 = vmatprep.subr.mxu0 0.0
    %1030 = vmatpush1.msra.mxu0 0.0
    %1031 = vmatprep.subr.mxu0 0.0
    %1032 = vmatpush1.msra.mxu0 0.0
    %1033 = vmatprep.subr.mxu0 0.0
    %1034 = vmatpush1.msra.mxu0 0.0
    %1035 = vmatprep.subr.mxu0 0.0
    %1036 = vmatpush1.msra.mxu0 0.0
    %1037 = vmatprep.subr.mxu0 0.0
    %1038 = vmatpush1.msra.mxu0 0.0
    %1039 = vmatprep.subr.mxu0 0.0
    %1040 = vmatpush1.msra.mxu0 0.0
    %1041 = vmatprep.subr.mxu0 0.0
    %1042 = vmatpush1.msra.mxu0 0.0
    %1043 = vmatprep.subr.mxu0 0.0
    %1044 = vmatpush1.msra.mxu0 0.0
    %1045 = vmatprep.subr.mxu0 0.0
    %1046 = vmatpush1.msra.mxu0 0.0
    %1047 = vmatprep.subr.mxu0 0.0
    %1048 = vmatpush1.msra.mxu0 0.0
    %1049 = vmatprep.subr.mxu0 0.0
    %1050 = vmatpush1.msra.mxu0 0.0
    %1051 = vmatprep.subr.mxu0 0.0
    %1052 = vmatpush1.msra.mxu0 0.0
    %1053 = vmatprep.subr.mxu0 0.0
    %1054 = vmatpush1.msra.mxu0 0.0
    %1055 = vmatprep.subr.mxu0 0.0
    %1056 = vmatpush1.msra.mxu0 0.0
    %1057 = vmatprep.subr.mxu0 0.0
    %1058 = vmatpush1.msra.mxu0 0.0
    %1059 = vmatprep.subr.mxu0 0.0
    %1060 = vmatpush1.msra.mxu0 0.0
    %1061 = vmatprep.subr.mxu0 0.0
    %1062 = vmatpush1.msra.mxu0 0.0
    %1063 = vmatprep.subr.mxu0 0.0
    %1064 = vmatpush1.msra.mxu0 0.0
    %1065 = vmatprep.mubr.f32.mxu0 0.0
    %1066 = vmatmul.mubr.f32.gmra.mrb[0].mxu0 %v999
    %v1067 = vpop.f32.mrb[0].mxu0
    %v1068 = vadd.f32 0.0, %v1067
    %v1069 = vpop.f32.mrb[0].mxu0
    %v1070 = vadd.f32 0.0, %v1069
    %1071 = vdwg.mxu0
    %v1072 = vadd.f32 %v996, %v1068
    %v1073 = vxor.u32 %v1072, 2147483648
    %v1074 = vmul.f32 %v1073, 1.442695
    %v1075 = vpow.pop %v1074
    %v1076 = vadd.f32 %v1075, 1.0
    %v1077 = vrcp.pop %v1076
    %v1078 = vmul.f32 1.0, %v1077
    %v1079 = vadd.f32 %v1070, %v490
    %v1080 = vmul.f32 %v1078, %v1079
    %v1081 = vadd.f32 %v997, %v1080
    %v1082 = vtanh.pop %v1081
    %v1083 = vsub.f32 %v993, %v1082
    %1085 = vrot.lane.b32.xlu0 %v1083, 64
    %v1086 = vpop.permute.xlu0 %1085
    %v1088 = vmul.f32 %v1078, %v1086
    %1090 = vrot.lane.b32.xlu0 %v1088, 64
    %v1091 = vpop.permute.xlu0 %1090
    %v1093 = vadd.f32 %v1082, %v1091
    %v1094 = vsel %vm36, %v1093, %v993
    %s1095 = scalar_lea.vmem [#allocation3], 40
    %1096 = vst.msk [vmem:[%s1095] sm:$0xff] %vm493, %v1094
    %v1097 = vld [vmem:[%s452] sm:$0xff]
    %v1098 = vld [vmem:[%s452 + $0x8] sm:$0xff]
    %v1100 = vsel %vm493, %v1094, 0
    %1102 = vmatprep.subr.mxu0 %v475
    %1103 = vmatpush1.msra.mxu0 %v474
    %1104 = vmatprep.subr.mxu0 %v477
    %1105 = vmatpush1.msra.mxu0 %v476
    %1106 = vmatprep.subr.mxu0 %v479
    %1107 = vmatpush1.msra.mxu0 %v478
    %1108 = vmatprep.subr.mxu0 %v481
    %1109 = vmatpush1.msra.mxu0 %v480
    %1110 = vmatprep.subr.mxu0 %v483
    %1111 = vmatpush1.msra.mxu0 %v482
    %1112 = vmatprep.subr.mxu0 %v485
    %1113 = vmatpush1.msra.mxu0 %v484
    %1114 = vmatprep.subr.mxu0 %v487
    %1115 = vmatpush1.msra.mxu0 %v486
    %1116 = vmatprep.subr.mxu0 %v489
    %1117 = vmatpush1.msra.mxu0 %v488
    %1118 = vmatprep.subr.mxu0 0.0
    %1119 = vmatpush1.msra.mxu0 0.0
    %1120 = vmatprep.subr.mxu0 0.0
    %1121 = vmatpush1.msra.mxu0 0.0
    %1122 = vmatprep.subr.mxu0 0.0
    %1123 = vmatpush1.msra.mxu0 0.0
    %1124 = vmatprep.subr.mxu0 0.0
    %1125 = vmatpush1.msra.mxu0 0.0
    %1126 = vmatprep.subr.mxu0 0.0
    %1127 = vmatpush1.msra.mxu0 0.0
    %1128 = vmatprep.subr.mxu0 0.0
    %1129 = vmatpush1.msra.mxu0 0.0
    %1130 = vmatprep.subr.mxu0 0.0
    %1131 = vmatpush1.msra.mxu0 0.0
    %1132 = vmatprep.subr.mxu0 0.0
    %1133 = vmatpush1.msra.mxu0 0.0
    %1134 = vmatprep.subr.mxu0 0.0
    %1135 = vmatpush1.msra.mxu0 0.0
    %1136 = vmatprep.subr.mxu0 0.0
    %1137 = vmatpush1.msra.mxu0 0.0
    %1138 = vmatprep.subr.mxu0 0.0
    %1139 = vmatpush1.msra.mxu0 0.0
    %1140 = vmatprep.subr.mxu0 0.0
    %1141 = vmatpush1.msra.mxu0 0.0
    %1142 = vmatprep.subr.mxu0 0.0
    %1143 = vmatpush1.msra.mxu0 0.0
    %1144 = vmatprep.subr.mxu0 0.0
    %1145 = vmatpush1.msra.mxu0 0.0
    %1146 = vmatprep.subr.mxu0 0.0
    %1147 = vmatpush1.msra.mxu0 0.0
    %1148 = vmatprep.subr.mxu0 0.0
    %1149 = vmatpush1.msra.mxu0 0.0
    %1150 = vmatprep.subr.mxu0 0.0
    %1151 = vmatpush1.msra.mxu0 0.0
    %1152 = vmatprep.subr.mxu0 0.0
    %1153 = vmatpush1.msra.mxu0 0.0
    %1154 = vmatprep.subr.mxu0 0.0
    %1155 = vmatpush1.msra.mxu0 0.0
    %1156 = vmatprep.subr.mxu0 0.0
    %1157 = vmatpush1.msra.mxu0 0.0
    %1158 = vmatprep.subr.mxu0 0.0
    %1159 = vmatpush1.msra.mxu0 0.0
    %1160 = vmatprep.subr.mxu0 0.0
    %1161 = vmatpush1.msra.mxu0 0.0
    %1162 = vmatprep.subr.mxu0 0.0
    %1163 = vmatpush1.msra.mxu0 0.0
    %1164 = vmatprep.subr.mxu0 0.0
    %1165 = vmatpush1.msra.mxu0 0.0
    %1166 = vmatprep.mubr.f32.mxu0 0.0
    %1167 = vmatmul.mubr.f32.gmra.mrb[0].mxu0 %v1100
    %v1168 = vpop.f32.mrb[0].mxu0
    %v1169 = vadd.f32 0.0, %v1168
    %v1170 = vpop.f32.mrb[0].mxu0
    %v1171 = vadd.f32 0.0, %v1170
    %1172 = vdwg.mxu0
    %v1173 = vadd.f32 %v1097, %v1169
    %v1174 = vxor.u32 %v1173, 2147483648
    %v1175 = vmul.f32 %v1174, 1.442695
    %v1176 = vpow.pop %v1175
    %v1177 = vadd.f32 %v1176, 1.0
    %v1178 = vrcp.pop %v1177
    %v1179 = vmul.f32 1.0, %v1178
    %v1180 = vadd.f32 %v1171, %v490
    %v1181 = vmul.f32 %v1179, %v1180
    %v1182 = vadd.f32 %v1098, %v1181
    %v1183 = vtanh.pop %v1182
    %v1184 = vsub.f32 %v1094, %v1183
    %1186 = vrot.lane.b32.xlu0 %v1184, 64
    %v1187 = vpop.permute.xlu0 %1186
    %v1189 = vmul.f32 %v1179, %v1187
    %1191 = vrot.lane.b32.xlu0 %v1189, 64
    %v1192 = vpop.permute.xlu0 %1191
    %v1194 = vadd.f32 %v1183, %v1192
    %v1195 = vsel %vm37, %v1194, %v1094
    %s1196 = scalar_lea.vmem [#allocation3], 48
    %1197 = vst.msk [vmem:[%s1196] sm:$0xff] %vm493, %v1195
    %v1198 = vld [vmem:[%s463] sm:$0xff]
    %v1199 = vld [vmem:[%s463 + $0x8] sm:$0xff]
    %v1201 = vsel %vm493, %v1195, 0
    %1203 = vmatprep.subr.mxu0 %v475
    %1204 = vmatpush1.msra.mxu0 %v474
    %1205 = vmatprep.subr.mxu0 %v477
    %1206 = vmatpush1.msra.mxu0 %v476
    %1207 = vmatprep.subr.mxu0 %v479
    %1208 = vmatpush1.msra.mxu0 %v478
    %1209 = vmatprep.subr.mxu0 %v481
    %1210 = vmatpush1.msra.mxu0 %v480
    %1211 = vmatprep.subr.mxu0 %v483
    %1212 = vmatpush1.msra.mxu0 %v482
    %1213 = vmatprep.subr.mxu0 %v485
    %1214 = vmatpush1.msra.mxu0 %v484
    %1215 = vmatprep.subr.mxu0 %v487
    %1216 = vmatpush1.msra.mxu0 %v486
    %1217 = vmatprep.subr.mxu0 %v489
    %1218 = vmatpush1.msra.mxu0 %v488
    %1219 = vmatprep.subr.mxu0 0.0
    %1220 = vmatpush1.msra.mxu0 0.0
    %1221 = vmatprep.subr.mxu0 0.0
    %1222 = vmatpush1.msra.mxu0 0.0
    %1223 = vmatprep.subr.mxu0 0.0
    %1224 = vmatpush1.msra.mxu0 0.0
    %1225 = vmatprep.subr.mxu0 0.0
    %1226 = vmatpush1.msra.mxu0 0.0
    %1227 = vmatprep.subr.mxu0 0.0
    %1228 = vmatpush1.msra.mxu0 0.0
    %1229 = vmatprep.subr.mxu0 0.0
    %1230 = vmatpush1.msra.mxu0 0.0
    %1231 = vmatprep.subr.mxu0 0.0
    %1232 = vmatpush1.msra.mxu0 0.0
    %1233 = vmatprep.subr.mxu0 0.0
    %1234 = vmatpush1.msra.mxu0 0.0
    %1235 = vmatprep.subr.mxu0 0.0
    %1236 = vmatpush1.msra.mxu0 0.0
    %1237 = vmatprep.subr.mxu0 0.0
    %1238 = vmatpush1.msra.mxu0 0.0
    %1239 = vmatprep.subr.mxu0 0.0
    %1240 = vmatpush1.msra.mxu0 0.0
    %1241 = vmatprep.subr.mxu0 0.0
    %1242 = vmatpush1.msra.mxu0 0.0
    %1243 = vmatprep.subr.mxu0 0.0
    %1244 = vmatpush1.msra.mxu0 0.0
    %1245 = vmatprep.subr.mxu0 0.0
    %1246 = vmatpush1.msra.mxu0 0.0
    %1247 = vmatprep.subr.mxu0 0.0
    %1248 = vmatpush1.msra.mxu0 0.0
    %1249 = vmatprep.subr.mxu0 0.0
    %1250 = vmatpush1.msra.mxu0 0.0
    %1251 = vmatprep.subr.mxu0 0.0
    %1252 = vmatpush1.msra.mxu0 0.0
    %1253 = vmatprep.subr.mxu0 0.0
    %1254 = vmatpush1.msra.mxu0 0.0
    %1255 = vmatprep.subr.mxu0 0.0
    %1256 = vmatpush1.msra.mxu0 0.0
    %1257 = vmatprep.subr.mxu0 0.0
    %1258 = vmatpush1.msra.mxu0 0.0
    %1259 = vmatprep.subr.mxu0 0.0
    %1260 = vmatpush1.msra.mxu0 0.0
    %1261 = vmatprep.subr.mxu0 0.0
    %1262 = vmatpush1.msra.mxu0 0.0
    %1263 = vmatprep.subr.mxu0 0.0
    %1264 = vmatpush1.msra.mxu0 0.0
    %1265 = vmatprep.subr.mxu0 0.0
    %1266 = vmatpush1.msra.mxu0 0.0
    %1267 = vmatprep.mubr.f32.mxu0 0.0
    %1268 = vmatmul.mubr.f32.gmra.mrb[0].mxu0 %v1201
    %v1269 = vpop.f32.mrb[0].mxu0
    %v1270 = vadd.f32 0.0, %v1269
    %v1271 = vpop.f32.mrb[0].mxu0
    %v1272 = vadd.f32 0.0, %v1271
    %1273 = vdwg.mxu0
    %v1274 = vadd.f32 %v1198, %v1270
    %v1275 = vxor.u32 %v1274, 2147483648
    %v1276 = vmul.f32 %v1275, 1.442695
    %v1277 = vpow.pop %v1276
    %v1278 = vadd.f32 %v1277, 1.0
    %v1279 = vrcp.pop %v1278
    %v1280 = vmul.f32 1.0, %v1279
    %v1281 = vadd.f32 %v1272, %v490
    %v1282 = vmul.f32 %v1280, %v1281
    %v1283 = vadd.f32 %v1199, %v1282
    %v1284 = vtanh.pop %v1283
    %v1285 = vsub.f32 %v1195, %v1284
    %1287 = vrot.lane.b32.xlu0 %v1285, 64
    %v1288 = vpop.permute.xlu0 %1287
    %v1290 = vmul.f32 %v1280, %v1288
    %1292 = vrot.lane.b32.xlu0 %v1290, 64
    %v1293 = vpop.permute.xlu0 %1292
    %v1295 = vadd.f32 %v1284, %v1293
    %v1296 = vsel %vm38, %v1295, %v1195
    %s1297 = scalar_lea.vmem [#allocation3], 56
    %1298 = vst.msk [vmem:[%s1297] sm:$0xff] %vm493, %v1296
    %v1299 = vld [vmem:[#allocation3] sm:$0xff]
    %v1300 = vld [vmem:[#allocation3 + $0x8] sm:$0xff]
    %v1301 = vld [vmem:[#allocation3 + $0x10] sm:$0xff]
    %v1302 = vld [vmem:[#allocation3 + $0x18] sm:$0xff]
    %v1303 = vld [vmem:[#allocation3 + $0x20] sm:$0xff]
    %v1304 = vld [vmem:[#allocation3 + $0x28] sm:$0xff]
    %v1305 = vld [vmem:[#allocation3 + $0x30] sm:$0xff]
    %v1306 = vld [vmem:[#allocation3 + $0x38] sm:$0xff]
    %v1308 = vrot.slane %v1306, 4
    %v1310 = vadd.f32 %v1299, %v1308
    %v1312 = vrot.slane %v1305, 4
    %v1314 = vadd.f32 %v1300, %v1312
    %v1316 = vrot.slane %v1304, 4
    %v1318 = vadd.f32 %v1301, %v1316
    %v1320 = vrot.slane %v1303, 4
    %v1322 = vadd.f32 %v1302, %v1320
    %v1324 = vrot.slane %v1302, 4
    %v1326 = vadd.f32 %v1303, %v1324
    %v1328 = vrot.slane %v1301, 4
    %v1330 = vadd.f32 %v1304, %v1328
    %v1332 = vrot.slane %v1300, 4
    %v1334 = vadd.f32 %v1305, %v1332
    %v1336 = vrot.slane %v1299, 4
    %v1338 = vadd.f32 %v1306, %v1336
    %v1340 = vrot.slane %v1314, 4
    %v1343 = vrot.slane %v1322, 4
    %v1346 = vrot.slane %v1330, 4
    %v1349 = vrot.slane %v1338, 4
    %vm1351 = vcmask 1043456
    %v1352 = vsel %vm1351, %v1310, %v1340
    %v1353 = vsel %vm1351, %v1318, %v1343
    %v1354 = vsel %vm1351, %v1326, %v1346
    %v1355 = vsel %vm1351, %v1334, %v1349
    %v1356 = vld [vmem:[%s2 + $0x160] sm:$0xff]
    %v1357 = vld [vmem:[%s2 + $0x168] sm:$0xff]
    %v1358 = vld [vmem:[%s2 + $0x170] sm:$0xff]
    %v1359 = vld [vmem:[%s2 + $0x178] sm:$0xff]
    %v1360 = vld [vmem:[%s2 + $0x180] sm:$0xff]
    %v1361 = vld [vmem:[%s2 + $0x188] sm:$0xff]
    %v1362 = vld [vmem:[%s2 + $0x190] sm:$0xff]
    %v1363 = vld [vmem:[%s2 + $0x198] sm:$0xff]
    %v1364 = vld [vmem:[%s2 + $0x1a0] sm:$0xff]
    %v1365 = vld [vmem:[%s2 + $0x1a8] sm:$0xff]
    %v1366 = vld [vmem:[%s2 + $0x1b0] sm:$0xff]
    %v1367 = vld [vmem:[%s2 + $0x1b8] sm:$0xff]
    %v1368 = vld [vmem:[%s2 + $0x1c0] sm:$0xff]
    %v1369 = vld [vmem:[%s2 + $0x1c8] sm:$0xff]
    %v1370 = vld [vmem:[%s2 + $0x1d0] sm:$0xff]
    %v1371 = vld [vmem:[%s2 + $0x1d8] sm:$0xff]
    %s1372 = scalar_lea.vmem %s2, 608
    %v1373 = vld [vmem:[%s1372] ss:$8 sm:$0x3]
    %v1375 = vlaneseq
    %v1376 = vshrl.u32 %v1375, 7
    %v1377 = vsub.s32 0, %v1376
    %v1378 = vrot.slane %v1373, %v1377
    %v1379 = vlaneseq
    %v1380 = vshrl.u32 %v1379, 7
    %v1381 = vsub.s32 1, %v1380
    %v1382 = vrot.slane %v1373, %v1381
    %v1386 = vsel %vm493, %v1352, 0
    %v1389 = vsel %vm493, %v1353, 0
    %v1392 = vsel %vm493, %v1354, 0
    %v1395 = vsel %vm493, %v1355, 0
    %1397 = vmatprep.subr.mxu0 %v1357
    %1398 = vmatpush1.msra.mxu0 %v1356
    %1399 = vmatprep.subr.mxu0 %v1359
    %1400 = vmatpush1.msra.mxu0 %v1358
    %1401 = vmatprep.subr.mxu0 %v1361
    %1402 = vmatpush1.msra.mxu0 %v1360
    %1403 = vmatprep.subr.mxu0 %v1363
    %1404 = vmatpush1.msra.mxu0 %v1362
    %1405 = vmatprep.subr.mxu0 %v1365
    %1406 = vmatpush1.msra.mxu0 %v1364
    %1407 = vmatprep.subr.mxu0 %v1367
    %1408 = vmatpush1.msra.mxu0 %v1366
    %1409 = vmatprep.subr.mxu0 %v1369
    %1410 = vmatpush1.msra.mxu0 %v1368
    %1411 = vmatprep.subr.mxu0 %v1371
    %1412 = vmatpush1.msra.mxu0 %v1370
    %1413 = vmatprep.subr.mxu0 0.0
    %1414 = vmatpush1.msra.mxu0 0.0
    %1415 = vmatprep.subr.mxu0 0.0
    %1416 = vmatpush1.msra.mxu0 0.0
    %1417 = vmatprep.subr.mxu0 0.0
    %1418 = vmatpush1.msra.mxu0 0.0
    %1419 = vmatprep.subr.mxu0 0.0
    %1420 = vmatpush1.msra.mxu0 0.0
    %1421 = vmatprep.subr.mxu0 0.0
    %1422 = vmatpush1.msra.mxu0 0.0
    %1423 = vmatprep.subr.mxu0 0.0
    %1424 = vmatpush1.msra.mxu0 0.0
    %1425 = vmatprep.subr.mxu0 0.0
    %1426 = vmatpush1.msra.mxu0 0.0
    %1427 = vmatprep.subr.mxu0 0.0
    %1428 = vmatpush1.msra.mxu0 0.0
    %1429 = vmatprep.subr.mxu0 0.0
    %1430 = vmatpush1.msra.mxu0 0.0
    %1431 = vmatprep.subr.mxu0 0.0
    %1432 = vmatpush1.msra.mxu0 0.0
    %1433 = vmatprep.subr.mxu0 0.0
    %1434 = vmatpush1.msra.mxu0 0.0
    %1435 = vmatprep.subr.mxu0 0.0
    %1436 = vmatpush1.msra.mxu0 0.0
    %1437 = vmatprep.subr.mxu0 0.0
    %1438 = vmatpush1.msra.mxu0 0.0
    %1439 = vmatprep.subr.mxu0 0.0
    %1440 = vmatpush1.msra.mxu0 0.0
    %1441 = vmatprep.subr.mxu0 0.0
    %1442 = vmatpush1.msra.mxu0 0.0
    %1443 = vmatprep.subr.mxu0 0.0
    %1444 = vmatpush1.msra.mxu0 0.0
    %1445 = vmatprep.subr.mxu0 0.0
    %1446 = vmatpush1.msra.mxu0 0.0
    %1447 = vmatprep.subr.mxu0 0.0
    %1448 = vmatpush1.msra.mxu0 0.0
    %1449 = vmatprep.subr.mxu0 0.0
    %1450 = vmatpush1.msra.mxu0 0.0
    %1451 = vmatprep.subr.mxu0 0.0
    %1452 = vmatpush1.msra.mxu0 0.0
    %1453 = vmatprep.subr.mxu0 0.0
    %1454 = vmatpush1.msra.mxu0 0.0
    %1455 = vmatprep.subr.mxu0 0.0
    %1456 = vmatpush1.msra.mxu0 0.0
    %1457 = vmatprep.subr.mxu0 0.0
    %1458 = vmatpush1.msra.mxu0 0.0
    %1459 = vmatprep.subr.mxu0 0.0
    %1460 = vmatpush1.msra.mxu0 0.0
    %1461 = vmatprep.mubr.f32.mxu0 0.0
    %1462 = vmatmul.mubr.f32.gmra.mrb[0].mxu0 %v1386
    %v1463 = vpop.f32.mrb[0].mxu0
    %v1464 = vadd.f32 %v1378, %v1463
    %v1465 = vpop.f32.mrb[0].mxu0
    %v1466 = vadd.f32 %v1382, %v1465
    %1467 = vmatprep.mubr.f32.mxu0 0.0
    %1468 = vmatmul.mubr.f32.gmra.mrb[0].mxu0 %v1389
    %v1469 = vpop.f32.mrb[0].mxu0
    %v1470 = vadd.f32 %v1378, %v1469
    %v1471 = vpop.f32.mrb[0].mxu0
    %v1472 = vadd.f32 %v1382, %v1471
    %1473 = vmatprep.mubr.f32.mxu0 0.0
    %1474 = vmatmul.mubr.f32.gmra.mrb[0].mxu0 %v1392
    %v1475 = vpop.f32.mrb[0].mxu0
    %v1476 = vadd.f32 %v1378, %v1475
    %v1477 = vpop.f32.mrb[0].mxu0
    %v1478 = vadd.f32 %v1382, %v1477
    %1479 = vmatprep.mubr.f32.mxu0 0.0
    %1480 = vmatmul.mubr.f32.gmra.mrb[0].mxu0 %v1395
    %v1481 = vpop.f32.mrb[0].mxu0
    %v1482 = vadd.f32 %v1378, %v1481
    %v1483 = vpop.f32.mrb[0].mxu0
    %v1484 = vadd.f32 %v1382, %v1483
    %1485 = vdwg.mxu0
    %v1486 = vld [vmem:[%s2 + $0x1e0] sm:$0xff]
    %v1487 = vld [vmem:[%s2 + $0x1e8] sm:$0xff]
    %v1488 = vld [vmem:[%s2 + $0x1f0] sm:$0xff]
    %v1489 = vld [vmem:[%s2 + $0x1f8] sm:$0xff]
    %v1490 = vld [vmem:[%s2 + $0x200] sm:$0xff]
    %v1491 = vld [vmem:[%s2 + $0x208] sm:$0xff]
    %v1492 = vld [vmem:[%s2 + $0x210] sm:$0xff]
    %v1493 = vld [vmem:[%s2 + $0x218] sm:$0xff]
    %v1494 = vld [vmem:[%s2 + $0x220] sm:$0xff]
    %v1495 = vld [vmem:[%s2 + $0x228] sm:$0xff]
    %v1496 = vld [vmem:[%s2 + $0x230] sm:$0xff]
    %v1497 = vld [vmem:[%s2 + $0x238] sm:$0xff]
    %v1498 = vld [vmem:[%s2 + $0x240] sm:$0xff]
    %v1499 = vld [vmem:[%s2 + $0x248] sm:$0xff]
    %v1500 = vld [vmem:[%s2 + $0x250] sm:$0xff]
    %v1501 = vld [vmem:[%s2 + $0x258] sm:$0xff]
    %s1502 = scalar_lea.vmem %s2, 624
    %v1503 = vld [vmem:[%s1502] ss:$8 sm:$0x3]
    %v1505 = vlaneseq
    %v1506 = vshrl.u32 %v1505, 7
    %v1507 = vsub.s32 0, %v1506
    %v1508 = vrot.slane %v1503, %v1507
    %v1509 = vlaneseq
    %v1510 = vshrl.u32 %v1509, 7
    %v1511 = vsub.s32 1, %v1510
    %v1512 = vrot.slane %v1503, %v1511
    %1515 = vmatprep.subr.mxu0 %v1487
    %1516 = vmatpush1.msra.mxu0 %v1486
    %1517 = vmatprep.subr.mxu0 %v1489
    %1518 = vmatpush1.msra.mxu0 %v1488
    %1519 = vmatprep.subr.mxu0 %v1491
    %1520 = vmatpush1.msra.mxu0 %v1490
    %1521 = vmatprep.subr.mxu0 %v1493
    %1522 = vmatpush1.msra.mxu0 %v1492
    %1523 = vmatprep.subr.mxu0 %v1495
    %1524 = vmatpush1.msra.mxu0 %v1494
    %1525 = vmatprep.subr.mxu0 %v1497
    %1526 = vmatpush1.msra.mxu0 %v1496
    %1527 = vmatprep.subr.mxu0 %v1499
    %1528 = vmatpush1.msra.mxu0 %v1498
    %1529 = vmatprep.subr.mxu0 %v1501
    %1530 = vmatpush1.msra.mxu0 %v1500
    %1531 = vmatprep.subr.mxu0 0.0
    %1532 = vmatpush1.msra.mxu0 0.0
    %1533 = vmatprep.subr.mxu0 0.0
    %1534 = vmatpush1.msra.mxu0 0.0
    %1535 = vmatprep.subr.mxu0 0.0
    %1536 = vmatpush1.msra.mxu0 0.0
    %1537 = vmatprep.subr.mxu0 0.0
    %1538 = vmatpush1.msra.mxu0 0.0
    %1539 = vmatprep.subr.mxu0 0.0
    %1540 = vmatpush1.msra.mxu0 0.0
    %1541 = vmatprep.subr.mxu0 0.0
    %1542 = vmatpush1.msra.mxu0 0.0
    %1543 = vmatprep.subr.mxu0 0.0
    %1544 = vmatpush1.msra.mxu0 0.0
    %1545 = vmatprep.subr.mxu0 0.0
    %1546 = vmatpush1.msra.mxu0 0.0
    %1547 = vmatprep.subr.mxu0 0.0
    %1548 = vmatpush1.msra.mxu0 0.0
    %1549 = vmatprep.subr.mxu0 0.0
    %1550 = vmatpush1.msra.mxu0 0.0
    %1551 = vmatprep.subr.mxu0 0.0
    %1552 = vmatpush1.msra.mxu0 0.0
    %1553 = vmatprep.subr.mxu0 0.0
    %1554 = vmatpush1.msra.mxu0 0.0
    %1555 = vmatprep.subr.mxu0 0.0
    %1556 = vmatpush1.msra.mxu0 0.0
    %1557 = vmatprep.subr.mxu0 0.0
    %1558 = vmatpush1.msra.mxu0 0.0
    %1559 = vmatprep.subr.mxu0 0.0
    %1560 = vmatpush1.msra.mxu0 0.0
    %1561 = vmatprep.subr.mxu0 0.0
    %1562 = vmatpush1.msra.mxu0 0.0
    %1563 = vmatprep.subr.mxu0 0.0
    %1564 = vmatpush1.msra.mxu0 0.0
    %1565 = vmatprep.subr.mxu0 0.0
    %1566 = vmatpush1.msra.mxu0 0.0
    %1567 = vmatprep.subr.mxu0 0.0
    %1568 = vmatpush1.msra.mxu0 0.0
    %1569 = vmatprep.subr.mxu0 0.0
    %1570 = vmatpush1.msra.mxu0 0.0
    %1571 = vmatprep.subr.mxu0 0.0
    %1572 = vmatpush1.msra.mxu0 0.0
    %1573 = vmatprep.subr.mxu0 0.0
    %1574 = vmatpush1.msra.mxu0 0.0
    %1575 = vmatprep.subr.mxu0 0.0
    %1576 = vmatpush1.msra.mxu0 0.0
    %1577 = vmatprep.subr.mxu0 0.0
    %1578 = vmatpush1.msra.mxu0 0.0
    %1579 = vmatprep.mubr.f32.mxu0 0.0
    %1580 = vmatmul.mubr.f32.gmra.mrb[0].mxu0 %v1386
    %v1581 = vpop.f32.mrb[0].mxu0
    %v1582 = vadd.f32 %v1508, %v1581
    %v1583 = vpop.f32.mrb[0].mxu0
    %v1584 = vadd.f32 %v1512, %v1583
    %1585 = vmatprep.mubr.f32.mxu0 0.0
    %1586 = vmatmul.mubr.f32.gmra.mrb[0].mxu0 %v1389
    %v1587 = vpop.f32.mrb[0].mxu0
    %v1588 = vadd.f32 %v1508, %v1587
    %v1589 = vpop.f32.mrb[0].mxu0
    %v1590 = vadd.f32 %v1512, %v1589
    %1591 = vmatprep.mubr.f32.mxu0 0.0
    %1592 = vmatmul.mubr.f32.gmra.mrb[0].mxu0 %v1392
    %v1593 = vpop.f32.mrb[0].mxu0
    %v1594 = vadd.f32 %v1508, %v1593
    %v1595 = vpop.f32.mrb[0].mxu0
    %v1596 = vadd.f32 %v1512, %v1595
    %1597 = vmatprep.mubr.f32.mxu0 0.0
    %1598 = vmatmul.mubr.f32.gmra.mrb[0].mxu0 %v1395
    %v1599 = vpop.f32.mrb[0].mxu0
    %v1600 = vadd.f32 %v1508, %v1599
    %v1601 = vpop.f32.mrb[0].mxu0
    %v1602 = vadd.f32 %v1512, %v1601
    %1603 = vdwg.mxu0
    %1604 = vst [vmem:[#allocation2] sm:$0xf] %v1464
    %1605 = vst.msk [vmem:[#allocation2 + $0x8] sm:$0xf] %vm386, %v1466
    %1606 = vst [vmem:[#allocation2] sm:$0xf0] %v1600
    %1607 = vst.msk [vmem:[#allocation2 + $0x8] sm:$0xf0] %vm389, %v1602
    %v1610 = vrot.slane %v1464, 4
    %v1611 = vrot.slane %v1466, 4
    %1614 = vst [vmem:[%s397] sm:$0xf] %v1610
    %1615 = vst.msk [vmem:[%s397 + $0x8] sm:$0xf] %vm386, %v1611
    %v1618 = vrot.slane %v1600, 4
    %v1619 = vrot.slane %v1602, 4
    %1622 = vst [vmem:[%s397] sm:$0xf0] %v1618
    %1623 = vst.msk [vmem:[%s397 + $0x8] sm:$0xf0] %vm389, %v1619
    %1624 = vst [vmem:[%s408] sm:$0xf] %v1470
    %1625 = vst.msk [vmem:[%s408 + $0x8] sm:$0xf] %vm386, %v1472
    %1626 = vst [vmem:[%s408] sm:$0xf0] %v1594
    %1627 = vst.msk [vmem:[%s408 + $0x8] sm:$0xf0] %vm389, %v1596
    %v1630 = vrot.slane %v1470, 4
    %v1631 = vrot.slane %v1472, 4
    %1634 = vst [vmem:[%s419] sm:$0xf] %v1630
    %1635 = vst.msk [vmem:[%s419 + $0x8] sm:$0xf] %vm386, %v1631
    %v1638 = vrot.slane %v1594, 4
    %v1639 = vrot.slane %v1596, 4
    %1642 = vst [vmem:[%s419] sm:$0xf0] %v1638
    %1643 = vst.msk [vmem:[%s419 + $0x8] sm:$0xf0] %vm389, %v1639
    %1644 = vst [vmem:[%s430] sm:$0xf] %v1476
    %1645 = vst.msk [vmem:[%s430 + $0x8] sm:$0xf] %vm386, %v1478
    %1646 = vst [vmem:[%s430] sm:$0xf0] %v1588
    %1647 = vst.msk [vmem:[%s430 + $0x8] sm:$0xf0] %vm389, %v1590
    %v1650 = vrot.slane %v1476, 4
    %v1651 = vrot.slane %v1478, 4
    %1654 = vst [vmem:[%s441] sm:$0xf] %v1650
    %1655 = vst.msk [vmem:[%s441 + $0x8] sm:$0xf] %vm386, %v1651
    %v1658 = vrot.slane %v1588, 4
    %v1659 = vrot.slane %v1590, 4
    %1662 = vst [vmem:[%s441] sm:$0xf0] %v1658
    %1663 = vst.msk [vmem:[%s441 + $0x8] sm:$0xf0] %vm389, %v1659
    %1664 = vst [vmem:[%s452] sm:$0xf] %v1482
    %1665 = vst.msk [vmem:[%s452 + $0x8] sm:$0xf] %vm386, %v1484
    %1666 = vst [vmem:[%s452] sm:$0xf0] %v1582
    %1667 = vst.msk [vmem:[%s452 + $0x8] sm:$0xf0] %vm389, %v1584
    %v1670 = vrot.slane %v1482, 4
    %v1671 = vrot.slane %v1484, 4
    %1674 = vst [vmem:[%s463] sm:$0xf] %v1670
    %1675 = vst.msk [vmem:[%s463 + $0x8] sm:$0xf] %vm386, %v1671
    %v1678 = vrot.slane %v1582, 4
    %v1679 = vrot.slane %v1584, 4
    %1682 = vst [vmem:[%s463] sm:$0xf0] %v1678
    %1683 = vst.msk [vmem:[%s463 + $0x8] sm:$0xf0] %vm389, %v1679
    %v1684 = vld [vmem:[%s2 + $0x280] sm:$0xff]
    %v1685 = vld [vmem:[%s2 + $0x288] sm:$0xff]
    %v1686 = vld [vmem:[%s2 + $0x290] sm:$0xff]
    %v1687 = vld [vmem:[%s2 + $0x298] sm:$0xff]
    %v1688 = vld [vmem:[%s2 + $0x2a0] sm:$0xff]
    %v1689 = vld [vmem:[%s2 + $0x2a8] sm:$0xff]
    %v1690 = vld [vmem:[%s2 + $0x2b0] sm:$0xff]
    %v1691 = vld [vmem:[%s2 + $0x2b8] sm:$0xff]
    %v1692 = vld [vmem:[%s2 + $0x2c0] sm:$0xff]
    %v1693 = vld [vmem:[%s2 + $0x2c8] sm:$0xff]
    %v1694 = vld [vmem:[%s2 + $0x2d0] sm:$0xff]
    %v1695 = vld [vmem:[%s2 + $0x2d8] sm:$0xff]
    %v1696 = vld [vmem:[%s2 + $0x2e0] sm:$0xff]
    %v1697 = vld [vmem:[%s2 + $0x2e8] sm:$0xff]
    %v1698 = vld [vmem:[%s2 + $0x2f0] sm:$0xff]
    %v1699 = vld [vmem:[%s2 + $0x2f8] sm:$0xff]
    %v1700 = vld [vmem:[%s2 + $0x300] sm:$0xff]
    %v1701 = vld [vmem:[#allocation2] sm:$0xff]
    %v1702 = vld [vmem:[#allocation2 + $0x8] sm:$0xff]
    %1703 = vmatprep.subr.mxu0 %v1685
    %1704 = vmatpush1.msra.mxu0 %v1684
    %1705 = vmatprep.subr.mxu0 %v1687
    %1706 = vmatpush1.msra.mxu0 %v1686
    %1707 = vmatprep.subr.mxu0 %v1689
    %1708 = vmatpush1.msra.mxu0 %v1688
    %1709 = vmatprep.subr.mxu0 %v1691
    %1710 = vmatpush1.msra.mxu0 %v1690
    %1711 = vmatprep.subr.mxu0 %v1693
    %1712 = vmatpush1.msra.mxu0 %v1692
    %1713 = vmatprep.subr.mxu0 %v1695
    %1714 = vmatpush1.msra.mxu0 %v1694
    %1715 = vmatprep.subr.mxu0 %v1697
    %1716 = vmatpush1.msra.mxu0 %v1696
    %1717 = vmatprep.subr.mxu0 %v1699
    %1718 = vmatpush1.msra.mxu0 %v1698
    %1719 = vmatprep.subr.mxu0 0.0
    %1720 = vmatpush1.msra.mxu0 0.0
    %1721 = vmatprep.subr.mxu0 0.0
    %1722 = vmatpush1.msra.mxu0 0.0
    %1723 = vmatprep.subr.mxu0 0.0
    %1724 = vmatpush1.msra.mxu0 0.0
    %1725 = vmatprep.subr.mxu0 0.0
    %1726 = vmatpush1.msra.mxu0 0.0
    %1727 = vmatprep.subr.mxu0 0.0
    %1728 = vmatpush1.msra.mxu0 0.0
    %1729 = vmatprep.subr.mxu0 0.0
    %1730 = vmatpush1.msra.mxu0 0.0
    %1731 = vmatprep.subr.mxu0 0.0
    %1732 = vmatpush1.msra.mxu0 0.0
    %1733 = vmatprep.subr.mxu0 0.0
    %1734 = vmatpush1.msra.mxu0 0.0
    %1735 = vmatprep.subr.mxu0 0.0
    %1736 = vmatpush1.msra.mxu0 0.0
    %1737 = vmatprep.subr.mxu0 0.0
    %1738 = vmatpush1.msra.mxu0 0.0
    %1739 = vmatprep.subr.mxu0 0.0
    %1740 = vmatpush1.msra.mxu0 0.0
    %1741 = vmatprep.subr.mxu0 0.0
    %1742 = vmatpush1.msra.mxu0 0.0
    %1743 = vmatprep.subr.mxu0 0.0
    %1744 = vmatpush1.msra.mxu0 0.0
    %1745 = vmatprep.subr.mxu0 0.0
    %1746 = vmatpush1.msra.mxu0 0.0
    %1747 = vmatprep.subr.mxu0 0.0
    %1748 = vmatpush1.msra.mxu0 0.0
    %1749 = vmatprep.subr.mxu0 0.0
    %1750 = vmatpush1.msra.mxu0 0.0
    %1751 = vmatprep.subr.mxu0 0.0
    %1752 = vmatpush1.msra.mxu0 0.0
    %1753 = vmatprep.subr.mxu0 0.0
    %1754 = vmatpush1.msra.mxu0 0.0
    %1755 = vmatprep.subr.mxu0 0.0
    %1756 = vmatpush1.msra.mxu0 0.0
    %1757 = vmatprep.subr.mxu0 0.0
    %1758 = vmatpush1.msra.mxu0 0.0
    %1759 = vmatprep.subr.mxu0 0.0
    %1760 = vmatpush1.msra.mxu0 0.0
    %1761 = vmatprep.subr.mxu0 0.0
    %1762 = vmatpush1.msra.mxu0 0.0
    %1763 = vmatprep.subr.mxu0 0.0
    %1764 = vmatpush1.msra.mxu0 0.0
    %1765 = vmatprep.subr.mxu0 0.0
    %1766 = vmatpush1.msra.mxu0 0.0
    %1767 = vmatprep.mubr.f32.mxu0 0.0
    %1768 = vmatmul.mubr.f32.gmra.mrb[0].mxu0 %v495
    %v1769 = vpop.f32.mrb[0].mxu0
    %v1770 = vadd.f32 0.0, %v1769
    %v1771 = vpop.f32.mrb[0].mxu0
    %v1772 = vadd.f32 0.0, %v1771
    %1773 = vdwg.mxu0
    %v1774 = vadd.f32 %v1701, %v1770
    %v1775 = vxor.u32 %v1774, 2147483648
    %v1776 = vmul.f32 %v1775, 1.442695
    %v1777 = vpow.pop %v1776
    %v1778 = vadd.f32 %v1777, 1.0
    %v1779 = vrcp.pop %v1778
    %v1780 = vmul.f32 1.0, %v1779
    %v1781 = vadd.f32 %v1772, %v1700
    %v1782 = vmul.f32 %v1780, %v1781
    %v1783 = vadd.f32 %v1702, %v1782
    %v1784 = vtanh.pop %v1783
    %v1785 = vsub.f32 0.0, %v1784
    %1787 = vrot.lane.b32.xlu0 %v1785, 64
    %v1788 = vpop.permute.xlu0 %1787
    %v1790 = vmul.f32 %v1780, %v1788
    %1792 = vrot.lane.b32.xlu0 %v1790, 64
    %v1793 = vpop.permute.xlu0 %1792
    %v1795 = vadd.f32 %v1784, %v1793
    %v1796 = vsel %vm31, %v1795, 0.0
    %v1797 = vsel %vm39, %v1796, 0.0
    %v1798 = vld [vmem:[%s397] sm:$0xff]
    %v1799 = vld [vmem:[%s397 + $0x8] sm:$0xff]
    %v1801 = vsel %vm493, %v1796, 0
    %1803 = vmatprep.subr.mxu0 %v1685
    %1804 = vmatpush1.msra.mxu0 %v1684
    %1805 = vmatprep.subr.mxu0 %v1687
    %1806 = vmatpush1.msra.mxu0 %v1686
    %1807 = vmatprep.subr.mxu0 %v1689
    %1808 = vmatpush1.msra.mxu0 %v1688
    %1809 = vmatprep.subr.mxu0 %v1691
    %1810 = vmatpush1.msra.mxu0 %v1690
    %1811 = vmatprep.subr.mxu0 %v1693
    %1812 = vmatpush1.msra.mxu0 %v1692
    %1813 = vmatprep.subr.mxu0 %v1695
    %1814 = vmatpush1.msra.mxu0 %v1694
    %1815 = vmatprep.subr.mxu0 %v1697
    %1816 = vmatpush1.msra.mxu0 %v1696
    %1817 = vmatprep.subr.mxu0 %v1699
    %1818 = vmatpush1.msra.mxu0 %v1698
    %1819 = vmatprep.subr.mxu0 0.0
    %1820 = vmatpush1.msra.mxu0 0.0
    %1821 = vmatprep.subr.mxu0 0.0
    %1822 = vmatpush1.msra.mxu0 0.0
    %1823 = vmatprep.subr.mxu0 0.0
    %1824 = vmatpush1.msra.mxu0 0.0
    %1825 = vmatprep.subr.mxu0 0.0
    %1826 = vmatpush1.msra.mxu0 0.0
    %1827 = vmatprep.subr.mxu0 0.0
    %1828 = vmatpush1.msra.mxu0 0.0
    %1829 = vmatprep.subr.mxu0 0.0
    %1830 = vmatpush1.msra.mxu0 0.0
    %1831 = vmatprep.subr.mxu0 0.0
    %1832 = vmatpush1.msra.mxu0 0.0
    %1833 = vmatprep.subr.mxu0 0.0
    %1834 = vmatpush1.msra.mxu0 0.0
    %1835 = vmatprep.subr.mxu0 0.0
    %1836 = vmatpush1.msra.mxu0 0.0
    %1837 = vmatprep.subr.mxu0 0.0
    %1838 = vmatpush1.msra.mxu0 0.0
    %1839 = vmatprep.subr.mxu0 0.0
    %1840 = vmatpush1.msra.mxu0 0.0
    %1841 = vmatprep.subr.mxu0 0.0
    %1842 = vmatpush1.msra.mxu0 0.0
    %1843 = vmatprep.subr.mxu0 0.0
    %1844 = vmatpush1.msra.mxu0 0.0
    %1845 = vmatprep.subr.mxu0 0.0
    %1846 = vmatpush1.msra.mxu0 0.0
    %1847 = vmatprep.subr.mxu0 0.0
    %1848 = vmatpush1.msra.mxu0 0.0
    %1849 = vmatprep.subr.mxu0 0.0
    %1850 = vmatpush1.msra.mxu0 0.0
    %1851 = vmatprep.subr.mxu0 0.0
    %1852 = vmatpush1.msra.mxu0 0.0
    %1853 = vmatprep.subr.mxu0 0.0
    %1854 = vmatpush1.msra.mxu0 0.0
    %1855 = vmatprep.subr.mxu0 0.0
    %1856 = vmatpush1.msra.mxu0 0.0
    %1857 = vmatprep.subr.mxu0 0.0
    %1858 = vmatpush1.msra.mxu0 0.0
    %1859 = vmatprep.subr.mxu0 0.0
    %1860 = vmatpush1.msra.mxu0 0.0
    %1861 = vmatprep.subr.mxu0 0.0
    %1862 = vmatpush1.msra.mxu0 0.0
    %1863 = vmatprep.subr.mxu0 0.0
    %1864 = vmatpush1.msra.mxu0 0.0
    %1865 = vmatprep.subr.mxu0 0.0
    %1866 = vmatpush1.msra.mxu0 0.0
    %1867 = vmatprep.mubr.f32.mxu0 0.0
    %1868 = vmatmul.mubr.f32.gmra.mrb[0].mxu0 %v1801
    %v1869 = vpop.f32.mrb[0].mxu0
    %v1870 = vadd.f32 0.0, %v1869
    %v1871 = vpop.f32.mrb[0].mxu0
    %v1872 = vadd.f32 0.0, %v1871
    %1873 = vdwg.mxu0
    %v1874 = vadd.f32 %v1798, %v1870
    %v1875 = vxor.u32 %v1874, 2147483648
    %v1876 = vmul.f32 %v1875, 1.442695
    %v1877 = vpow.pop %v1876
    %v1878 = vadd.f32 %v1877, 1.0
    %v1879 = vrcp.pop %v1878
    %v1880 = vmul.f32 1.0, %v1879
    %v1881 = vadd.f32 %v1872, %v1700
    %v1882 = vmul.f32 %v1880, %v1881
    %v1883 = vadd.f32 %v1799, %v1882
    %v1884 = vtanh.pop %v1883
    %v1885 = vsub.f32 %v1796, %v1884
    %1887 = vrot.lane.b32.xlu0 %v1885, 64
    %v1888 = vpop.permute.xlu0 %1887
    %v1890 = vmul.f32 %v1880, %v1888
    %1892 = vrot.lane.b32.xlu0 %v1890, 64
    %v1893 = vpop.permute.xlu0 %1892
    %v1895 = vadd.f32 %v1884, %v1893
    %v1896 = vsel %vm32, %v1895, %v1796
    %v1897 = vsel %vm40, %v1896, %v1797
    %v1898 = vld [vmem:[%s408] sm:$0xff]
    %v1899 = vld [vmem:[%s408 + $0x8] sm:$0xff]
    %v1901 = vsel %vm493, %v1896, 0
    %1903 = vmatprep.subr.mxu0 %v1685
    %1904 = vmatpush1.msra.mxu0 %v1684
    %1905 = vmatprep.subr.mxu0 %v1687
    %1906 = vmatpush1.msra.mxu0 %v1686
    %1907 = vmatprep.subr.mxu0 %v1689
    %1908 = vmatpush1.msra.mxu0 %v1688
    %1909 = vmatprep.subr.mxu0 %v1691
    %1910 = vmatpush1.msra.mxu0 %v1690
    %1911 = vmatprep.subr.mxu0 %v1693
    %1912 = vmatpush1.msra.mxu0 %v1692
    %1913 = vmatprep.subr.mxu0 %v1695
    %1914 = vmatpush1.msra.mxu0 %v1694
    %1915 = vmatprep.subr.mxu0 %v1697
    %1916 = vmatpush1.msra.mxu0 %v1696
    %1917 = vmatprep.subr.mxu0 %v1699
    %1918 = vmatpush1.msra.mxu0 %v1698
    %1919 = vmatprep.subr.mxu0 0.0
    %1920 = vmatpush1.msra.mxu0 0.0
    %1921 = vmatprep.subr.mxu0 0.0
    %1922 = vmatpush1.msra.mxu0 0.0
    %1923 = vmatprep.subr.mxu0 0.0
    %1924 = vmatpush1.msra.mxu0 0.0
    %1925 = vmatprep.subr.mxu0 0.0
    %1926 = vmatpush1.msra.mxu0 0.0
    %1927 = vmatprep.subr.mxu0 0.0
    %1928 = vmatpush1.msra.mxu0 0.0
    %1929 = vmatprep.subr.mxu0 0.0
    %1930 = vmatpush1.msra.mxu0 0.0
    %1931 = vmatprep.subr.mxu0 0.0
    %1932 = vmatpush1.msra.mxu0 0.0
    %1933 = vmatprep.subr.mxu0 0.0
    %1934 = vmatpush1.msra.mxu0 0.0
    %1935 = vmatprep.subr.mxu0 0.0
    %1936 = vmatpush1.msra.mxu0 0.0
    %1937 = vmatprep.subr.mxu0 0.0
    %1938 = vmatpush1.msra.mxu0 0.0
    %1939 = vmatprep.subr.mxu0 0.0
    %1940 = vmatpush1.msra.mxu0 0.0
    %1941 = vmatprep.subr.mxu0 0.0
    %1942 = vmatpush1.msra.mxu0 0.0
    %1943 = vmatprep.subr.mxu0 0.0
    %1944 = vmatpush1.msra.mxu0 0.0
    %1945 = vmatprep.subr.mxu0 0.0
    %1946 = vmatpush1.msra.mxu0 0.0
    %1947 = vmatprep.subr.mxu0 0.0
    %1948 = vmatpush1.msra.mxu0 0.0
    %1949 = vmatprep.subr.mxu0 0.0
    %1950 = vmatpush1.msra.mxu0 0.0
    %1951 = vmatprep.subr.mxu0 0.0
    %1952 = vmatpush1.msra.mxu0 0.0
    %1953 = vmatprep.subr.mxu0 0.0
    %1954 = vmatpush1.msra.mxu0 0.0
    %1955 = vmatprep.subr.mxu0 0.0
    %1956 = vmatpush1.msra.mxu0 0.0
    %1957 = vmatprep.subr.mxu0 0.0
    %1958 = vmatpush1.msra.mxu0 0.0
    %1959 = vmatprep.subr.mxu0 0.0
    %1960 = vmatpush1.msra.mxu0 0.0
    %1961 = vmatprep.subr.mxu0 0.0
    %1962 = vmatpush1.msra.mxu0 0.0
    %1963 = vmatprep.subr.mxu0 0.0
    %1964 = vmatpush1.msra.mxu0 0.0
    %1965 = vmatprep.subr.mxu0 0.0
    %1966 = vmatpush1.msra.mxu0 0.0
    %1967 = vmatprep.mubr.f32.mxu0 0.0
    %1968 = vmatmul.mubr.f32.gmra.mrb[0].mxu0 %v1901
    %v1969 = vpop.f32.mrb[0].mxu0
    %v1970 = vadd.f32 0.0, %v1969
    %v1971 = vpop.f32.mrb[0].mxu0
    %v1972 = vadd.f32 0.0, %v1971
    %1973 = vdwg.mxu0
    %v1974 = vadd.f32 %v1898, %v1970
    %v1975 = vxor.u32 %v1974, 2147483648
    %v1976 = vmul.f32 %v1975, 1.442695
    %v1977 = vpow.pop %v1976
    %v1978 = vadd.f32 %v1977, 1.0
    %v1979 = vrcp.pop %v1978
    %v1980 = vmul.f32 1.0, %v1979
    %v1981 = vadd.f32 %v1972, %v1700
    %v1982 = vmul.f32 %v1980, %v1981
    %v1983 = vadd.f32 %v1899, %v1982
    %v1984 = vtanh.pop %v1983
    %v1985 = vsub.f32 %v1896, %v1984
    %1987 = vrot.lane.b32.xlu0 %v1985, 64
    %v1988 = vpop.permute.xlu0 %1987
    %v1990 = vmul.f32 %v1980, %v1988
    %1992 = vrot.lane.b32.xlu0 %v1990, 64
    %v1993 = vpop.permute.xlu0 %1992
    %v1995 = vadd.f32 %v1984, %v1993
    %v1996 = vsel %vm33, %v1995, %v1896
    %v1997 = vsel %vm41, %v1996, %v1897
    %v1998 = vld [vmem:[%s419] sm:$0xff]
    %v1999 = vld [vmem:[%s419 + $0x8] sm:$0xff]
    %v2001 = vsel %vm493, %v1996, 0
    %2003 = vmatprep.subr.mxu0 %v1685
    %2004 = vmatpush1.msra.mxu0 %v1684
    %2005 = vmatprep.subr.mxu0 %v1687
    %2006 = vmatpush1.msra.mxu0 %v1686
    %2007 = vmatprep.subr.mxu0 %v1689
    %2008 = vmatpush1.msra.mxu0 %v1688
    %2009 = vmatprep.subr.mxu0 %v1691
    %2010 = vmatpush1.msra.mxu0 %v1690
    %2011 = vmatprep.subr.mxu0 %v1693
    %2012 = vmatpush1.msra.mxu0 %v1692
    %2013 = vmatprep.subr.mxu0 %v1695
    %2014 = vmatpush1.msra.mxu0 %v1694
    %2015 = vmatprep.subr.mxu0 %v1697
    %2016 = vmatpush1.msra.mxu0 %v1696
    %2017 = vmatprep.subr.mxu0 %v1699
    %2018 = vmatpush1.msra.mxu0 %v1698
    %2019 = vmatprep.subr.mxu0 0.0
    %2020 = vmatpush1.msra.mxu0 0.0
    %2021 = vmatprep.subr.mxu0 0.0
    %2022 = vmatpush1.msra.mxu0 0.0
    %2023 = vmatprep.subr.mxu0 0.0
    %2024 = vmatpush1.msra.mxu0 0.0
    %2025 = vmatprep.subr.mxu0 0.0
    %2026 = vmatpush1.msra.mxu0 0.0
    %2027 = vmatprep.subr.mxu0 0.0
    %2028 = vmatpush1.msra.mxu0 0.0
    %2029 = vmatprep.subr.mxu0 0.0
    %2030 = vmatpush1.msra.mxu0 0.0
    %2031 = vmatprep.subr.mxu0 0.0
    %2032 = vmatpush1.msra.mxu0 0.0
    %2033 = vmatprep.subr.mxu0 0.0
    %2034 = vmatpush1.msra.mxu0 0.0
    %2035 = vmatprep.subr.mxu0 0.0
    %2036 = vmatpush1.msra.mxu0 0.0
    %2037 = vmatprep.subr.mxu0 0.0
    %2038 = vmatpush1.msra.mxu0 0.0
    %2039 = vmatprep.subr.mxu0 0.0
    %2040 = vmatpush1.msra.mxu0 0.0
    %2041 = vmatprep.subr.mxu0 0.0
    %2042 = vmatpush1.msra.mxu0 0.0
    %2043 = vmatprep.subr.mxu0 0.0
    %2044 = vmatpush1.msra.mxu0 0.0
    %2045 = vmatprep.subr.mxu0 0.0
    %2046 = vmatpush1.msra.mxu0 0.0
    %2047 = vmatprep.subr.mxu0 0.0
    %2048 = vmatpush1.msra.mxu0 0.0
    %2049 = vmatprep.subr.mxu0 0.0
    %2050 = vmatpush1.msra.mxu0 0.0
    %2051 = vmatprep.subr.mxu0 0.0
    %2052 = vmatpush1.msra.mxu0 0.0
    %2053 = vmatprep.subr.mxu0 0.0
    %2054 = vmatpush1.msra.mxu0 0.0
    %2055 = vmatprep.subr.mxu0 0.0
    %2056 = vmatpush1.msra.mxu0 0.0
    %2057 = vmatprep.subr.mxu0 0.0
    %2058 = vmatpush1.msra.mxu0 0.0
    %2059 = vmatprep.subr.mxu0 0.0
    %2060 = vmatpush1.msra.mxu0 0.0
    %2061 = vmatprep.subr.mxu0 0.0
    %2062 = vmatpush1.msra.mxu0 0.0
    %2063 = vmatprep.subr.mxu0 0.0
    %2064 = vmatpush1.msra.mxu0 0.0
    %2065 = vmatprep.subr.mxu0 0.0
    %2066 = vmatpush1.msra.mxu0 0.0
    %2067 = vmatprep.mubr.f32.mxu0 0.0
    %2068 = vmatmul.mubr.f32.gmra.mrb[0].mxu0 %v2001
    %v2069 = vpop.f32.mrb[0].mxu0
    %v2070 = vadd.f32 0.0, %v2069
    %v2071 = vpop.f32.mrb[0].mxu0
    %v2072 = vadd.f32 0.0, %v2071
    %2073 = vdwg.mxu0
    %v2074 = vadd.f32 %v1998, %v2070
    %v2075 = vxor.u32 %v2074, 2147483648
    %v2076 = vmul.f32 %v2075, 1.442695
    %v2077 = vpow.pop %v2076
    %v2078 = vadd.f32 %v2077, 1.0
    %v2079 = vrcp.pop %v2078
    %v2080 = vmul.f32 1.0, %v2079
    %v2081 = vadd.f32 %v2072, %v1700
    %v2082 = vmul.f32 %v2080, %v2081
    %v2083 = vadd.f32 %v1999, %v2082
    %v2084 = vtanh.pop %v2083
    %v2085 = vsub.f32 %v1996, %v2084
    %2087 = vrot.lane.b32.xlu0 %v2085, 64
    %v2088 = vpop.permute.xlu0 %2087
    %v2090 = vmul.f32 %v2080, %v2088
    %2092 = vrot.lane.b32.xlu0 %v2090, 64
    %v2093 = vpop.permute.xlu0 %2092
    %v2095 = vadd.f32 %v2084, %v2093
    %v2096 = vsel %vm34, %v2095, %v1996
    %v2097 = vsel %vm42, %v2096, %v1997
    %v2098 = vld [vmem:[%s430] sm:$0xff]
    %v2099 = vld [vmem:[%s430 + $0x8] sm:$0xff]
    %v2101 = vsel %vm493, %v2096, 0
    %2103 = vmatprep.subr.mxu0 %v1685
    %2104 = vmatpush1.msra.mxu0 %v1684
    %2105 = vmatprep.subr.mxu0 %v1687
    %2106 = vmatpush1.msra.mxu0 %v1686
    %2107 = vmatprep.subr.mxu0 %v1689
    %2108 = vmatpush1.msra.mxu0 %v1688
    %2109 = vmatprep.subr.mxu0 %v1691
    %2110 = vmatpush1.msra.mxu0 %v1690
    %2111 = vmatprep.subr.mxu0 %v1693
    %2112 = vmatpush1.msra.mxu0 %v1692
    %2113 = vmatprep.subr.mxu0 %v1695
    %2114 = vmatpush1.msra.mxu0 %v1694
    %2115 = vmatprep.subr.mxu0 %v1697
    %2116 = vmatpush1.msra.mxu0 %v1696
    %2117 = vmatprep.subr.mxu0 %v1699
    %2118 = vmatpush1.msra.mxu0 %v1698
    %2119 = vmatprep.subr.mxu0 0.0
    %2120 = vmatpush1.msra.mxu0 0.0
    %2121 = vmatprep.subr.mxu0 0.0
    %2122 = vmatpush1.msra.mxu0 0.0
    %2123 = vmatprep.subr.mxu0 0.0
    %2124 = vmatpush1.msra.mxu0 0.0
    %2125 = vmatprep.subr.mxu0 0.0
    %2126 = vmatpush1.msra.mxu0 0.0
    %2127 = vmatprep.subr.mxu0 0.0
    %2128 = vmatpush1.msra.mxu0 0.0
    %2129 = vmatprep.subr.mxu0 0.0
    %2130 = vmatpush1.msra.mxu0 0.0
    %2131 = vmatprep.subr.mxu0 0.0
    %2132 = vmatpush1.msra.mxu0 0.0
    %2133 = vmatprep.subr.mxu0 0.0
    %2134 = vmatpush1.msra.mxu0 0.0
    %2135 = vmatprep.subr.mxu0 0.0
    %2136 = vmatpush1.msra.mxu0 0.0
    %2137 = vmatprep.subr.mxu0 0.0
    %2138 = vmatpush1.msra.mxu0 0.0
    %2139 = vmatprep.subr.mxu0 0.0
    %2140 = vmatpush1.msra.mxu0 0.0
    %2141 = vmatprep.subr.mxu0 0.0
    %2142 = vmatpush1.msra.mxu0 0.0
    %2143 = vmatprep.subr.mxu0 0.0
    %2144 = vmatpush1.msra.mxu0 0.0
    %2145 = vmatprep.subr.mxu0 0.0
    %2146 = vmatpush1.msra.mxu0 0.0
    %2147 = vmatprep.subr.mxu0 0.0
    %2148 = vmatpush1.msra.mxu0 0.0
    %2149 = vmatprep.subr.mxu0 0.0
    %2150 = vmatpush1.msra.mxu0 0.0
    %2151 = vmatprep.subr.mxu0 0.0
    %2152 = vmatpush1.msra.mxu0 0.0
    %2153 = vmatprep.subr.mxu0 0.0
    %2154 = vmatpush1.msra.mxu0 0.0
    %2155 = vmatprep.subr.mxu0 0.0
    %2156 = vmatpush1.msra.mxu0 0.0
    %2157 = vmatprep.subr.mxu0 0.0
    %2158 = vmatpush1.msra.mxu0 0.0
    %2159 = vmatprep.subr.mxu0 0.0
    %2160 = vmatpush1.msra.mxu0 0.0
    %2161 = vmatprep.subr.mxu0 0.0
    %2162 = vmatpush1.msra.mxu0 0.0
    %2163 = vmatprep.subr.mxu0 0.0
    %2164 = vmatpush1.msra.mxu0 0.0
    %2165 = vmatprep.subr.mxu0 0.0
    %2166 = vmatpush1.msra.mxu0 0.0
    %2167 = vmatprep.mubr.f32.mxu0 0.0
    %2168 = vmatmul.mubr.f32.gmra.mrb[0].mxu0 %v2101
    %v2169 = vpop.f32.mrb[0].mxu0
    %v2170 = vadd.f32 0.0, %v2169
    %v2171 = vpop.f32.mrb[0].mxu0
    %v2172 = vadd.f32 0.0, %v2171
    %2173 = vdwg.mxu0
    %v2174 = vadd.f32 %v2098, %v2170
    %v2175 = vxor.u32 %v2174, 2147483648
    %v2176 = vmul.f32 %v2175, 1.442695
    %v2177 = vpow.pop %v2176
    %v2178 = vadd.f32 %v2177, 1.0
    %v2179 = vrcp.pop %v2178
    %v2180 = vmul.f32 1.0, %v2179
    %v2181 = vadd.f32 %v2172, %v1700
    %v2182 = vmul.f32 %v2180, %v2181
    %v2183 = vadd.f32 %v2099, %v2182
    %v2184 = vtanh.pop %v2183
    %v2185 = vsub.f32 %v2096, %v2184
    %2187 = vrot.lane.b32.xlu0 %v2185, 64
    %v2188 = vpop.permute.xlu0 %2187
    %v2190 = vmul.f32 %v2180, %v2188
    %2192 = vrot.lane.b32.xlu0 %v2190, 64
    %v2193 = vpop.permute.xlu0 %2192
    %v2195 = vadd.f32 %v2184, %v2193
    %v2196 = vsel %vm35, %v2195, %v2096
    %v2197 = vsel %vm43, %v2196, %v2097
    %v2198 = vld [vmem:[%s441] sm:$0xff]
    %v2199 = vld [vmem:[%s441 + $0x8] sm:$0xff]
    %v2201 = vsel %vm493, %v2196, 0
    %2203 = vmatprep.subr.mxu0 %v1685
    %2204 = vmatpush1.msra.mxu0 %v1684
    %2205 = vmatprep.subr.mxu0 %v1687
    %2206 = vmatpush1.msra.mxu0 %v1686
    %2207 = vmatprep.subr.mxu0 %v1689
    %2208 = vmatpush1.msra.mxu0 %v1688
    %2209 = vmatprep.subr.mxu0 %v1691
    %2210 = vmatpush1.msra.mxu0 %v1690
    %2211 = vmatprep.subr.mxu0 %v1693
    %2212 = vmatpush1.msra.mxu0 %v1692
    %2213 = vmatprep.subr.mxu0 %v1695
    %2214 = vmatpush1.msra.mxu0 %v1694
    %2215 = vmatprep.subr.mxu0 %v1697
    %2216 = vmatpush1.msra.mxu0 %v1696
    %2217 = vmatprep.subr.mxu0 %v1699
    %2218 = vmatpush1.msra.mxu0 %v1698
    %2219 = vmatprep.subr.mxu0 0.0
    %2220 = vmatpush1.msra.mxu0 0.0
    %2221 = vmatprep.subr.mxu0 0.0
    %2222 = vmatpush1.msra.mxu0 0.0
    %2223 = vmatprep.subr.mxu0 0.0
    %2224 = vmatpush1.msra.mxu0 0.0
    %2225 = vmatprep.subr.mxu0 0.0
    %2226 = vmatpush1.msra.mxu0 0.0
    %2227 = vmatprep.subr.mxu0 0.0
    %2228 = vmatpush1.msra.mxu0 0.0
    %2229 = vmatprep.subr.mxu0 0.0
    %2230 = vmatpush1.msra.mxu0 0.0
    %2231 = vmatprep.subr.mxu0 0.0
    %2232 = vmatpush1.msra.mxu0 0.0
    %2233 = vmatprep.subr.mxu0 0.0
    %2234 = vmatpush1.msra.mxu0 0.0
    %2235 = vmatprep.subr.mxu0 0.0
    %2236 = vmatpush1.msra.mxu0 0.0
    %2237 = vmatprep.subr.mxu0 0.0
    %2238 = vmatpush1.msra.mxu0 0.0
    %2239 = vmatprep.subr.mxu0 0.0
    %2240 = vmatpush1.msra.mxu0 0.0
    %2241 = vmatprep.subr.mxu0 0.0
    %2242 = vmatpush1.msra.mxu0 0.0
    %2243 = vmatprep.subr.mxu0 0.0
    %2244 = vmatpush1.msra.mxu0 0.0
    %2245 = vmatprep.subr.mxu0 0.0
    %2246 = vmatpush1.msra.mxu0 0.0
    %2247 = vmatprep.subr.mxu0 0.0
    %2248 = vmatpush1.msra.mxu0 0.0
    %2249 = vmatprep.subr.mxu0 0.0
    %2250 = vmatpush1.msra.mxu0 0.0
    %2251 = vmatprep.subr.mxu0 0.0
    %2252 = vmatpush1.msra.mxu0 0.0
    %2253 = vmatprep.subr.mxu0 0.0
    %2254 = vmatpush1.msra.mxu0 0.0
    %2255 = vmatprep.subr.mxu0 0.0
    %2256 = vmatpush1.msra.mxu0 0.0
    %2257 = vmatprep.subr.mxu0 0.0
    %2258 = vmatpush1.msra.mxu0 0.0
    %2259 = vmatprep.subr.mxu0 0.0
    %2260 = vmatpush1.msra.mxu0 0.0
    %2261 = vmatprep.subr.mxu0 0.0
    %2262 = vmatpush1.msra.mxu0 0.0
    %2263 = vmatprep.subr.mxu0 0.0
    %2264 = vmatpush1.msra.mxu0 0.0
    %2265 = vmatprep.subr.mxu0 0.0
    %2266 = vmatpush1.msra.mxu0 0.0
    %2267 = vmatprep.mubr.f32.mxu0 0.0
    %2268 = vmatmul.mubr.f32.gmra.mrb[0].mxu0 %v2201
    %v2269 = vpop.f32.mrb[0].mxu0
    %v2270 = vadd.f32 0.0, %v2269
    %v2271 = vpop.f32.mrb[0].mxu0
    %v2272 = vadd.f32 0.0, %v2271
    %2273 = vdwg.mxu0
    %v2274 = vadd.f32 %v2198, %v2270
    %v2275 = vxor.u32 %v2274, 2147483648
    %v2276 = vmul.f32 %v2275, 1.442695
    %v2277 = vpow.pop %v2276
    %v2278 = vadd.f32 %v2277, 1.0
    %v2279 = vrcp.pop %v2278
    %v2280 = vmul.f32 1.0, %v2279
    %v2281 = vadd.f32 %v2272, %v1700
    %v2282 = vmul.f32 %v2280, %v2281
    %v2283 = vadd.f32 %v2199, %v2282
    %v2284 = vtanh.pop %v2283
    %v2285 = vsub.f32 %v2196, %v2284
    %2287 = vrot.lane.b32.xlu0 %v2285, 64
    %v2288 = vpop.permute.xlu0 %2287
    %v2290 = vmul.f32 %v2280, %v2288
    %2292 = vrot.lane.b32.xlu0 %v2290, 64
    %v2293 = vpop.permute.xlu0 %2292
    %v2295 = vadd.f32 %v2284, %v2293
    %v2296 = vsel %vm36, %v2295, %v2196
    %v2297 = vsel %vm44, %v2296, %v2197
    %v2298 = vld [vmem:[%s452] sm:$0xff]
    %v2299 = vld [vmem:[%s452 + $0x8] sm:$0xff]
    %v2301 = vsel %vm493, %v2296, 0
    %2303 = vmatprep.subr.mxu0 %v1685
    %2304 = vmatpush1.msra.mxu0 %v1684
    %2305 = vmatprep.subr.mxu0 %v1687
    %2306 = vmatpush1.msra.mxu0 %v1686
    %2307 = vmatprep.subr.mxu0 %v1689
    %2308 = vmatpush1.msra.mxu0 %v1688
    %2309 = vmatprep.subr.mxu0 %v1691
    %2310 = vmatpush1.msra.mxu0 %v1690
    %2311 = vmatprep.subr.mxu0 %v1693
    %2312 = vmatpush1.msra.mxu0 %v1692
    %2313 = vmatprep.subr.mxu0 %v1695
    %2314 = vmatpush1.msra.mxu0 %v1694
    %2315 = vmatprep.subr.mxu0 %v1697
    %2316 = vmatpush1.msra.mxu0 %v1696
    %2317 = vmatprep.subr.mxu0 %v1699
    %2318 = vmatpush1.msra.mxu0 %v1698
    %2319 = vmatprep.subr.mxu0 0.0
    %2320 = vmatpush1.msra.mxu0 0.0
    %2321 = vmatprep.subr.mxu0 0.0
    %2322 = vmatpush1.msra.mxu0 0.0
    %2323 = vmatprep.subr.mxu0 0.0
    %2324 = vmatpush1.msra.mxu0 0.0
    %2325 = vmatprep.subr.mxu0 0.0
    %2326 = vmatpush1.msra.mxu0 0.0
    %2327 = vmatprep.subr.mxu0 0.0
    %2328 = vmatpush1.msra.mxu0 0.0
    %2329 = vmatprep.subr.mxu0 0.0
    %2330 = vmatpush1.msra.mxu0 0.0
    %2331 = vmatprep.subr.mxu0 0.0
    %2332 = vmatpush1.msra.mxu0 0.0
    %2333 = vmatprep.subr.mxu0 0.0
    %2334 = vmatpush1.msra.mxu0 0.0
    %2335 = vmatprep.subr.mxu0 0.0
    %2336 = vmatpush1.msra.mxu0 0.0
    %2337 = vmatprep.subr.mxu0 0.0
    %2338 = vmatpush1.msra.mxu0 0.0
    %2339 = vmatprep.subr.mxu0 0.0
    %2340 = vmatpush1.msra.mxu0 0.0
    %2341 = vmatprep.subr.mxu0 0.0
    %2342 = vmatpush1.msra.mxu0 0.0
    %2343 = vmatprep.subr.mxu0 0.0
    %2344 = vmatpush1.msra.mxu0 0.0
    %2345 = vmatprep.subr.mxu0 0.0
    %2346 = vmatpush1.msra.mxu0 0.0
    %2347 = vmatprep.subr.mxu0 0.0
    %2348 = vmatpush1.msra.mxu0 0.0
    %2349 = vmatprep.subr.mxu0 0.0
    %2350 = vmatpush1.msra.mxu0 0.0
    %2351 = vmatprep.subr.mxu0 0.0
    %2352 = vmatpush1.msra.mxu0 0.0
    %2353 = vmatprep.subr.mxu0 0.0
    %2354 = vmatpush1.msra.mxu0 0.0
    %2355 = vmatprep.subr.mxu0 0.0
    %2356 = vmatpush1.msra.mxu0 0.0
    %2357 = vmatprep.subr.mxu0 0.0
    %2358 = vmatpush1.msra.mxu0 0.0
    %2359 = vmatprep.subr.mxu0 0.0
    %2360 = vmatpush1.msra.mxu0 0.0
    %2361 = vmatprep.subr.mxu0 0.0
    %2362 = vmatpush1.msra.mxu0 0.0
    %2363 = vmatprep.subr.mxu0 0.0
    %2364 = vmatpush1.msra.mxu0 0.0
    %2365 = vmatprep.subr.mxu0 0.0
    %2366 = vmatpush1.msra.mxu0 0.0
    %2367 = vmatprep.mubr.f32.mxu0 0.0
    %2368 = vmatmul.mubr.f32.gmra.mrb[0].mxu0 %v2301
    %v2369 = vpop.f32.mrb[0].mxu0
    %v2370 = vadd.f32 0.0, %v2369
    %v2371 = vpop.f32.mrb[0].mxu0
    %v2372 = vadd.f32 0.0, %v2371
    %2373 = vdwg.mxu0
    %v2374 = vadd.f32 %v2298, %v2370
    %v2375 = vxor.u32 %v2374, 2147483648
    %v2376 = vmul.f32 %v2375, 1.442695
    %v2377 = vpow.pop %v2376
    %v2378 = vadd.f32 %v2377, 1.0
    %v2379 = vrcp.pop %v2378
    %v2380 = vmul.f32 1.0, %v2379
    %v2381 = vadd.f32 %v2372, %v1700
    %v2382 = vmul.f32 %v2380, %v2381
    %v2383 = vadd.f32 %v2299, %v2382
    %v2384 = vtanh.pop %v2383
    %v2385 = vsub.f32 %v2296, %v2384
    %2387 = vrot.lane.b32.xlu0 %v2385, 64
    %v2388 = vpop.permute.xlu0 %2387
    %v2390 = vmul.f32 %v2380, %v2388
    %2392 = vrot.lane.b32.xlu0 %v2390, 64
    %v2393 = vpop.permute.xlu0 %2392
    %v2395 = vadd.f32 %v2384, %v2393
    %v2396 = vsel %vm37, %v2395, %v2296
    %v2397 = vsel %vm45, %v2396, %v2297
    %v2398 = vld [vmem:[%s463] sm:$0xff]
    %v2399 = vld [vmem:[%s463 + $0x8] sm:$0xff]
    %v2401 = vsel %vm493, %v2396, 0
    %2403 = vmatprep.subr.mxu0 %v1685
    %2404 = vmatpush1.msra.mxu0 %v1684
    %2405 = vmatprep.subr.mxu0 %v1687
    %2406 = vmatpush1.msra.mxu0 %v1686
    %2407 = vmatprep.subr.mxu0 %v1689
    %2408 = vmatpush1.msra.mxu0 %v1688
    %2409 = vmatprep.subr.mxu0 %v1691
    %2410 = vmatpush1.msra.mxu0 %v1690
    %2411 = vmatprep.subr.mxu0 %v1693
    %2412 = vmatpush1.msra.mxu0 %v1692
    %2413 = vmatprep.subr.mxu0 %v1695
    %2414 = vmatpush1.msra.mxu0 %v1694
    %2415 = vmatprep.subr.mxu0 %v1697
    %2416 = vmatpush1.msra.mxu0 %v1696
    %2417 = vmatprep.subr.mxu0 %v1699
    %2418 = vmatpush1.msra.mxu0 %v1698
    %2419 = vmatprep.subr.mxu0 0.0
    %2420 = vmatpush1.msra.mxu0 0.0
    %2421 = vmatprep.subr.mxu0 0.0
    %2422 = vmatpush1.msra.mxu0 0.0
    %2423 = vmatprep.subr.mxu0 0.0
    %2424 = vmatpush1.msra.mxu0 0.0
    %2425 = vmatprep.subr.mxu0 0.0
    %2426 = vmatpush1.msra.mxu0 0.0
    %2427 = vmatprep.subr.mxu0 0.0
    %2428 = vmatpush1.msra.mxu0 0.0
    %2429 = vmatprep.subr.mxu0 0.0
    %2430 = vmatpush1.msra.mxu0 0.0
    %2431 = vmatprep.subr.mxu0 0.0
    %2432 = vmatpush1.msra.mxu0 0.0
    %2433 = vmatprep.subr.mxu0 0.0
    %2434 = vmatpush1.msra.mxu0 0.0
    %2435 = vmatprep.subr.mxu0 0.0
    %2436 = vmatpush1.msra.mxu0 0.0
    %2437 = vmatprep.subr.mxu0 0.0
    %2438 = vmatpush1.msra.mxu0 0.0
    %2439 = vmatprep.subr.mxu0 0.0
    %2440 = vmatpush1.msra.mxu0 0.0
    %2441 = vmatprep.subr.mxu0 0.0
    %2442 = vmatpush1.msra.mxu0 0.0
    %2443 = vmatprep.subr.mxu0 0.0
    %2444 = vmatpush1.msra.mxu0 0.0
    %2445 = vmatprep.subr.mxu0 0.0
    %2446 = vmatpush1.msra.mxu0 0.0
    %2447 = vmatprep.subr.mxu0 0.0
    %2448 = vmatpush1.msra.mxu0 0.0
    %2449 = vmatprep.subr.mxu0 0.0
    %2450 = vmatpush1.msra.mxu0 0.0
    %2451 = vmatprep.subr.mxu0 0.0
    %2452 = vmatpush1.msra.mxu0 0.0
    %2453 = vmatprep.subr.mxu0 0.0
    %2454 = vmatpush1.msra.mxu0 0.0
    %2455 = vmatprep.subr.mxu0 0.0
    %2456 = vmatpush1.msra.mxu0 0.0
    %2457 = vmatprep.subr.mxu0 0.0
    %2458 = vmatpush1.msra.mxu0 0.0
    %2459 = vmatprep.subr.mxu0 0.0
    %2460 = vmatpush1.msra.mxu0 0.0
    %2461 = vmatprep.subr.mxu0 0.0
    %2462 = vmatpush1.msra.mxu0 0.0
    %2463 = vmatprep.subr.mxu0 0.0
    %2464 = vmatpush1.msra.mxu0 0.0
    %2465 = vmatprep.subr.mxu0 0.0
    %2466 = vmatpush1.msra.mxu0 0.0
    %2467 = vmatprep.mubr.f32.mxu0 0.0
    %2468 = vmatmul.mubr.f32.gmra.mrb[0].mxu0 %v2401
    %v2469 = vpop.f32.mrb[0].mxu0
    %v2470 = vadd.f32 0.0, %v2469
    %v2471 = vpop.f32.mrb[0].mxu0
    %v2472 = vadd.f32 0.0, %v2471
    %2473 = vdwg.mxu0
    %v2474 = vadd.f32 %v2398, %v2470
    %v2475 = vxor.u32 %v2474, 2147483648
    %v2476 = vmul.f32 %v2475, 1.442695
    %v2477 = vpow.pop %v2476
    %v2478 = vadd.f32 %v2477, 1.0
    %v2479 = vrcp.pop %v2478
    %v2480 = vmul.f32 1.0, %v2479
    %v2481 = vadd.f32 %v2472, %v1700
    %v2482 = vmul.f32 %v2480, %v2481
    %v2483 = vadd.f32 %v2399, %v2482
    %v2484 = vtanh.pop %v2483
    %v2485 = vsub.f32 %v2396, %v2484
    %2487 = vrot.lane.b32.xlu0 %v2485, 64
    %v2488 = vpop.permute.xlu0 %2487
    %v2490 = vmul.f32 %v2480, %v2488
    %2492 = vrot.lane.b32.xlu0 %v2490, 64
    %v2493 = vpop.permute.xlu0 %2492
    %v2495 = vadd.f32 %v2484, %v2493
    %v2496 = vsel %vm38, %v2495, %v2396
    %v2497 = vsel %vm46, %v2496, %v2397
    %v2499 = vrot.slane %v2497, 4
    %v2501 = vadd.f32 %v2496, %v2499
    %v2502 = vld [vmem:[%s2 + $0x310] sm:$0xff]
    %v2503 = vld [vmem:[%s2 + $0x320] sm:$0xff]
    %v2504 = vld [vmem:[%s2 + $0x330] sm:$0xff]
    %v2505 = vld [vmem:[%s2 + $0x340] sm:$0xff]
    %v2506 = vld [vmem:[%s2 + $0x350] sm:$0xff]
    %v2507 = vld [vmem:[%s2 + $0x360] sm:$0xff]
    %v2508 = vld [vmem:[%s2 + $0x370] sm:$0xff]
    %v2509 = vld [vmem:[%s2 + $0x380] sm:$0xff]
    %v2510 = vld [vmem:[%s2 + $0x390] ss:$0 sm:$0xff]
    %v2512 = vsel %vm493, %v2501, 0
    %2514 = vmatprep.subr.mxu0 0.0
    %2515 = vmatpush1.msra.mxu0 %v2502
    %2516 = vmatprep.subr.mxu0 0.0
    %2517 = vmatpush1.msra.mxu0 %v2503
    %2518 = vmatprep.subr.mxu0 0.0
    %2519 = vmatpush1.msra.mxu0 %v2504
    %2520 = vmatprep.subr.mxu0 0.0
    %2521 = vmatpush1.msra.mxu0 %v2505
    %2522 = vmatprep.subr.mxu0 0.0
    %2523 = vmatpush1.msra.mxu0 %v2506
    %2524 = vmatprep.subr.mxu0 0.0
    %2525 = vmatpush1.msra.mxu0 %v2507
    %2526 = vmatprep.subr.mxu0 0.0
    %2527 = vmatpush1.msra.mxu0 %v2508
    %2528 = vmatprep.subr.mxu0 0.0
    %2529 = vmatpush1.msra.mxu0 %v2509
    %2530 = vmatprep.subr.mxu0 0.0
    %2531 = vmatpush1.msra.mxu0 0.0
    %2532 = vmatprep.subr.mxu0 0.0
    %2533 = vmatpush1.msra.mxu0 0.0
    %2534 = vmatprep.subr.mxu0 0.0
    %2535 = vmatpush1.msra.mxu0 0.0
    %2536 = vmatprep.subr.mxu0 0.0
    %2537 = vmatpush1.msra.mxu0 0.0
    %2538 = vmatprep.subr.mxu0 0.0
    %2539 = vmatpush1.msra.mxu0 0.0
    %2540 = vmatprep.subr.mxu0 0.0
    %2541 = vmatpush1.msra.mxu0 0.0
    %2542 = vmatprep.subr.mxu0 0.0
    %2543 = vmatpush1.msra.mxu0 0.0
    %2544 = vmatprep.subr.mxu0 0.0
    %2545 = vmatpush1.msra.mxu0 0.0
    %2546 = vmatprep.subr.mxu0 0.0
    %2547 = vmatpush1.msra.mxu0 0.0
    %2548 = vmatprep.subr.mxu0 0.0
    %2549 = vmatpush1.msra.mxu0 0.0
    %2550 = vmatprep.subr.mxu0 0.0
    %2551 = vmatpush1.msra.mxu0 0.0
    %2552 = vmatprep.subr.mxu0 0.0
    %2553 = vmatpush1.msra.mxu0 0.0
    %2554 = vmatprep.subr.mxu0 0.0
    %2555 = vmatpush1.msra.mxu0 0.0
    %2556 = vmatprep.subr.mxu0 0.0
    %2557 = vmatpush1.msra.mxu0 0.0
    %2558 = vmatprep.subr.mxu0 0.0
    %2559 = vmatpush1.msra.mxu0 0.0
    %2560 = vmatprep.subr.mxu0 0.0
    %2561 = vmatpush1.msra.mxu0 0.0
    %2562 = vmatprep.subr.mxu0 0.0
    %2563 = vmatpush1.msra.mxu0 0.0
    %2564 = vmatprep.subr.mxu0 0.0
    %2565 = vmatpush1.msra.mxu0 0.0
    %2566 = vmatprep.subr.mxu0 0.0
    %2567 = vmatpush1.msra.mxu0 0.0
    %2568 = vmatprep.subr.mxu0 0.0
    %2569 = vmatpush1.msra.mxu0 0.0
    %2570 = vmatprep.subr.mxu0 0.0
    %2571 = vmatpush1.msra.mxu0 0.0
    %2572 = vmatprep.subr.mxu0 0.0
    %2573 = vmatpush1.msra.mxu0 0.0
    %2574 = vmatprep.subr.mxu0 0.0
    %2575 = vmatpush1.msra.mxu0 0.0
    %2576 = vmatprep.subr.mxu0 0.0
    %2577 = vmatpush1.msra.mxu0 0.0
    %2578 = vmatprep.mubr.f32.mxu0 0.0
    %2579 = vmatmul.mubr.f32.gmra.mrb[0].mxu0 %v2512
    %v2580 = vpop.f32.mrb[0].mxu0
    %v2581 = vadd.f32 %v2510, %v2580
    %v2582 = vpop.f32.mrb[0].mxu0
    %2583 = vdwg.mxu0
    %v2584 = vld [vmem:[%s2 + $0x3a0] sm:$0xff]
    %v2585 = vld [vmem:[%s2 + $0x3b0] sm:$0xff]
    %v2586 = vld [vmem:[%s2 + $0x3c0] sm:$0xff]
    %v2587 = vld [vmem:[%s2 + $0x3d0] sm:$0xff]
    %v2588 = vld [vmem:[%s2 + $0x3e0] ss:$0 sm:$0xff]
    %v2590 = vsel %vm173, %v2581, 0
    %2592 = vmatprep.subr.mxu0 0.0
    %2593 = vmatpush1.msra.mxu0 %v2584
    %2594 = vmatprep.subr.mxu0 0.0
    %2595 = vmatpush1.msra.mxu0 %v2585
    %2596 = vmatprep.subr.mxu0 0.0
    %2597 = vmatpush1.msra.mxu0 %v2586
    %2598 = vmatprep.subr.mxu0 0.0
    %2599 = vmatpush1.msra.mxu0 %v2587
    %2600 = vmatprep.subr.mxu0 0.0
    %2601 = vmatpush1.msra.mxu0 0.0
    %2602 = vmatprep.subr.mxu0 0.0
    %2603 = vmatpush1.msra.mxu0 0.0
    %2604 = vmatprep.subr.mxu0 0.0
    %2605 = vmatpush1.msra.mxu0 0.0
    %2606 = vmatprep.subr.mxu0 0.0
    %2607 = vmatpush1.msra.mxu0 0.0
    %2608 = vmatprep.subr.mxu0 0.0
    %2609 = vmatpush1.msra.mxu0 0.0
    %2610 = vmatprep.subr.mxu0 0.0
    %2611 = vmatpush1.msra.mxu0 0.0
    %2612 = vmatprep.subr.mxu0 0.0
    %2613 = vmatpush1.msra.mxu0 0.0
    %2614 = vmatprep.subr.mxu0 0.0
    %2615 = vmatpush1.msra.mxu0 0.0
    %2616 = vmatprep.subr.mxu0 0.0
    %2617 = vmatpush1.msra.mxu0 0.0
    %2618 = vmatprep.subr.mxu0 0.0
    %2619 = vmatpush1.msra.mxu0 0.0
    %2620 = vmatprep.subr.mxu0 0.0
    %2621 = vmatpush1.msra.mxu0 0.0
    %2622 = vmatprep.subr.mxu0 0.0
    %2623 = vmatpush1.msra.mxu0 0.0
    %2624 = vmatprep.subr.mxu0 0.0
    %2625 = vmatpush1.msra.mxu0 0.0
    %2626 = vmatprep.subr.mxu0 0.0
    %2627 = vmatpush1.msra.mxu0 0.0
    %2628 = vmatprep.subr.mxu0 0.0
    %2629 = vmatpush1.msra.mxu0 0.0
    %2630 = vmatprep.subr.mxu0 0.0
    %2631 = vmatpush1.msra.mxu0 0.0
    %2632 = vmatprep.subr.mxu0 0.0
    %2633 = vmatpush1.msra.mxu0 0.0
    %2634 = vmatprep.subr.mxu0 0.0
    %2635 = vmatpush1.msra.mxu0 0.0
    %2636 = vmatprep.subr.mxu0 0.0
    %2637 = vmatpush1.msra.mxu0 0.0
    %2638 = vmatprep.subr.mxu0 0.0
    %2639 = vmatpush1.msra.mxu0 0.0
    %2640 = vmatprep.subr.mxu0 0.0
    %2641 = vmatpush1.msra.mxu0 0.0
    %2642 = vmatprep.subr.mxu0 0.0
    %2643 = vmatpush1.msra.mxu0 0.0
    %2644 = vmatprep.subr.mxu0 0.0
    %2645 = vmatpush1.msra.mxu0 0.0
    %2646 = vmatprep.subr.mxu0 0.0
    %2647 = vmatpush1.msra.mxu0 0.0
    %2648 = vmatprep.subr.mxu0 0.0
    %2649 = vmatpush1.msra.mxu0 0.0
    %2650 = vmatprep.subr.mxu0 0.0
    %2651 = vmatpush1.msra.mxu0 0.0
    %2652 = vmatprep.subr.mxu0 0.0
    %2653 = vmatpush1.msra.mxu0 0.0
    %2654 = vmatprep.subr.mxu0 0.0
    %2655 = vmatpush1.msra.mxu0 0.0
    %2656 = vmatprep.mubr.f32.mxu0 0.0
    %2657 = vmatmul.mubr.f32.gmra.mrb[0].mxu0 %v2590
    %v2658 = vpop.f32.mrb[0].mxu0
    %v2659 = vadd.f32 %v2588, %v2658
    %v2660 = vpop.f32.mrb[0].mxu0
    %2661 = vdwg.mxu0
    %vm2662 = vcmp.ge.f32.partialorder %v2659, 0.0
    %v2663 = vmul.f32 %v2659, 0.01
    %v2664 = vsel %vm2662, %v2659, %v2663
    %v2665 = vld [vmem:[%s2 + $0x3f0] sm:$0xff]
    %v2666 = vld [vmem:[%s2 + $0x400] sm:$0xff]
    %v2667 = vld [vmem:[%s2 + $0x410] sm:$0xff]
    %v2668 = vld [vmem:[%s2 + $0x420] sm:$0xff]
    %v2669 = vld [vmem:[%s2 + $0x430] ss:$0 sm:$0xff]
    %v2671 = vsel %vm173, %v2664, 0
    %2673 = vmatprep.subr.mxu0 0.0
    %2674 = vmatpush1.msra.mxu0 %v2665
    %2675 = vmatprep.subr.mxu0 0.0
    %2676 = vmatpush1.msra.mxu0 %v2666
    %2677 = vmatprep.subr.mxu0 0.0
    %2678 = vmatpush1.msra.mxu0 %v2667
    %2679 = vmatprep.subr.mxu0 0.0
    %2680 = vmatpush1.msra.mxu0 %v2668
    %2681 = vmatprep.subr.mxu0 0.0
    %2682 = vmatpush1.msra.mxu0 0.0
    %2683 = vmatprep.subr.mxu0 0.0
    %2684 = vmatpush1.msra.mxu0 0.0
    %2685 = vmatprep.subr.mxu0 0.0
    %2686 = vmatpush1.msra.mxu0 0.0
    %2687 = vmatprep.subr.mxu0 0.0
    %2688 = vmatpush1.msra.mxu0 0.0
    %2689 = vmatprep.subr.mxu0 0.0
    %2690 = vmatpush1.msra.mxu0 0.0
    %2691 = vmatprep.subr.mxu0 0.0
    %2692 = vmatpush1.msra.mxu0 0.0
    %2693 = vmatprep.subr.mxu0 0.0
    %2694 = vmatpush1.msra.mxu0 0.0
    %2695 = vmatprep.subr.mxu0 0.0
    %2696 = vmatpush1.msra.mxu0 0.0
    %2697 = vmatprep.subr.mxu0 0.0
    %2698 = vmatpush1.msra.mxu0 0.0
    %2699 = vmatprep.subr.mxu0 0.0
    %2700 = vmatpush1.msra.mxu0 0.0
    %2701 = vmatprep.subr.mxu0 0.0
    %2702 = vmatpush1.msra.mxu0 0.0
    %2703 = vmatprep.subr.mxu0 0.0
    %2704 = vmatpush1.msra.mxu0 0.0
    %2705 = vmatprep.subr.mxu0 0.0
    %2706 = vmatpush1.msra.mxu0 0.0
    %2707 = vmatprep.subr.mxu0 0.0
    %2708 = vmatpush1.msra.mxu0 0.0
    %2709 = vmatprep.subr.mxu0 0.0
    %2710 = vmatpush1.msra.mxu0 0.0
    %2711 = vmatprep.subr.mxu0 0.0
    %2712 = vmatpush1.msra.mxu0 0.0
    %2713 = vmatprep.subr.mxu0 0.0
    %2714 = vmatpush1.msra.mxu0 0.0
    %2715 = vmatprep.subr.mxu0 0.0
    %2716 = vmatpush1.msra.mxu0 0.0
    %2717 = vmatprep.subr.mxu0 0.0
    %2718 = vmatpush1.msra.mxu0 0.0
    %2719 = vmatprep.subr.mxu0 0.0
    %2720 = vmatpush1.msra.mxu0 0.0
    %2721 = vmatprep.subr.mxu0 0.0
    %2722 = vmatpush1.msra.mxu0 0.0
    %2723 = vmatprep.subr.mxu0 0.0
    %2724 = vmatpush1.msra.mxu0 0.0
    %2725 = vmatprep.subr.mxu0 0.0
    %2726 = vmatpush1.msra.mxu0 0.0
    %2727 = vmatprep.subr.mxu0 0.0
    %2728 = vmatpush1.msra.mxu0 0.0
    %2729 = vmatprep.subr.mxu0 0.0
    %2730 = vmatpush1.msra.mxu0 0.0
    %2731 = vmatprep.subr.mxu0 0.0
    %2732 = vmatpush1.msra.mxu0 0.0
    %2733 = vmatprep.subr.mxu0 0.0
    %2734 = vmatpush1.msra.mxu0 0.0
    %2735 = vmatprep.subr.mxu0 0.0
    %2736 = vmatpush1.msra.mxu0 0.0
    %2737 = vmatprep.mubr.f32.mxu0 0.0
    %2738 = vmatmul.mubr.f32.gmra.mrb[0].mxu0 %v2671
    %v2739 = vpop.f32.mrb[0].mxu0
    %v2740 = vadd.f32 %v2669, %v2739
    %v2741 = vpop.f32.mrb[0].mxu0
    %2742 = vdwg.mxu0
    %vm2743 = vcmask 19456
    %2744 = vst.msk [vmem:[#allocation4] sm:$0xf] %vm2743, %v2740
    // Predicated region
    $region14: #{seq_model_forward.1} parent=1 // pred_check
      _
    $region15: #{seq_model_forward.1} parent=1 // pred_check_branch
      %2746 = sbr.rel (0) target = $region17
    $region16: #{seq_model_forward.1} parent=1 // pred_region
      %s2748 = ssub.s32 64, 64
      %2749 = vsyncadd [#allocation5], %s2748
      %s2751 = sshll.u32 [#allocation4], 4
      %s2752 = int_to_ptr.vmem [resolvable:$true] %s2751
      %2754 = dma.vmem_to_hbm [thread:$0]  %s2752, 64, %s3, [#allocation5]
    $region17: #{seq_model_forward.1} parent=1 // pred_fallthru
      _
    // Predicated region
    $region18: #{seq_model_forward.1} parent=1 // pred_check
      _
    $region19: #{seq_model_forward.1} parent=1 // pred_check_branch
      %2756 = sbr.rel (0) target = $region21
    $region20: #{seq_model_forward.1} parent=1 // pred_region
      %2757 = dma.done [#allocation5], 64
    $region21: #{seq_model_forward.1} parent=1 // pred_fallthru
      _
    %2758 = vsyncpa [#allocation5], 1

</llo_original>
